<compile_context>
chip_gen: v5e
topology: v5e:2x2
jax: 0.10.0
libtpu: 0.0.40
codegen_flags: <defaults>
</compile_context>

<pallas_src>
import jax
import jax.numpy as jnp
from jax.experimental import pallas as pl
from jax.experimental.pallas import tpu as pltpu

# --- small shapes consistent with the module (scaled down) ---
B = 2            # batch
S = 8            # sequence length
D_BERT = 32      # stand-in BERT hidden size (real module: 768)
H = 32           # LSTM hidden size (real module: 128)
NUM_LAYERS = 2
NUM_DIRS = 2     # bidirectional=True
OUT_H = H * NUM_DIRS          # 64
ATT_PROJ = 64                 # SelfAttention projection width
NUM_CLASSES = 4
VOCAB = 100
G = 4 * H                     # gates per direction


def news_classifier_kernel(
    x_ref,                                         # (S*B, D_BERT) f32, row = t*B + b
    wih0_ref, b0_ref, whh0f_ref, whh0b_ref,        # layer 0: packed W_ih [fwd|bwd], b, W_hh f/b
    wih1f_ref, wih1r_ref, b1_ref, whh1f_ref, whh1b_ref,   # layer 1 (W_ih split by fwd/bwd input rows)
    aw1f_ref, aw1r_ref, ab1_ref, aw2_ref, ab2_ref,  # SelfAttention projection (Linear split + Linear(64,1))
    fcwf_ref, fcwr_ref, fcb_ref,                    # final classifier (split weight)
    selT_ref, sel_ref,                              # constant batch-selector masks (S*B,B) / (B,S*B)
    out_ref,                                        # (B, NUM_CLASSES)
):
    f32 = jnp.float32
    bf16 = jnp.bfloat16

    def lstm_cell(g, c):
        # PyTorch gate order (i, f, g, o); gates g are (B, 4H) f32.
        i_g = jax.nn.sigmoid(g[:, 0:H])
        f_g = jax.nn.sigmoid(g[:, H:2 * H])
        g_g = jnp.tanh(g[:, 2 * H:3 * H])
        o_g = jax.nn.sigmoid(g[:, 3 * H:4 * H])
        c = f_g * c + i_g * g_g
        h = o_g * jnp.tanh(c)
        return h, c

    def bilstm_layer(gx, whh_f, whh_b):
        """gx: (S*B, 8H) = precomputed x @ W_ih + b for both directions, [fwd | bwd] lanes.

        Forward and backward sweeps are interleaved in one loop; only h @ W_hh is serial.
        """
        hf = jnp.zeros((B, H), f32)
        cf = jnp.zeros((B, H), f32)
        hb = jnp.zeros((B, H), f32)
        cb = jnp.zeros((B, H), f32)
        outs_f = [None] * S
        outs_b = [None] * S
        # TODO(synk): at real sizes (long S, H=128) switch to lax.fori_loop writing into a
        # VMEM scratch so per-timestep activations do not all stay live simultaneously.
        for i in range(S):
            tf, tb = i, S - 1 - i
            gf = gx[tf * B:(tf + 1) * B, 0:G] + jnp.dot(
                hf.astype(bf16), whh_f, preferred_element_type=f32)
            gb = gx[tb * B:(tb + 1) * B, G:2 * G] + jnp.dot(
                hb.astype(bf16), whh_b, preferred_element_type=f32)
            hf, cf = lstm_cell(gf, cf)
            hb, cb = lstm_cell(gb, cb)
            outs_f[tf] = hf
            outs_b[tb] = hb
        # (S*B, H) stacks, row = t*B + b (forward / backward outputs at position t)
        return jnp.concatenate(outs_f, axis=0), jnp.concatenate(outs_b, axis=0)

    # ---- BiLSTM layer 0: hoisted input projection (single batched matmul) ----
    x2 = x_ref[...].astype(bf16)                                           # (S*B, D)
    gx0 = jnp.dot(x2, wih0_ref[...], preferred_element_type=f32) + b0_ref[...]
    f0, r0 = bilstm_layer(gx0, whh0f_ref[...], whh0b_ref[...])

    # ---- BiLSTM layer 1: split-weight form avoids the [fwd|bwd] lane concat ----
    gx1 = (jnp.dot(f0.astype(bf16), wih1f_ref[...], preferred_element_type=f32)
           + jnp.dot(r0.astype(bf16), wih1r_ref[...], preferred_element_type=f32)
           + b1_ref[...])
    f1, r1 = bilstm_layer(gx1, whh1f_ref[...], whh1b_ref[...])

    # ---- SelfAttention: Linear(2H,64) -> ReLU -> Linear(64,1), softmax over seq ----
    hproj = jnp.maximum(
        jnp.dot(f1.astype(bf16), aw1f_ref[...], preferred_element_type=f32)
        + jnp.dot(r1.astype(bf16), aw1r_ref[...], preferred_element_type=f32)
        + ab1_ref[...], 0.0)                                               # (S*B, 64)
    e_col = jnp.sum(hproj * aw2_ref[...], axis=1, keepdims=True) + ab2_ref[...]  # (S*B, 1)

    # softmax over t within each batch group (rows are t*B + b); a single global max is a
    # valid (constant-per-group) stabilization shift, so per-group max is unnecessary.
    m = jnp.max(e_col, axis=0, keepdims=True)                              # (1, 1)
    p_col = jnp.exp(e_col - m)                                             # (S*B, 1)
    selT = selT_ref[...]                                                   # (S*B, B) 0/1
    den_1b = jnp.sum(p_col * selT, axis=0, keepdims=True)                  # (1, B) per-batch denom
    den_col = jnp.sum(selT * den_1b, axis=1, keepdims=True)                # (S*B, 1) scattered back
    w_col = p_col * pl.reciprocal(den_col, approx=True)                    # (S*B, 1) softmax weights

    # context = sum_t w[t,b] * out[t,b,:] as ONE contraction per direction (selector matmul)
    sel = sel_ref[...]                                                     # (B, S*B) bf16 0/1
    ctx_f = jnp.dot(sel, (f1 * w_col).astype(bf16), preferred_element_type=f32)   # (B, H)
    ctx_r = jnp.dot(sel, (r1 * w_col).astype(bf16), preferred_element_type=f32)   # (B, H)

    # ---- final classifier (split-weight form of [ctx_f | ctx_r] @ fcW^T) ----
    # (B, NUM_CLASSES) = (2, 4): sub-128-lane masked store, accepted knowingly at this size.
    logits = (jnp.dot(ctx_f.astype(bf16), fcwf_ref[...], preferred_element_type=f32)
              + jnp.dot(ctx_r.astype(bf16), fcwr_ref[...], preferred_element_type=f32)
              + fcb_ref[...])
    out_ref[...] = logits


def news_classifier_forward(last_hidden_state, packed_params):
    """last_hidden_state: (B, S, D_BERT); packed_params: list from pack_params()."""
    # Flatten time-major so per-timestep gate slices in the kernel are contiguous row blocks.
    x2 = jnp.transpose(last_hidden_state, (1, 0, 2)).reshape(S * B, D_BERT)
    # Constant batch-selector masks (built once on host; avoids in-kernel iota/modulo work).
    eye = jnp.eye(B, dtype=jnp.float32)
    selT = jnp.tile(eye, (S, 1))                      # (S*B, B): selT[j, b] = (j % B == b)
    sel = jnp.transpose(selT).astype(jnp.bfloat16)    # (B, S*B)

    inputs = (x2,) + tuple(packed_params) + (selT, sel)
    vmem = pl.BlockSpec(memory_space=pltpu.MemorySpace.VMEM)
    # TODO(synk): at real batch sizes add grid=(pl.cdiv(B, TB),) with batch-blocked specs and
    # dimension_semantics=("parallel",) to shard across v7x's two TensorCores.
    return pl.pallas_call(
        news_classifier_kernel,
        out_shape=jax.ShapeDtypeStruct((B, NUM_CLASSES), jnp.float32),
        in_specs=[vmem] * len(inputs),
        out_specs=vmem,
        compiler_params=pltpu.CompilerParams(vmem_limit_bytes=32 * 1024 * 1024),
    )(*inputs)


def init_params(key):
    """Raw per-direction parameters, pre-transposed to the `x @ W` convention."""
    keys = iter(jax.random.split(key, 32))

    def u(shape, scale=0.1):
        return jax.random.uniform(next(keys), shape, jnp.float32, -scale, scale)

    raw = {}
    for layer in range(NUM_LAYERS):
        in_size = D_BERT if layer == 0 else OUT_H
        for tag in ("f", "b"):
            raw[f"wih{layer}{tag}"] = u((in_size, 4 * H))          # W_ih^T
            raw[f"whh{layer}{tag}"] = u((H, 4 * H))                # W_hh^T
            raw[f"bias{layer}{tag}"] = u((1, 4 * H)) + u((1, 4 * H))   # b_ih + b_hh
    raw["attw1"] = u((OUT_H, ATT_PROJ))                            # Linear(2H, 64).weight^T
    raw["attb1"] = u((1, ATT_PROJ))
    raw["attw2"] = u((1, ATT_PROJ))                                # Linear(64, 1).weight (row)
    raw["attb2"] = u((1, 1))
    raw["fcw"] = u((OUT_H, NUM_CLASSES))                           # fc.weight^T
    raw["fcb"] = u((1, NUM_CLASSES))
    return raw


def pack_params(raw):
    """Pack/split/cast weights for the kernel: bf16 matmul operands, f32 biases."""
    bf = lambda a: a.astype(jnp.bfloat16)
    packed = [
        # layer 0: W_ih for both directions packed along the output (lane) dim
        bf(jnp.concatenate([raw["wih0f"], raw["wih0b"]], axis=1)),            # (D, 8H)
        jnp.concatenate([raw["bias0f"], raw["bias0b"]], axis=1),              # (1, 8H)
        bf(raw["whh0f"]), bf(raw["whh0b"]),                                   # (H, 4H) each
        # layer 1: split W_ih by input rows (forward feats / backward feats), pack both dirs
        bf(jnp.concatenate([raw["wih1f"][:H], raw["wih1b"][:H]], axis=1)),    # (H, 8H)
        bf(jnp.concatenate([raw["wih1f"][H:], raw["wih1b"][H:]], axis=1)),    # (H, 8H)
        jnp.concatenate([raw["bias1f"], raw["bias1b"]], axis=1),              # (1, 8H)
        bf(raw["whh1f"]), bf(raw["whh1b"]),
        # attention projection (Linear(2H,64) split by fwd/bwd feature rows)
        bf(raw["attw1"][:H]), bf(raw["attw1"][H:]), raw["attb1"],
        raw["attw2"], raw["attb2"],                                           # kept f32 (elementwise)
        # final classifier, split by fwd/bwd feature rows
        bf(raw["fcw"][:H]), bf(raw["fcw"][H:]), raw["fcb"],
    ]
    return packed


if __name__ == "__main__":
    key = jax.random.PRNGKey(0)
    k_emb, k_ids, k_par = jax.random.split(key, 3)

    # deterministic stand-in for the pretrained BERT encoder (embedding lookup)
    emb_table = jax.random.normal(k_emb, (VOCAB, D_BERT), jnp.float32) * 0.02
    input_ids = jax.random.randint(k_ids, (B, S), 0, VOCAB)
    attention_mask = jnp.ones((B, S), jnp.int32)   # accepted but unused (see TODO above)
    last_hidden_state = jnp.take(emb_table, input_ids, axis=0)   # (B, S, D_BERT)

    packed = pack_params(init_params(k_par))

    logits = news_classifier_forward(last_hidden_state, packed)
    jax.block_until_ready(logits)
    assert logits.shape == (B, NUM_CLASSES)
    assert bool(jnp.all(jnp.isfinite(logits)))
    print("KERNEL_OK")
</pallas_src>

<mosaic_0001>
module attributes {stable_mosaic.version = 11 : i64} {
  func.func @news_classifier_kernel(%arg0: memref<16x32xf32, #tpu.memory_space<vmem>>, %arg1: memref<32x256xbf16, #tpu.memory_space<vmem>>, %arg2: memref<1x256xf32, #tpu.memory_space<vmem>>, %arg3: memref<32x128xbf16, #tpu.memory_space<vmem>>, %arg4: memref<32x128xbf16, #tpu.memory_space<vmem>>, %arg5: memref<32x256xbf16, #tpu.memory_space<vmem>>, %arg6: memref<32x256xbf16, #tpu.memory_space<vmem>>, %arg7: memref<1x256xf32, #tpu.memory_space<vmem>>, %arg8: memref<32x128xbf16, #tpu.memory_space<vmem>>, %arg9: memref<32x128xbf16, #tpu.memory_space<vmem>>, %arg10: memref<32x64xbf16, #tpu.memory_space<vmem>>, %arg11: memref<32x64xbf16, #tpu.memory_space<vmem>>, %arg12: memref<1x64xf32, #tpu.memory_space<vmem>>, %arg13: memref<1x64xf32, #tpu.memory_space<vmem>>, %arg14: memref<1x1xf32, #tpu.memory_space<vmem>>, %arg15: memref<32x4xbf16, #tpu.memory_space<vmem>>, %arg16: memref<32x4xbf16, #tpu.memory_space<vmem>>, %arg17: memref<1x4xf32, #tpu.memory_space<vmem>>, %arg18: memref<16x2xf32, #tpu.memory_space<vmem>>, %arg19: memref<2x16xbf16, #tpu.memory_space<vmem>>, %arg20: memref<2x4xf32, #tpu.memory_space<vmem>>) attributes {dimension_semantics = [], scalar_prefetch = 0 : i64, scratch_operands = 0 : i64, tpu.core_type = #tpu.core_type<tc>} {
    %c0 = arith.constant 0 : index
    %c0_0 = arith.constant 0 : index
    %0 = vector.load %arg0[%c0, %c0_0] : memref<16x32xf32, #tpu.memory_space<vmem>>, vector<16x32xf32>
    %1 = arith.truncf %0 : vector<16x32xf32> to vector<16x32xbf16>
    %c0_1 = arith.constant 0 : index
    %c0_2 = arith.constant 0 : index
    %2 = vector.load %arg1[%c0_1, %c0_2] : memref<32x256xbf16, #tpu.memory_space<vmem>>, vector<32x256xbf16>
    %cst = arith.constant dense<0.000000e+00> : vector<16x256xf32>
    %3 = tpu.matmul %1, %2, %cst {dimension_numbers = #tpu.dot_dimension_numbers<[1], [0], [0], [1], [0, 0, 1, 1], [], []>} : vector<16x32xbf16>, vector<32x256xbf16>, vector<16x256xf32> -> vector<16x256xf32>
    %c0_3 = arith.constant 0 : index
    %c0_4 = arith.constant 0 : index
    %4 = vector.load %arg2[%c0_3, %c0_4] : memref<1x256xf32, #tpu.memory_space<vmem>>, vector<1x256xf32>
    %5 = vector.broadcast %4 : vector<1x256xf32> to vector<16x256xf32>
    %6 = arith.addf %3, %5 : vector<16x256xf32>
    %c0_5 = arith.constant 0 : index
    %c0_6 = arith.constant 0 : index
    %7 = vector.load %arg3[%c0_5, %c0_6] : memref<32x128xbf16, #tpu.memory_space<vmem>>, vector<32x128xbf16>
    %c0_7 = arith.constant 0 : index
    %c0_8 = arith.constant 0 : index
    %8 = vector.load %arg4[%c0_7, %c0_8] : memref<32x128xbf16, #tpu.memory_space<vmem>>, vector<32x128xbf16>
    %cst_9 = arith.constant 0.000000e+00 : f32
    %9 = vector.broadcast %cst_9 : f32 to vector<2x32xf32>
    %cst_10 = arith.constant 0.000000e+00 : f32
    %10 = vector.broadcast %cst_10 : f32 to vector<2x32xf32>
    %cst_11 = arith.constant 0.000000e+00 : f32
    %11 = vector.broadcast %cst_11 : f32 to vector<2x32xf32>
    %cst_12 = arith.constant 0.000000e+00 : f32
    %12 = vector.broadcast %cst_12 : f32 to vector<2x32xf32>
    %13 = vector.extract_strided_slice %6 {offsets = [0, 0], sizes = [2, 128], strides = [1, 1]} : vector<16x256xf32> to vector<2x128xf32>
    %14 = arith.truncf %9 : vector<2x32xf32> to vector<2x32xbf16>
    %cst_13 = arith.constant dense<0.000000e+00> : vector<2x128xf32>
    %15 = tpu.matmul %14, %7, %cst_13 {dimension_numbers = #tpu.dot_dimension_numbers<[1], [0], [0], [1], [0, 0, 1, 1], [], []>} : vector<2x32xbf16>, vector<32x128xbf16>, vector<2x128xf32> -> vector<2x128xf32>
    %16 = arith.addf %13, %15 : vector<2x128xf32>
    %17 = vector.extract_strided_slice %6 {offsets = [14, 128], sizes = [2, 128], strides = [1, 1]} : vector<16x256xf32> to vector<2x128xf32>
    %18 = arith.truncf %11 : vector<2x32xf32> to vector<2x32xbf16>
    %cst_14 = arith.constant dense<0.000000e+00> : vector<2x128xf32>
    %19 = tpu.matmul %18, %8, %cst_14 {dimension_numbers = #tpu.dot_dimension_numbers<[1], [0], [0], [1], [0, 0, 1, 1], [], []>} : vector<2x32xbf16>, vector<32x128xbf16>, vector<2x128xf32> -> vector<2x128xf32>
    %20 = arith.addf %17, %19 : vector<2x128xf32>
    %21 = vector.extract_strided_slice %16 {offsets = [0, 0], sizes = [2, 32], strides = [1, 1]} : vector<2x128xf32> to vector<2x32xf32>
    %22 = arith.negf %21 : vector<2x32xf32>
    %23 = math.exp %22 : vector<2x32xf32>
    %cst_15 = arith.constant 1.000000e+00 : f32
    %24 = vector.broadcast %cst_15 : f32 to vector<2x32xf32>
    %25 = arith.addf %24, %23 : vector<2x32xf32>
    %26 = arith.divf %24, %25 : vector<2x32xf32>
    %27 = vector.extract_strided_slice %16 {offsets = [0, 32], sizes = [2, 32], strides = [1, 1]} : vector<2x128xf32> to vector<2x32xf32>
    %28 = arith.negf %27 : vector<2x32xf32>
    %29 = math.exp %28 : vector<2x32xf32>
    %cst_16 = arith.constant 1.000000e+00 : f32
    %30 = vector.broadcast %cst_16 : f32 to vector<2x32xf32>
    %31 = arith.addf %30, %29 : vector<2x32xf32>
    %32 = arith.divf %30, %31 : vector<2x32xf32>
    %33 = vector.extract_strided_slice %16 {offsets = [0, 64], sizes = [2, 32], strides = [1, 1]} : vector<2x128xf32> to vector<2x32xf32>
    %34 = math.tanh %33 : vector<2x32xf32>
    %35 = vector.extract_strided_slice %16 {offsets = [0, 96], sizes = [2, 32], strides = [1, 1]} : vector<2x128xf32> to vector<2x32xf32>
    %36 = arith.negf %35 : vector<2x32xf32>
    %37 = math.exp %36 : vector<2x32xf32>
    %cst_17 = arith.constant 1.000000e+00 : f32
    %38 = vector.broadcast %cst_17 : f32 to vector<2x32xf32>
    %39 = arith.addf %38, %37 : vector<2x32xf32>
    %40 = arith.divf %38, %39 : vector<2x32xf32>
    %41 = arith.mulf %32, %10 : vector<2x32xf32>
    %42 = arith.mulf %26, %34 : vector<2x32xf32>
    %43 = arith.addf %41, %42 : vector<2x32xf32>
    %44 = math.tanh %43 : vector<2x32xf32>
    %45 = arith.mulf %40, %44 : vector<2x32xf32>
    %46 = vector.extract_strided_slice %20 {offsets = [0, 0], sizes = [2, 32], strides = [1, 1]} : vector<2x128xf32> to vector<2x32xf32>
    %47 = arith.negf %46 : vector<2x32xf32>
    %48 = math.exp %47 : vector<2x32xf32>
    %cst_18 = arith.constant 1.000000e+00 : f32
    %49 = vector.broadcast %cst_18 : f32 to vector<2x32xf32>
    %50 = arith.addf %49, %48 : vector<2x32xf32>
    %51 = arith.divf %49, %50 : vector<2x32xf32>
    %52 = vector.extract_strided_slice %20 {offsets = [0, 32], sizes = [2, 32], strides = [1, 1]} : vector<2x128xf32> to vector<2x32xf32>
    %53 = arith.negf %52 : vector<2x32xf32>
    %54 = math.exp %53 : vector<2x32xf32>
    %cst_19 = arith.constant 1.000000e+00 : f32
    %55 = vector.broadcast %cst_19 : f32 to vector<2x32xf32>
    %56 = arith.addf %55, %54 : vector<2x32xf32>
    %57 = arith.divf %55, %56 : vector<2x32xf32>
    %58 = vector.extract_strided_slice %20 {offsets = [0, 64], sizes = [2, 32], strides = [1, 1]} : vector<2x128xf32> to vector<2x32xf32>
    %59 = math.tanh %58 : vector<2x32xf32>
    %60 = vector.extract_strided_slice %20 {offsets = [0, 96], sizes = [2, 32], strides = [1, 1]} : vector<2x128xf32> to vector<2x32xf32>
    %61 = arith.negf %60 : vector<2x32xf32>
    %62 = math.exp %61 : vector<2x32xf32>
    %cst_20 = arith.constant 1.000000e+00 : f32
    %63 = vector.broadcast %cst_20 : f32 to vector<2x32xf32>
    %64 = arith.addf %63, %62 : vector<2x32xf32>
    %65 = arith.divf %63, %64 : vector<2x32xf32>
    %66 = arith.mulf %57, %12 : vector<2x32xf32>
    %67 = arith.mulf %51, %59 : vector<2x32xf32>
    %68 = arith.addf %66, %67 : vector<2x32xf32>
    %69 = math.tanh %68 : vector<2x32xf32>
    %70 = arith.mulf %65, %69 : vector<2x32xf32>
    %71 = vector.extract_strided_slice %6 {offsets = [2, 0], sizes = [2, 128], strides = [1, 1]} : vector<16x256xf32> to vector<2x128xf32>
    %72 = arith.truncf %45 : vector<2x32xf32> to vector<2x32xbf16>
    %cst_21 = arith.constant dense<0.000000e+00> : vector<2x128xf32>
    %73 = tpu.matmul %72, %7, %cst_21 {dimension_numbers = #tpu.dot_dimension_numbers<[1], [0], [0], [1], [0, 0, 1, 1], [], []>} : vector<2x32xbf16>, vector<32x128xbf16>, vector<2x128xf32> -> vector<2x128xf32>
    %74 = arith.addf %71, %73 : vector<2x128xf32>
    %75 = vector.extract_strided_slice %6 {offsets = [12, 128], sizes = [2, 128], strides = [1, 1]} : vector<16x256xf32> to vector<2x128xf32>
    %76 = arith.truncf %70 : vector<2x32xf32> to vector<2x32xbf16>
    %cst_22 = arith.constant dense<0.000000e+00> : vector<2x128xf32>
    %77 = tpu.matmul %76, %8, %cst_22 {dimension_numbers = #tpu.dot_dimension_numbers<[1], [0], [0], [1], [0, 0, 1, 1], [], []>} : vector<2x32xbf16>, vector<32x128xbf16>, vector<2x128xf32> -> vector<2x128xf32>
    %78 = arith.addf %75, %77 : vector<2x128xf32>
    %79 = vector.extract_strided_slice %74 {offsets = [0, 0], sizes = [2, 32], strides = [1, 1]} : vector<2x128xf32> to vector<2x32xf32>
    %80 = arith.negf %79 : vector<2x32xf32>
    %81 = math.exp %80 : vector<2x32xf32>
    %cst_23 = arith.constant 1.000000e+00 : f32
    %82 = vector.broadcast %cst_23 : f32 to vector<2x32xf32>
    %83 = arith.addf %82, %81 : vector<2x32xf32>
    %84 = arith.divf %82, %83 : vector<2x32xf32>
    %85 = vector.extract_strided_slice %74 {offsets = [0, 32], sizes = [2, 32], strides = [1, 1]} : vector<2x128xf32> to vector<2x32xf32>
    %86 = arith.negf %85 : vector<2x32xf32>
    %87 = math.exp %86 : vector<2x32xf32>
    %cst_24 = arith.constant 1.000000e+00 : f32
    %88 = vector.broadcast %cst_24 : f32 to vector<2x32xf32>
    %89 = arith.addf %88, %87 : vector<2x32xf32>
    %90 = arith.divf %88, %89 : vector<2x32xf32>
    %91 = vector.extract_strided_slice %74 {offsets = [0, 64], sizes = [2, 32], strides = [1, 1]} : vector<2x128xf32> to vector<2x32xf32>
    %92 = math.tanh %91 : vector<2x32xf32>
    %93 = vector.extract_strided_slice %74 {offsets = [0, 96], sizes = [2, 32], strides = [1, 1]} : vector<2x128xf32> to vector<2x32xf32>
    %94 = arith.negf %93 : vector<2x32xf32>
    %95 = math.exp %94 : vector<2x32xf32>
    %cst_25 = arith.constant 1.000000e+00 : f32
    %96 = vector.broadcast %cst_25 : f32 to vector<2x32xf32>
    %97 = arith.addf %96, %95 : vector<2x32xf32>
    %98 = arith.divf %96, %97 : vector<2x32xf32>
    %99 = arith.mulf %90, %43 : vector<2x32xf32>
    %100 = arith.mulf %84, %92 : vector<2x32xf32>
    %101 = arith.addf %99, %100 : vector<2x32xf32>
    %102 = math.tanh %101 : vector<2x32xf32>
    %103 = arith.mulf %98, %102 : vector<2x32xf32>
    %104 = vector.extract_strided_slice %78 {offsets = [0, 0], sizes = [2, 32], strides = [1, 1]} : vector<2x128xf32> to vector<2x32xf32>
    %105 = arith.negf %104 : vector<2x32xf32>
    %106 = math.exp %105 : vector<2x32xf32>
    %cst_26 = arith.constant 1.000000e+00 : f32
    %107 = vector.broadcast %cst_26 : f32 to vector<2x32xf32>
    %108 = arith.addf %107, %106 : vector<2x32xf32>
    %109 = arith.divf %107, %108 : vector<2x32xf32>
    %110 = vector.extract_strided_slice %78 {offsets = [0, 32], sizes = [2, 32], strides = [1, 1]} : vector<2x128xf32> to vector<2x32xf32>
    %111 = arith.negf %110 : vector<2x32xf32>
    %112 = math.exp %111 : vector<2x32xf32>
    %cst_27 = arith.constant 1.000000e+00 : f32
    %113 = vector.broadcast %cst_27 : f32 to vector<2x32xf32>
    %114 = arith.addf %113, %112 : vector<2x32xf32>
    %115 = arith.divf %113, %114 : vector<2x32xf32>
    %116 = vector.extract_strided_slice %78 {offsets = [0, 64], sizes = [2, 32], strides = [1, 1]} : vector<2x128xf32> to vector<2x32xf32>
    %117 = math.tanh %116 : vector<2x32xf32>
    %118 = vector.extract_strided_slice %78 {offsets = [0, 96], sizes = [2, 32], strides = [1, 1]} : vector<2x128xf32> to vector<2x32xf32>
    %119 = arith.negf %118 : vector<2x32xf32>
    %120 = math.exp %119 : vector<2x32xf32>
    %cst_28 = arith.constant 1.000000e+00 : f32
    %121 = vector.broadcast %cst_28 : f32 to vector<2x32xf32>
    %122 = arith.addf %121, %120 : vector<2x32xf32>
    %123 = arith.divf %121, %122 : vector<2x32xf32>
    %124 = arith.mulf %115, %68 : vector<2x32xf32>
    %125 = arith.mulf %109, %117 : vector<2x32xf32>
    %126 = arith.addf %124, %125 : vector<2x32xf32>
    %127 = math.tanh %126 : vector<2x32xf32>
    %128 = arith.mulf %123, %127 : vector<2x32xf32>
    %129 = vector.extract_strided_slice %6 {offsets = [4, 0], sizes = [2, 128], strides = [1, 1]} : vector<16x256xf32> to vector<2x128xf32>
    %130 = arith.truncf %103 : vector<2x32xf32> to vector<2x32xbf16>
    %cst_29 = arith.constant dense<0.000000e+00> : vector<2x128xf32>
    %131 = tpu.matmul %130, %7, %cst_29 {dimension_numbers = #tpu.dot_dimension_numbers<[1], [0], [0], [1], [0, 0, 1, 1], [], []>} : vector<2x32xbf16>, vector<32x128xbf16>, vector<2x128xf32> -> vector<2x128xf32>
    %132 = arith.addf %129, %131 : vector<2x128xf32>
    %133 = vector.extract_strided_slice %6 {offsets = [10, 128], sizes = [2, 128], strides = [1, 1]} : vector<16x256xf32> to vector<2x128xf32>
    %134 = arith.truncf %128 : vector<2x32xf32> to vector<2x32xbf16>
    %cst_30 = arith.constant dense<0.000000e+00> : vector<2x128xf32>
    %135 = tpu.matmul %134, %8, %cst_30 {dimension_numbers = #tpu.dot_dimension_numbers<[1], [0], [0], [1], [0, 0, 1, 1], [], []>} : vector<2x32xbf16>, vector<32x128xbf16>, vector<2x128xf32> -> vector<2x128xf32>
    %136 = arith.addf %133, %135 : vector<2x128xf32>
    %137 = vector.extract_strided_slice %132 {offsets = [0, 0], sizes = [2, 32], strides = [1, 1]} : vector<2x128xf32> to vector<2x32xf32>
    %138 = arith.negf %137 : vector<2x32xf32>
    %139 = math.exp %138 : vector<2x32xf32>
    %cst_31 = arith.constant 1.000000e+00 : f32
    %140 = vector.broadcast %cst_31 : f32 to vector<2x32xf32>
    %141 = arith.addf %140, %139 : vector<2x32xf32>
    %142 = arith.divf %140, %141 : vector<2x32xf32>
    %143 = vector.extract_strided_slice %132 {offsets = [0, 32], sizes = [2, 32], strides = [1, 1]} : vector<2x128xf32> to vector<2x32xf32>
    %144 = arith.negf %143 : vector<2x32xf32>
    %145 = math.exp %144 : vector<2x32xf32>
    %cst_32 = arith.constant 1.000000e+00 : f32
    %146 = vector.broadcast %cst_32 : f32 to vector<2x32xf32>
    %147 = arith.addf %146, %145 : vector<2x32xf32>
    %148 = arith.divf %146, %147 : vector<2x32xf32>
    %149 = vector.extract_strided_slice %132 {offsets = [0, 64], sizes = [2, 32], strides = [1, 1]} : vector<2x128xf32> to vector<2x32xf32>
    %150 = math.tanh %149 : vector<2x32xf32>
    %151 = vector.extract_strided_slice %132 {offsets = [0, 96], sizes = [2, 32], strides = [1, 1]} : vector<2x128xf32> to vector<2x32xf32>
    %152 = arith.negf %151 : vector<2x32xf32>
    %153 = math.exp %152 : vector<2x32xf32>
    %cst_33 = arith.constant 1.000000e+00 : f32
    %154 = vector.broadcast %cst_33 : f32 to vector<2x32xf32>
    %155 = arith.addf %154, %153 : vector<2x32xf32>
    %156 = arith.divf %154, %155 : vector<2x32xf32>
    %157 = arith.mulf %148, %101 : vector<2x32xf32>
    %158 = arith.mulf %142, %150 : vector<2x32xf32>
    %159 = arith.addf %157, %158 : vector<2x32xf32>
    %160 = math.tanh %159 : vector<2x32xf32>
    %161 = arith.mulf %156, %160 : vector<2x32xf32>
    %162 = vector.extract_strided_slice %136 {offsets = [0, 0], sizes = [2, 32], strides = [1, 1]} : vector<2x128xf32> to vector<2x32xf32>
    %163 = arith.negf %162 : vector<2x32xf32>
    %164 = math.exp %163 : vector<2x32xf32>
    %cst_34 = arith.constant 1.000000e+00 : f32
    %165 = vector.broadcast %cst_34 : f32 to vector<2x32xf32>
    %166 = arith.addf %165, %164 : vector<2x32xf32>
    %167 = arith.divf %165, %166 : vector<2x32xf32>
    %168 = vector.extract_strided_slice %136 {offsets = [0, 32], sizes = [2, 32], strides = [1, 1]} : vector<2x128xf32> to vector<2x32xf32>
    %169 = arith.negf %168 : vector<2x32xf32>
    %170 = math.exp %169 : vector<2x32xf32>
    %cst_35 = arith.constant 1.000000e+00 : f32
    %171 = vector.broadcast %cst_35 : f32 to vector<2x32xf32>
    %172 = arith.addf %171, %170 : vector<2x32xf32>
    %173 = arith.divf %171, %172 : vector<2x32xf32>
    %174 = vector.extract_strided_slice %136 {offsets = [0, 64], sizes = [2, 32], strides = [1, 1]} : vector<2x128xf32> to vector<2x32xf32>
    %175 = math.tanh %174 : vector<2x32xf32>
    %176 = vector.extract_strided_slice %136 {offsets = [0, 96], sizes = [2, 32], strides = [1, 1]} : vector<2x128xf32> to vector<2x32xf32>
    %177 = arith.negf %176 : vector<2x32xf32>
    %178 = math.exp %177 : vector<2x32xf32>
    %cst_36 = arith.constant 1.000000e+00 : f32
    %179 = vector.broadcast %cst_36 : f32 to vector<2x32xf32>
    %180 = arith.addf %179, %178 : vector<2x32xf32>
    %181 = arith.divf %179, %180 : vector<2x32xf32>
    %182 = arith.mulf %173, %126 : vector<2x32xf32>
    %183 = arith.mulf %167, %175 : vector<2x32xf32>
    %184 = arith.addf %182, %183 : vector<2x32xf32>
    %185 = math.tanh %184 : vector<2x32xf32>
    %186 = arith.mulf %181, %185 : vector<2x32xf32>
    %187 = vector.extract_strided_slice %6 {offsets = [6, 0], sizes = [2, 128], strides = [1, 1]} : vector<16x256xf32> to vector<2x128xf32>
    %188 = arith.truncf %161 : vector<2x32xf32> to vector<2x32xbf16>
    %cst_37 = arith.constant dense<0.000000e+00> : vector<2x128xf32>
    %189 = tpu.matmul %188, %7, %cst_37 {dimension_numbers = #tpu.dot_dimension_numbers<[1], [0], [0], [1], [0, 0, 1, 1], [], []>} : vector<2x32xbf16>, vector<32x128xbf16>, vector<2x128xf32> -> vector<2x128xf32>
    %190 = arith.addf %187, %189 : vector<2x128xf32>
    %191 = vector.extract_strided_slice %6 {offsets = [8, 128], sizes = [2, 128], strides = [1, 1]} : vector<16x256xf32> to vector<2x128xf32>
    %192 = arith.truncf %186 : vector<2x32xf32> to vector<2x32xbf16>
    %cst_38 = arith.constant dense<0.000000e+00> : vector<2x128xf32>
    %193 = tpu.matmul %192, %8, %cst_38 {dimension_numbers = #tpu.dot_dimension_numbers<[1], [0], [0], [1], [0, 0, 1, 1], [], []>} : vector<2x32xbf16>, vector<32x128xbf16>, vector<2x128xf32> -> vector<2x128xf32>
    %194 = arith.addf %191, %193 : vector<2x128xf32>
    %195 = vector.extract_strided_slice %190 {offsets = [0, 0], sizes = [2, 32], strides = [1, 1]} : vector<2x128xf32> to vector<2x32xf32>
    %196 = arith.negf %195 : vector<2x32xf32>
    %197 = math.exp %196 : vector<2x32xf32>
    %cst_39 = arith.constant 1.000000e+00 : f32
    %198 = vector.broadcast %cst_39 : f32 to vector<2x32xf32>
    %199 = arith.addf %198, %197 : vector<2x32xf32>
    %200 = arith.divf %198, %199 : vector<2x32xf32>
    %201 = vector.extract_strided_slice %190 {offsets = [0, 32], sizes = [2, 32], strides = [1, 1]} : vector<2x128xf32> to vector<2x32xf32>
    %202 = arith.negf %201 : vector<2x32xf32>
    %203 = math.exp %202 : vector<2x32xf32>
    %cst_40 = arith.constant 1.000000e+00 : f32
    %204 = vector.broadcast %cst_40 : f32 to vector<2x32xf32>
    %205 = arith.addf %204, %203 : vector<2x32xf32>
    %206 = arith.divf %204, %205 : vector<2x32xf32>
    %207 = vector.extract_strided_slice %190 {offsets = [0, 64], sizes = [2, 32], strides = [1, 1]} : vector<2x128xf32> to vector<2x32xf32>
    %208 = math.tanh %207 : vector<2x32xf32>
    %209 = vector.extract_strided_slice %190 {offsets = [0, 96], sizes = [2, 32], strides = [1, 1]} : vector<2x128xf32> to vector<2x32xf32>
    %210 = arith.negf %209 : vector<2x32xf32>
    %211 = math.exp %210 : vector<2x32xf32>
    %cst_41 = arith.constant 1.000000e+00 : f32
    %212 = vector.broadcast %cst_41 : f32 to vector<2x32xf32>
    %213 = arith.addf %212, %211 : vector<2x32xf32>
    %214 = arith.divf %212, %213 : vector<2x32xf32>
    %215 = arith.mulf %206, %159 : vector<2x32xf32>
    %216 = arith.mulf %200, %208 : vector<2x32xf32>
    %217 = arith.addf %215, %216 : vector<2x32xf32>
    %218 = math.tanh %217 : vector<2x32xf32>
    %219 = arith.mulf %214, %218 : vector<2x32xf32>
    %220 = vector.extract_strided_slice %194 {offsets = [0, 0], sizes = [2, 32], strides = [1, 1]} : vector<2x128xf32> to vector<2x32xf32>
    %221 = arith.negf %220 : vector<2x32xf32>
    %222 = math.exp %221 : vector<2x32xf32>
    %cst_42 = arith.constant 1.000000e+00 : f32
    %223 = vector.broadcast %cst_42 : f32 to vector<2x32xf32>
    %224 = arith.addf %223, %222 : vector<2x32xf32>
    %225 = arith.divf %223, %224 : vector<2x32xf32>
    %226 = vector.extract_strided_slice %194 {offsets = [0, 32], sizes = [2, 32], strides = [1, 1]} : vector<2x128xf32> to vector<2x32xf32>
    %227 = arith.negf %226 : vector<2x32xf32>
    %228 = math.exp %227 : vector<2x32xf32>
    %cst_43 = arith.constant 1.000000e+00 : f32
    %229 = vector.broadcast %cst_43 : f32 to vector<2x32xf32>
    %230 = arith.addf %229, %228 : vector<2x32xf32>
    %231 = arith.divf %229, %230 : vector<2x32xf32>
    %232 = vector.extract_strided_slice %194 {offsets = [0, 64], sizes = [2, 32], strides = [1, 1]} : vector<2x128xf32> to vector<2x32xf32>
    %233 = math.tanh %232 : vector<2x32xf32>
    %234 = vector.extract_strided_slice %194 {offsets = [0, 96], sizes = [2, 32], strides = [1, 1]} : vector<2x128xf32> to vector<2x32xf32>
    %235 = arith.negf %234 : vector<2x32xf32>
    %236 = math.exp %235 : vector<2x32xf32>
    %cst_44 = arith.constant 1.000000e+00 : f32
    %237 = vector.broadcast %cst_44 : f32 to vector<2x32xf32>
    %238 = arith.addf %237, %236 : vector<2x32xf32>
    %239 = arith.divf %237, %238 : vector<2x32xf32>
    %240 = arith.mulf %231, %184 : vector<2x32xf32>
    %241 = arith.mulf %225, %233 : vector<2x32xf32>
    %242 = arith.addf %240, %241 : vector<2x32xf32>
    %243 = math.tanh %242 : vector<2x32xf32>
    %244 = arith.mulf %239, %243 : vector<2x32xf32>
    %245 = vector.extract_strided_slice %6 {offsets = [8, 0], sizes = [2, 128], strides = [1, 1]} : vector<16x256xf32> to vector<2x128xf32>
    %246 = arith.truncf %219 : vector<2x32xf32> to vector<2x32xbf16>
    %cst_45 = arith.constant dense<0.000000e+00> : vector<2x128xf32>
    %247 = tpu.matmul %246, %7, %cst_45 {dimension_numbers = #tpu.dot_dimension_numbers<[1], [0], [0], [1], [0, 0, 1, 1], [], []>} : vector<2x32xbf16>, vector<32x128xbf16>, vector<2x128xf32> -> vector<2x128xf32>
    %248 = arith.addf %245, %247 : vector<2x128xf32>
    %249 = vector.extract_strided_slice %6 {offsets = [6, 128], sizes = [2, 128], strides = [1, 1]} : vector<16x256xf32> to vector<2x128xf32>
    %250 = arith.truncf %244 : vector<2x32xf32> to vector<2x32xbf16>
    %cst_46 = arith.constant dense<0.000000e+00> : vector<2x128xf32>
    %251 = tpu.matmul %250, %8, %cst_46 {dimension_numbers = #tpu.dot_dimension_numbers<[1], [0], [0], [1], [0, 0, 1, 1], [], []>} : vector<2x32xbf16>, vector<32x128xbf16>, vector<2x128xf32> -> vector<2x128xf32>
    %252 = arith.addf %249, %251 : vector<2x128xf32>
    %253 = vector.extract_strided_slice %248 {offsets = [0, 0], sizes = [2, 32], strides = [1, 1]} : vector<2x128xf32> to vector<2x32xf32>
    %254 = arith.negf %253 : vector<2x32xf32>
    %255 = math.exp %254 : vector<2x32xf32>
    %cst_47 = arith.constant 1.000000e+00 : f32
    %256 = vector.broadcast %cst_47 : f32 to vector<2x32xf32>
    %257 = arith.addf %256, %255 : vector<2x32xf32>
    %258 = arith.divf %256, %257 : vector<2x32xf32>
    %259 = vector.extract_strided_slice %248 {offsets = [0, 32], sizes = [2, 32], strides = [1, 1]} : vector<2x128xf32> to vector<2x32xf32>
    %260 = arith.negf %259 : vector<2x32xf32>
    %261 = math.exp %260 : vector<2x32xf32>
    %cst_48 = arith.constant 1.000000e+00 : f32
    %262 = vector.broadcast %cst_48 : f32 to vector<2x32xf32>
    %263 = arith.addf %262, %261 : vector<2x32xf32>
    %264 = arith.divf %262, %263 : vector<2x32xf32>
    %265 = vector.extract_strided_slice %248 {offsets = [0, 64], sizes = [2, 32], strides = [1, 1]} : vector<2x128xf32> to vector<2x32xf32>
    %266 = math.tanh %265 : vector<2x32xf32>
    %267 = vector.extract_strided_slice %248 {offsets = [0, 96], sizes = [2, 32], strides = [1, 1]} : vector<2x128xf32> to vector<2x32xf32>
    %268 = arith.negf %267 : vector<2x32xf32>
    %269 = math.exp %268 : vector<2x32xf32>
    %cst_49 = arith.constant 1.000000e+00 : f32
    %270 = vector.broadcast %cst_49 : f32 to vector<2x32xf32>
    %271 = arith.addf %270, %269 : vector<2x32xf32>
    %272 = arith.divf %270, %271 : vector<2x32xf32>
    %273 = arith.mulf %264, %217 : vector<2x32xf32>
    %274 = arith.mulf %258, %266 : vector<2x32xf32>
    %275 = arith.addf %273, %274 : vector<2x32xf32>
    %276 = math.tanh %275 : vector<2x32xf32>
    %277 = arith.mulf %272, %276 : vector<2x32xf32>
    %278 = vector.extract_strided_slice %252 {offsets = [0, 0], sizes = [2, 32], strides = [1, 1]} : vector<2x128xf32> to vector<2x32xf32>
    %279 = arith.negf %278 : vector<2x32xf32>
    %280 = math.exp %279 : vector<2x32xf32>
    %cst_50 = arith.constant 1.000000e+00 : f32
    %281 = vector.broadcast %cst_50 : f32 to vector<2x32xf32>
    %282 = arith.addf %281, %280 : vector<2x32xf32>
    %283 = arith.divf %281, %282 : vector<2x32xf32>
    %284 = vector.extract_strided_slice %252 {offsets = [0, 32], sizes = [2, 32], strides = [1, 1]} : vector<2x128xf32> to vector<2x32xf32>
    %285 = arith.negf %284 : vector<2x32xf32>
    %286 = math.exp %285 : vector<2x32xf32>
    %cst_51 = arith.constant 1.000000e+00 : f32
    %287 = vector.broadcast %cst_51 : f32 to vector<2x32xf32>
    %288 = arith.addf %287, %286 : vector<2x32xf32>
    %289 = arith.divf %287, %288 : vector<2x32xf32>
    %290 = vector.extract_strided_slice %252 {offsets = [0, 64], sizes = [2, 32], strides = [1, 1]} : vector<2x128xf32> to vector<2x32xf32>
    %291 = math.tanh %290 : vector<2x32xf32>
    %292 = vector.extract_strided_slice %252 {offsets = [0, 96], sizes = [2, 32], strides = [1, 1]} : vector<2x128xf32> to vector<2x32xf32>
    %293 = arith.negf %292 : vector<2x32xf32>
    %294 = math.exp %293 : vector<2x32xf32>
    %cst_52 = arith.constant 1.000000e+00 : f32
    %295 = vector.broadcast %cst_52 : f32 to vector<2x32xf32>
    %296 = arith.addf %295, %294 : vector<2x32xf32>
    %297 = arith.divf %295, %296 : vector<2x32xf32>
    %298 = arith.mulf %289, %242 : vector<2x32xf32>
    %299 = arith.mulf %283, %291 : vector<2x32xf32>
    %300 = arith.addf %298, %299 : vector<2x32xf32>
    %301 = math.tanh %300 : vector<2x32xf32>
    %302 = arith.mulf %297, %301 : vector<2x32xf32>
    %303 = vector.extract_strided_slice %6 {offsets = [10, 0], sizes = [2, 128], strides = [1, 1]} : vector<16x256xf32> to vector<2x128xf32>
    %304 = arith.truncf %277 : vector<2x32xf32> to vector<2x32xbf16>
    %cst_53 = arith.constant dense<0.000000e+00> : vector<2x128xf32>
    %305 = tpu.matmul %304, %7, %cst_53 {dimension_numbers = #tpu.dot_dimension_numbers<[1], [0], [0], [1], [0, 0, 1, 1], [], []>} : vector<2x32xbf16>, vector<32x128xbf16>, vector<2x128xf32> -> vector<2x128xf32>
    %306 = arith.addf %303, %305 : vector<2x128xf32>
    %307 = vector.extract_strided_slice %6 {offsets = [4, 128], sizes = [2, 128], strides = [1, 1]} : vector<16x256xf32> to vector<2x128xf32>
    %308 = arith.truncf %302 : vector<2x32xf32> to vector<2x32xbf16>
    %cst_54 = arith.constant dense<0.000000e+00> : vector<2x128xf32>
    %309 = tpu.matmul %308, %8, %cst_54 {dimension_numbers = #tpu.dot_dimension_numbers<[1], [0], [0], [1], [0, 0, 1, 1], [], []>} : vector<2x32xbf16>, vector<32x128xbf16>, vector<2x128xf32> -> vector<2x128xf32>
    %310 = arith.addf %307, %309 : vector<2x128xf32>
    %311 = vector.extract_strided_slice %306 {offsets = [0, 0], sizes = [2, 32], strides = [1, 1]} : vector<2x128xf32> to vector<2x32xf32>
    %312 = arith.negf %311 : vector<2x32xf32>
    %313 = math.exp %312 : vector<2x32xf32>
    %cst_55 = arith.constant 1.000000e+00 : f32
    %314 = vector.broadcast %cst_55 : f32 to vector<2x32xf32>
    %315 = arith.addf %314, %313 : vector<2x32xf32>
    %316 = arith.divf %314, %315 : vector<2x32xf32>
    %317 = vector.extract_strided_slice %306 {offsets = [0, 32], sizes = [2, 32], strides = [1, 1]} : vector<2x128xf32> to vector<2x32xf32>
    %318 = arith.negf %317 : vector<2x32xf32>
    %319 = math.exp %318 : vector<2x32xf32>
    %cst_56 = arith.constant 1.000000e+00 : f32
    %320 = vector.broadcast %cst_56 : f32 to vector<2x32xf32>
    %321 = arith.addf %320, %319 : vector<2x32xf32>
    %322 = arith.divf %320, %321 : vector<2x32xf32>
    %323 = vector.extract_strided_slice %306 {offsets = [0, 64], sizes = [2, 32], strides = [1, 1]} : vector<2x128xf32> to vector<2x32xf32>
    %324 = math.tanh %323 : vector<2x32xf32>
    %325 = vector.extract_strided_slice %306 {offsets = [0, 96], sizes = [2, 32], strides = [1, 1]} : vector<2x128xf32> to vector<2x32xf32>
    %326 = arith.negf %325 : vector<2x32xf32>
    %327 = math.exp %326 : vector<2x32xf32>
    %cst_57 = arith.constant 1.000000e+00 : f32
    %328 = vector.broadcast %cst_57 : f32 to vector<2x32xf32>
    %329 = arith.addf %328, %327 : vector<2x32xf32>
    %330 = arith.divf %328, %329 : vector<2x32xf32>
    %331 = arith.mulf %322, %275 : vector<2x32xf32>
    %332 = arith.mulf %316, %324 : vector<2x32xf32>
    %333 = arith.addf %331, %332 : vector<2x32xf32>
    %334 = math.tanh %333 : vector<2x32xf32>
    %335 = arith.mulf %330, %334 : vector<2x32xf32>
    %336 = vector.extract_strided_slice %310 {offsets = [0, 0], sizes = [2, 32], strides = [1, 1]} : vector<2x128xf32> to vector<2x32xf32>
    %337 = arith.negf %336 : vector<2x32xf32>
    %338 = math.exp %337 : vector<2x32xf32>
    %cst_58 = arith.constant 1.000000e+00 : f32
    %339 = vector.broadcast %cst_58 : f32 to vector<2x32xf32>
    %340 = arith.addf %339, %338 : vector<2x32xf32>
    %341 = arith.divf %339, %340 : vector<2x32xf32>
    %342 = vector.extract_strided_slice %310 {offsets = [0, 32], sizes = [2, 32], strides = [1, 1]} : vector<2x128xf32> to vector<2x32xf32>
    %343 = arith.negf %342 : vector<2x32xf32>
    %344 = math.exp %343 : vector<2x32xf32>
    %cst_59 = arith.constant 1.000000e+00 : f32
    %345 = vector.broadcast %cst_59 : f32 to vector<2x32xf32>
    %346 = arith.addf %345, %344 : vector<2x32xf32>
    %347 = arith.divf %345, %346 : vector<2x32xf32>
    %348 = vector.extract_strided_slice %310 {offsets = [0, 64], sizes = [2, 32], strides = [1, 1]} : vector<2x128xf32> to vector<2x32xf32>
    %349 = math.tanh %348 : vector<2x32xf32>
    %350 = vector.extract_strided_slice %310 {offsets = [0, 96], sizes = [2, 32], strides = [1, 1]} : vector<2x128xf32> to vector<2x32xf32>
    %351 = arith.negf %350 : vector<2x32xf32>
    %352 = math.exp %351 : vector<2x32xf32>
    %cst_60 = arith.constant 1.000000e+00 : f32
    %353 = vector.broadcast %cst_60 : f32 to vector<2x32xf32>
    %354 = arith.addf %353, %352 : vector<2x32xf32>
    %355 = arith.divf %353, %354 : vector<2x32xf32>
    %356 = arith.mulf %347, %300 : vector<2x32xf32>
    %357 = arith.mulf %341, %349 : vector<2x32xf32>
    %358 = arith.addf %356, %357 : vector<2x32xf32>
    %359 = math.tanh %358 : vector<2x32xf32>
    %360 = arith.mulf %355, %359 : vector<2x32xf32>
    %361 = vector.extract_strided_slice %6 {offsets = [12, 0], sizes = [2, 128], strides = [1, 1]} : vector<16x256xf32> to vector<2x128xf32>
    %362 = arith.truncf %335 : vector<2x32xf32> to vector<2x32xbf16>
    %cst_61 = arith.constant dense<0.000000e+00> : vector<2x128xf32>
    %363 = tpu.matmul %362, %7, %cst_61 {dimension_numbers = #tpu.dot_dimension_numbers<[1], [0], [0], [1], [0, 0, 1, 1], [], []>} : vector<2x32xbf16>, vector<32x128xbf16>, vector<2x128xf32> -> vector<2x128xf32>
    %364 = arith.addf %361, %363 : vector<2x128xf32>
    %365 = vector.extract_strided_slice %6 {offsets = [2, 128], sizes = [2, 128], strides = [1, 1]} : vector<16x256xf32> to vector<2x128xf32>
    %366 = arith.truncf %360 : vector<2x32xf32> to vector<2x32xbf16>
    %cst_62 = arith.constant dense<0.000000e+00> : vector<2x128xf32>
    %367 = tpu.matmul %366, %8, %cst_62 {dimension_numbers = #tpu.dot_dimension_numbers<[1], [0], [0], [1], [0, 0, 1, 1], [], []>} : vector<2x32xbf16>, vector<32x128xbf16>, vector<2x128xf32> -> vector<2x128xf32>
    %368 = arith.addf %365, %367 : vector<2x128xf32>
    %369 = vector.extract_strided_slice %364 {offsets = [0, 0], sizes = [2, 32], strides = [1, 1]} : vector<2x128xf32> to vector<2x32xf32>
    %370 = arith.negf %369 : vector<2x32xf32>
    %371 = math.exp %370 : vector<2x32xf32>
    %cst_63 = arith.constant 1.000000e+00 : f32
    %372 = vector.broadcast %cst_63 : f32 to vector<2x32xf32>
    %373 = arith.addf %372, %371 : vector<2x32xf32>
    %374 = arith.divf %372, %373 : vector<2x32xf32>
    %375 = vector.extract_strided_slice %364 {offsets = [0, 32], sizes = [2, 32], strides = [1, 1]} : vector<2x128xf32> to vector<2x32xf32>
    %376 = arith.negf %375 : vector<2x32xf32>
    %377 = math.exp %376 : vector<2x32xf32>
    %cst_64 = arith.constant 1.000000e+00 : f32
    %378 = vector.broadcast %cst_64 : f32 to vector<2x32xf32>
    %379 = arith.addf %378, %377 : vector<2x32xf32>
    %380 = arith.divf %378, %379 : vector<2x32xf32>
    %381 = vector.extract_strided_slice %364 {offsets = [0, 64], sizes = [2, 32], strides = [1, 1]} : vector<2x128xf32> to vector<2x32xf32>
    %382 = math.tanh %381 : vector<2x32xf32>
    %383 = vector.extract_strided_slice %364 {offsets = [0, 96], sizes = [2, 32], strides = [1, 1]} : vector<2x128xf32> to vector<2x32xf32>
    %384 = arith.negf %383 : vector<2x32xf32>
    %385 = math.exp %384 : vector<2x32xf32>
    %cst_65 = arith.constant 1.000000e+00 : f32
    %386 = vector.broadcast %cst_65 : f32 to vector<2x32xf32>
    %387 = arith.addf %386, %385 : vector<2x32xf32>
    %388 = arith.divf %386, %387 : vector<2x32xf32>
    %389 = arith.mulf %380, %333 : vector<2x32xf32>
    %390 = arith.mulf %374, %382 : vector<2x32xf32>
    %391 = arith.addf %389, %390 : vector<2x32xf32>
    %392 = math.tanh %391 : vector<2x32xf32>
    %393 = arith.mulf %388, %392 : vector<2x32xf32>
    %394 = vector.extract_strided_slice %368 {offsets = [0, 0], sizes = [2, 32], strides = [1, 1]} : vector<2x128xf32> to vector<2x32xf32>
    %395 = arith.negf %394 : vector<2x32xf32>
    %396 = math.exp %395 : vector<2x32xf32>
    %cst_66 = arith.constant 1.000000e+00 : f32
    %397 = vector.broadcast %cst_66 : f32 to vector<2x32xf32>
    %398 = arith.addf %397, %396 : vector<2x32xf32>
    %399 = arith.divf %397, %398 : vector<2x32xf32>
    %400 = vector.extract_strided_slice %368 {offsets = [0, 32], sizes = [2, 32], strides = [1, 1]} : vector<2x128xf32> to vector<2x32xf32>
    %401 = arith.negf %400 : vector<2x32xf32>
    %402 = math.exp %401 : vector<2x32xf32>
    %cst_67 = arith.constant 1.000000e+00 : f32
    %403 = vector.broadcast %cst_67 : f32 to vector<2x32xf32>
    %404 = arith.addf %403, %402 : vector<2x32xf32>
    %405 = arith.divf %403, %404 : vector<2x32xf32>
    %406 = vector.extract_strided_slice %368 {offsets = [0, 64], sizes = [2, 32], strides = [1, 1]} : vector<2x128xf32> to vector<2x32xf32>
    %407 = math.tanh %406 : vector<2x32xf32>
    %408 = vector.extract_strided_slice %368 {offsets = [0, 96], sizes = [2, 32], strides = [1, 1]} : vector<2x128xf32> to vector<2x32xf32>
    %409 = arith.negf %408 : vector<2x32xf32>
    %410 = math.exp %409 : vector<2x32xf32>
    %cst_68 = arith.constant 1.000000e+00 : f32
    %411 = vector.broadcast %cst_68 : f32 to vector<2x32xf32>
    %412 = arith.addf %411, %410 : vector<2x32xf32>
    %413 = arith.divf %411, %412 : vector<2x32xf32>
    %414 = arith.mulf %405, %358 : vector<2x32xf32>
    %415 = arith.mulf %399, %407 : vector<2x32xf32>
    %416 = arith.addf %414, %415 : vector<2x32xf32>
    %417 = math.tanh %416 : vector<2x32xf32>
    %418 = arith.mulf %413, %417 : vector<2x32xf32>
    %419 = vector.extract_strided_slice %6 {offsets = [14, 0], sizes = [2, 128], strides = [1, 1]} : vector<16x256xf32> to vector<2x128xf32>
    %420 = arith.truncf %393 : vector<2x32xf32> to vector<2x32xbf16>
    %cst_69 = arith.constant dense<0.000000e+00> : vector<2x128xf32>
    %421 = tpu.matmul %420, %7, %cst_69 {dimension_numbers = #tpu.dot_dimension_numbers<[1], [0], [0], [1], [0, 0, 1, 1], [], []>} : vector<2x32xbf16>, vector<32x128xbf16>, vector<2x128xf32> -> vector<2x128xf32>
    %422 = arith.addf %419, %421 : vector<2x128xf32>
    %423 = vector.extract_strided_slice %6 {offsets = [0, 128], sizes = [2, 128], strides = [1, 1]} : vector<16x256xf32> to vector<2x128xf32>
    %424 = arith.truncf %418 : vector<2x32xf32> to vector<2x32xbf16>
    %cst_70 = arith.constant dense<0.000000e+00> : vector<2x128xf32>
    %425 = tpu.matmul %424, %8, %cst_70 {dimension_numbers = #tpu.dot_dimension_numbers<[1], [0], [0], [1], [0, 0, 1, 1], [], []>} : vector<2x32xbf16>, vector<32x128xbf16>, vector<2x128xf32> -> vector<2x128xf32>
    %426 = arith.addf %423, %425 : vector<2x128xf32>
    %427 = vector.extract_strided_slice %422 {offsets = [0, 0], sizes = [2, 32], strides = [1, 1]} : vector<2x128xf32> to vector<2x32xf32>
    %428 = arith.negf %427 : vector<2x32xf32>
    %429 = math.exp %428 : vector<2x32xf32>
    %cst_71 = arith.constant 1.000000e+00 : f32
    %430 = vector.broadcast %cst_71 : f32 to vector<2x32xf32>
    %431 = arith.addf %430, %429 : vector<2x32xf32>
    %432 = arith.divf %430, %431 : vector<2x32xf32>
    %433 = vector.extract_strided_slice %422 {offsets = [0, 32], sizes = [2, 32], strides = [1, 1]} : vector<2x128xf32> to vector<2x32xf32>
    %434 = arith.negf %433 : vector<2x32xf32>
    %435 = math.exp %434 : vector<2x32xf32>
    %cst_72 = arith.constant 1.000000e+00 : f32
    %436 = vector.broadcast %cst_72 : f32 to vector<2x32xf32>
    %437 = arith.addf %436, %435 : vector<2x32xf32>
    %438 = arith.divf %436, %437 : vector<2x32xf32>
    %439 = vector.extract_strided_slice %422 {offsets = [0, 64], sizes = [2, 32], strides = [1, 1]} : vector<2x128xf32> to vector<2x32xf32>
    %440 = math.tanh %439 : vector<2x32xf32>
    %441 = vector.extract_strided_slice %422 {offsets = [0, 96], sizes = [2, 32], strides = [1, 1]} : vector<2x128xf32> to vector<2x32xf32>
    %442 = arith.negf %441 : vector<2x32xf32>
    %443 = math.exp %442 : vector<2x32xf32>
    %cst_73 = arith.constant 1.000000e+00 : f32
    %444 = vector.broadcast %cst_73 : f32 to vector<2x32xf32>
    %445 = arith.addf %444, %443 : vector<2x32xf32>
    %446 = arith.divf %444, %445 : vector<2x32xf32>
    %447 = arith.mulf %438, %391 : vector<2x32xf32>
    %448 = arith.mulf %432, %440 : vector<2x32xf32>
    %449 = arith.addf %447, %448 : vector<2x32xf32>
    %450 = math.tanh %449 : vector<2x32xf32>
    %451 = arith.mulf %446, %450 : vector<2x32xf32>
    %452 = vector.extract_strided_slice %426 {offsets = [0, 0], sizes = [2, 32], strides = [1, 1]} : vector<2x128xf32> to vector<2x32xf32>
    %453 = arith.negf %452 : vector<2x32xf32>
    %454 = math.exp %453 : vector<2x32xf32>
    %cst_74 = arith.constant 1.000000e+00 : f32
    %455 = vector.broadcast %cst_74 : f32 to vector<2x32xf32>
    %456 = arith.addf %455, %454 : vector<2x32xf32>
    %457 = arith.divf %455, %456 : vector<2x32xf32>
    %458 = vector.extract_strided_slice %426 {offsets = [0, 32], sizes = [2, 32], strides = [1, 1]} : vector<2x128xf32> to vector<2x32xf32>
    %459 = arith.negf %458 : vector<2x32xf32>
    %460 = math.exp %459 : vector<2x32xf32>
    %cst_75 = arith.constant 1.000000e+00 : f32
    %461 = vector.broadcast %cst_75 : f32 to vector<2x32xf32>
    %462 = arith.addf %461, %460 : vector<2x32xf32>
    %463 = arith.divf %461, %462 : vector<2x32xf32>
    %464 = vector.extract_strided_slice %426 {offsets = [0, 64], sizes = [2, 32], strides = [1, 1]} : vector<2x128xf32> to vector<2x32xf32>
    %465 = math.tanh %464 : vector<2x32xf32>
    %466 = vector.extract_strided_slice %426 {offsets = [0, 96], sizes = [2, 32], strides = [1, 1]} : vector<2x128xf32> to vector<2x32xf32>
    %467 = arith.negf %466 : vector<2x32xf32>
    %468 = math.exp %467 : vector<2x32xf32>
    %cst_76 = arith.constant 1.000000e+00 : f32
    %469 = vector.broadcast %cst_76 : f32 to vector<2x32xf32>
    %470 = arith.addf %469, %468 : vector<2x32xf32>
    %471 = arith.divf %469, %470 : vector<2x32xf32>
    %472 = arith.mulf %463, %416 : vector<2x32xf32>
    %473 = arith.mulf %457, %465 : vector<2x32xf32>
    %474 = arith.addf %472, %473 : vector<2x32xf32>
    %475 = math.tanh %474 : vector<2x32xf32>
    %476 = arith.mulf %471, %475 : vector<2x32xf32>
    %477 = tpu.concatenate %45, %103, %161, %219, %277, %335, %393, %451 in 0 : vector<2x32xf32>, vector<2x32xf32>, vector<2x32xf32>, vector<2x32xf32>, vector<2x32xf32>, vector<2x32xf32>, vector<2x32xf32>, vector<2x32xf32> -> vector<16x32xf32>
    %478 = tpu.concatenate %476, %418, %360, %302, %244, %186, %128, %70 in 0 : vector<2x32xf32>, vector<2x32xf32>, vector<2x32xf32>, vector<2x32xf32>, vector<2x32xf32>, vector<2x32xf32>, vector<2x32xf32>, vector<2x32xf32> -> vector<16x32xf32>
    %479 = arith.truncf %477 : vector<16x32xf32> to vector<16x32xbf16>
    %c0_77 = arith.constant 0 : index
    %c0_78 = arith.constant 0 : index
    %480 = vector.load %arg5[%c0_77, %c0_78] : memref<32x256xbf16, #tpu.memory_space<vmem>>, vector<32x256xbf16>
    %cst_79 = arith.constant dense<0.000000e+00> : vector<16x256xf32>
    %481 = tpu.matmul %479, %480, %cst_79 {dimension_numbers = #tpu.dot_dimension_numbers<[1], [0], [0], [1], [0, 0, 1, 1], [], []>} : vector<16x32xbf16>, vector<32x256xbf16>, vector<16x256xf32> -> vector<16x256xf32>
    %482 = arith.truncf %478 : vector<16x32xf32> to vector<16x32xbf16>
    %c0_80 = arith.constant 0 : index
    %c0_81 = arith.constant 0 : index
    %483 = vector.load %arg6[%c0_80, %c0_81] : memref<32x256xbf16, #tpu.memory_space<vmem>>, vector<32x256xbf16>
    %cst_82 = arith.constant dense<0.000000e+00> : vector<16x256xf32>
    %484 = tpu.matmul %482, %483, %cst_82 {dimension_numbers = #tpu.dot_dimension_numbers<[1], [0], [0], [1], [0, 0, 1, 1], [], []>} : vector<16x32xbf16>, vector<32x256xbf16>, vector<16x256xf32> -> vector<16x256xf32>
    %485 = arith.addf %481, %484 : vector<16x256xf32>
    %c0_83 = arith.constant 0 : index
    %c0_84 = arith.constant 0 : index
    %486 = vector.load %arg7[%c0_83, %c0_84] : memref<1x256xf32, #tpu.memory_space<vmem>>, vector<1x256xf32>
    %487 = vector.broadcast %486 : vector<1x256xf32> to vector<16x256xf32>
    %488 = arith.addf %485, %487 : vector<16x256xf32>
    %c0_85 = arith.constant 0 : index
    %c0_86 = arith.constant 0 : index
    %489 = vector.load %arg8[%c0_85, %c0_86] : memref<32x128xbf16, #tpu.memory_space<vmem>>, vector<32x128xbf16>
    %c0_87 = arith.constant 0 : index
    %c0_88 = arith.constant 0 : index
    %490 = vector.load %arg9[%c0_87, %c0_88] : memref<32x128xbf16, #tpu.memory_space<vmem>>, vector<32x128xbf16>
    %cst_89 = arith.constant 0.000000e+00 : f32
    %491 = vector.broadcast %cst_89 : f32 to vector<2x32xf32>
    %cst_90 = arith.constant 0.000000e+00 : f32
    %492 = vector.broadcast %cst_90 : f32 to vector<2x32xf32>
    %cst_91 = arith.constant 0.000000e+00 : f32
    %493 = vector.broadcast %cst_91 : f32 to vector<2x32xf32>
    %cst_92 = arith.constant 0.000000e+00 : f32
    %494 = vector.broadcast %cst_92 : f32 to vector<2x32xf32>
    %495 = vector.extract_strided_slice %488 {offsets = [0, 0], sizes = [2, 128], strides = [1, 1]} : vector<16x256xf32> to vector<2x128xf32>
    %496 = arith.truncf %491 : vector<2x32xf32> to vector<2x32xbf16>
    %cst_93 = arith.constant dense<0.000000e+00> : vector<2x128xf32>
    %497 = tpu.matmul %496, %489, %cst_93 {dimension_numbers = #tpu.dot_dimension_numbers<[1], [0], [0], [1], [0, 0, 1, 1], [], []>} : vector<2x32xbf16>, vector<32x128xbf16>, vector<2x128xf32> -> vector<2x128xf32>
    %498 = arith.addf %495, %497 : vector<2x128xf32>
    %499 = vector.extract_strided_slice %488 {offsets = [14, 128], sizes = [2, 128], strides = [1, 1]} : vector<16x256xf32> to vector<2x128xf32>
    %500 = arith.truncf %493 : vector<2x32xf32> to vector<2x32xbf16>
    %cst_94 = arith.constant dense<0.000000e+00> : vector<2x128xf32>
    %501 = tpu.matmul %500, %490, %cst_94 {dimension_numbers = #tpu.dot_dimension_numbers<[1], [0], [0], [1], [0, 0, 1, 1], [], []>} : vector<2x32xbf16>, vector<32x128xbf16>, vector<2x128xf32> -> vector<2x128xf32>
    %502 = arith.addf %499, %501 : vector<2x128xf32>
    %503 = vector.extract_strided_slice %498 {offsets = [0, 0], sizes = [2, 32], strides = [1, 1]} : vector<2x128xf32> to vector<2x32xf32>
    %504 = arith.negf %503 : vector<2x32xf32>
    %505 = math.exp %504 : vector<2x32xf32>
    %cst_95 = arith.constant 1.000000e+00 : f32
    %506 = vector.broadcast %cst_95 : f32 to vector<2x32xf32>
    %507 = arith.addf %506, %505 : vector<2x32xf32>
    %508 = arith.divf %506, %507 : vector<2x32xf32>
    %509 = vector.extract_strided_slice %498 {offsets = [0, 32], sizes = [2, 32], strides = [1, 1]} : vector<2x128xf32> to vector<2x32xf32>
    %510 = arith.negf %509 : vector<2x32xf32>
    %511 = math.exp %510 : vector<2x32xf32>
    %cst_96 = arith.constant 1.000000e+00 : f32
    %512 = vector.broadcast %cst_96 : f32 to vector<2x32xf32>
    %513 = arith.addf %512, %511 : vector<2x32xf32>
    %514 = arith.divf %512, %513 : vector<2x32xf32>
    %515 = vector.extract_strided_slice %498 {offsets = [0, 64], sizes = [2, 32], strides = [1, 1]} : vector<2x128xf32> to vector<2x32xf32>
    %516 = math.tanh %515 : vector<2x32xf32>
    %517 = vector.extract_strided_slice %498 {offsets = [0, 96], sizes = [2, 32], strides = [1, 1]} : vector<2x128xf32> to vector<2x32xf32>
    %518 = arith.negf %517 : vector<2x32xf32>
    %519 = math.exp %518 : vector<2x32xf32>
    %cst_97 = arith.constant 1.000000e+00 : f32
    %520 = vector.broadcast %cst_97 : f32 to vector<2x32xf32>
    %521 = arith.addf %520, %519 : vector<2x32xf32>
    %522 = arith.divf %520, %521 : vector<2x32xf32>
    %523 = arith.mulf %514, %492 : vector<2x32xf32>
    %524 = arith.mulf %508, %516 : vector<2x32xf32>
    %525 = arith.addf %523, %524 : vector<2x32xf32>
    %526 = math.tanh %525 : vector<2x32xf32>
    %527 = arith.mulf %522, %526 : vector<2x32xf32>
    %528 = vector.extract_strided_slice %502 {offsets = [0, 0], sizes = [2, 32], strides = [1, 1]} : vector<2x128xf32> to vector<2x32xf32>
    %529 = arith.negf %528 : vector<2x32xf32>
    %530 = math.exp %529 : vector<2x32xf32>
    %cst_98 = arith.constant 1.000000e+00 : f32
    %531 = vector.broadcast %cst_98 : f32 to vector<2x32xf32>
    %532 = arith.addf %531, %530 : vector<2x32xf32>
    %533 = arith.divf %531, %532 : vector<2x32xf32>
    %534 = vector.extract_strided_slice %502 {offsets = [0, 32], sizes = [2, 32], strides = [1, 1]} : vector<2x128xf32> to vector<2x32xf32>
    %535 = arith.negf %534 : vector<2x32xf32>
    %536 = math.exp %535 : vector<2x32xf32>
    %cst_99 = arith.constant 1.000000e+00 : f32
    %537 = vector.broadcast %cst_99 : f32 to vector<2x32xf32>
    %538 = arith.addf %537, %536 : vector<2x32xf32>
    %539 = arith.divf %537, %538 : vector<2x32xf32>
    %540 = vector.extract_strided_slice %502 {offsets = [0, 64], sizes = [2, 32], strides = [1, 1]} : vector<2x128xf32> to vector<2x32xf32>
    %541 = math.tanh %540 : vector<2x32xf32>
    %542 = vector.extract_strided_slice %502 {offsets = [0, 96], sizes = [2, 32], strides = [1, 1]} : vector<2x128xf32> to vector<2x32xf32>
    %543 = arith.negf %542 : vector<2x32xf32>
    %544 = math.exp %543 : vector<2x32xf32>
    %cst_100 = arith.constant 1.000000e+00 : f32
    %545 = vector.broadcast %cst_100 : f32 to vector<2x32xf32>
    %546 = arith.addf %545, %544 : vector<2x32xf32>
    %547 = arith.divf %545, %546 : vector<2x32xf32>
    %548 = arith.mulf %539, %494 : vector<2x32xf32>
    %549 = arith.mulf %533, %541 : vector<2x32xf32>
    %550 = arith.addf %548, %549 : vector<2x32xf32>
    %551 = math.tanh %550 : vector<2x32xf32>
    %552 = arith.mulf %547, %551 : vector<2x32xf32>
    %553 = vector.extract_strided_slice %488 {offsets = [2, 0], sizes = [2, 128], strides = [1, 1]} : vector<16x256xf32> to vector<2x128xf32>
    %554 = arith.truncf %527 : vector<2x32xf32> to vector<2x32xbf16>
    %cst_101 = arith.constant dense<0.000000e+00> : vector<2x128xf32>
    %555 = tpu.matmul %554, %489, %cst_101 {dimension_numbers = #tpu.dot_dimension_numbers<[1], [0], [0], [1], [0, 0, 1, 1], [], []>} : vector<2x32xbf16>, vector<32x128xbf16>, vector<2x128xf32> -> vector<2x128xf32>
    %556 = arith.addf %553, %555 : vector<2x128xf32>
    %557 = vector.extract_strided_slice %488 {offsets = [12, 128], sizes = [2, 128], strides = [1, 1]} : vector<16x256xf32> to vector<2x128xf32>
    %558 = arith.truncf %552 : vector<2x32xf32> to vector<2x32xbf16>
    %cst_102 = arith.constant dense<0.000000e+00> : vector<2x128xf32>
    %559 = tpu.matmul %558, %490, %cst_102 {dimension_numbers = #tpu.dot_dimension_numbers<[1], [0], [0], [1], [0, 0, 1, 1], [], []>} : vector<2x32xbf16>, vector<32x128xbf16>, vector<2x128xf32> -> vector<2x128xf32>
    %560 = arith.addf %557, %559 : vector<2x128xf32>
    %561 = vector.extract_strided_slice %556 {offsets = [0, 0], sizes = [2, 32], strides = [1, 1]} : vector<2x128xf32> to vector<2x32xf32>
    %562 = arith.negf %561 : vector<2x32xf32>
    %563 = math.exp %562 : vector<2x32xf32>
    %cst_103 = arith.constant 1.000000e+00 : f32
    %564 = vector.broadcast %cst_103 : f32 to vector<2x32xf32>
    %565 = arith.addf %564, %563 : vector<2x32xf32>
    %566 = arith.divf %564, %565 : vector<2x32xf32>
    %567 = vector.extract_strided_slice %556 {offsets = [0, 32], sizes = [2, 32], strides = [1, 1]} : vector<2x128xf32> to vector<2x32xf32>
    %568 = arith.negf %567 : vector<2x32xf32>
    %569 = math.exp %568 : vector<2x32xf32>
    %cst_104 = arith.constant 1.000000e+00 : f32
    %570 = vector.broadcast %cst_104 : f32 to vector<2x32xf32>
    %571 = arith.addf %570, %569 : vector<2x32xf32>
    %572 = arith.divf %570, %571 : vector<2x32xf32>
    %573 = vector.extract_strided_slice %556 {offsets = [0, 64], sizes = [2, 32], strides = [1, 1]} : vector<2x128xf32> to vector<2x32xf32>
    %574 = math.tanh %573 : vector<2x32xf32>
    %575 = vector.extract_strided_slice %556 {offsets = [0, 96], sizes = [2, 32], strides = [1, 1]} : vector<2x128xf32> to vector<2x32xf32>
    %576 = arith.negf %575 : vector<2x32xf32>
    %577 = math.exp %576 : vector<2x32xf32>
    %cst_105 = arith.constant 1.000000e+00 : f32
    %578 = vector.broadcast %cst_105 : f32 to vector<2x32xf32>
    %579 = arith.addf %578, %577 : vector<2x32xf32>
    %580 = arith.divf %578, %579 : vector<2x32xf32>
    %581 = arith.mulf %572, %525 : vector<2x32xf32>
    %582 = arith.mulf %566, %574 : vector<2x32xf32>
    %583 = arith.addf %581, %582 : vector<2x32xf32>
    %584 = math.tanh %583 : vector<2x32xf32>
    %585 = arith.mulf %580, %584 : vector<2x32xf32>
    %586 = vector.extract_strided_slice %560 {offsets = [0, 0], sizes = [2, 32], strides = [1, 1]} : vector<2x128xf32> to vector<2x32xf32>
    %587 = arith.negf %586 : vector<2x32xf32>
    %588 = math.exp %587 : vector<2x32xf32>
    %cst_106 = arith.constant 1.000000e+00 : f32
    %589 = vector.broadcast %cst_106 : f32 to vector<2x32xf32>
    %590 = arith.addf %589, %588 : vector<2x32xf32>
    %591 = arith.divf %589, %590 : vector<2x32xf32>
    %592 = vector.extract_strided_slice %560 {offsets = [0, 32], sizes = [2, 32], strides = [1, 1]} : vector<2x128xf32> to vector<2x32xf32>
    %593 = arith.negf %592 : vector<2x32xf32>
    %594 = math.exp %593 : vector<2x32xf32>
    %cst_107 = arith.constant 1.000000e+00 : f32
    %595 = vector.broadcast %cst_107 : f32 to vector<2x32xf32>
    %596 = arith.addf %595, %594 : vector<2x32xf32>
    %597 = arith.divf %595, %596 : vector<2x32xf32>
    %598 = vector.extract_strided_slice %560 {offsets = [0, 64], sizes = [2, 32], strides = [1, 1]} : vector<2x128xf32> to vector<2x32xf32>
    %599 = math.tanh %598 : vector<2x32xf32>
    %600 = vector.extract_strided_slice %560 {offsets = [0, 96], sizes = [2, 32], strides = [1, 1]} : vector<2x128xf32> to vector<2x32xf32>
    %601 = arith.negf %600 : vector<2x32xf32>
    %602 = math.exp %601 : vector<2x32xf32>
    %cst_108 = arith.constant 1.000000e+00 : f32
    %603 = vector.broadcast %cst_108 : f32 to vector<2x32xf32>
    %604 = arith.addf %603, %602 : vector<2x32xf32>
    %605 = arith.divf %603, %604 : vector<2x32xf32>
    %606 = arith.mulf %597, %550 : vector<2x32xf32>
    %607 = arith.mulf %591, %599 : vector<2x32xf32>
    %608 = arith.addf %606, %607 : vector<2x32xf32>
    %609 = math.tanh %608 : vector<2x32xf32>
    %610 = arith.mulf %605, %609 : vector<2x32xf32>
    %611 = vector.extract_strided_slice %488 {offsets = [4, 0], sizes = [2, 128], strides = [1, 1]} : vector<16x256xf32> to vector<2x128xf32>
    %612 = arith.truncf %585 : vector<2x32xf32> to vector<2x32xbf16>
    %cst_109 = arith.constant dense<0.000000e+00> : vector<2x128xf32>
    %613 = tpu.matmul %612, %489, %cst_109 {dimension_numbers = #tpu.dot_dimension_numbers<[1], [0], [0], [1], [0, 0, 1, 1], [], []>} : vector<2x32xbf16>, vector<32x128xbf16>, vector<2x128xf32> -> vector<2x128xf32>
    %614 = arith.addf %611, %613 : vector<2x128xf32>
    %615 = vector.extract_strided_slice %488 {offsets = [10, 128], sizes = [2, 128], strides = [1, 1]} : vector<16x256xf32> to vector<2x128xf32>
    %616 = arith.truncf %610 : vector<2x32xf32> to vector<2x32xbf16>
    %cst_110 = arith.constant dense<0.000000e+00> : vector<2x128xf32>
    %617 = tpu.matmul %616, %490, %cst_110 {dimension_numbers = #tpu.dot_dimension_numbers<[1], [0], [0], [1], [0, 0, 1, 1], [], []>} : vector<2x32xbf16>, vector<32x128xbf16>, vector<2x128xf32> -> vector<2x128xf32>
    %618 = arith.addf %615, %617 : vector<2x128xf32>
    %619 = vector.extract_strided_slice %614 {offsets = [0, 0], sizes = [2, 32], strides = [1, 1]} : vector<2x128xf32> to vector<2x32xf32>
    %620 = arith.negf %619 : vector<2x32xf32>
    %621 = math.exp %620 : vector<2x32xf32>
    %cst_111 = arith.constant 1.000000e+00 : f32
    %622 = vector.broadcast %cst_111 : f32 to vector<2x32xf32>
    %623 = arith.addf %622, %621 : vector<2x32xf32>
    %624 = arith.divf %622, %623 : vector<2x32xf32>
    %625 = vector.extract_strided_slice %614 {offsets = [0, 32], sizes = [2, 32], strides = [1, 1]} : vector<2x128xf32> to vector<2x32xf32>
    %626 = arith.negf %625 : vector<2x32xf32>
    %627 = math.exp %626 : vector<2x32xf32>
    %cst_112 = arith.constant 1.000000e+00 : f32
    %628 = vector.broadcast %cst_112 : f32 to vector<2x32xf32>
    %629 = arith.addf %628, %627 : vector<2x32xf32>
    %630 = arith.divf %628, %629 : vector<2x32xf32>
    %631 = vector.extract_strided_slice %614 {offsets = [0, 64], sizes = [2, 32], strides = [1, 1]} : vector<2x128xf32> to vector<2x32xf32>
    %632 = math.tanh %631 : vector<2x32xf32>
    %633 = vector.extract_strided_slice %614 {offsets = [0, 96], sizes = [2, 32], strides = [1, 1]} : vector<2x128xf32> to vector<2x32xf32>
    %634 = arith.negf %633 : vector<2x32xf32>
    %635 = math.exp %634 : vector<2x32xf32>
    %cst_113 = arith.constant 1.000000e+00 : f32
    %636 = vector.broadcast %cst_113 : f32 to vector<2x32xf32>
    %637 = arith.addf %636, %635 : vector<2x32xf32>
    %638 = arith.divf %636, %637 : vector<2x32xf32>
    %639 = arith.mulf %630, %583 : vector<2x32xf32>
    %640 = arith.mulf %624, %632 : vector<2x32xf32>
    %641 = arith.addf %639, %640 : vector<2x32xf32>
    %642 = math.tanh %641 : vector<2x32xf32>
    %643 = arith.mulf %638, %642 : vector<2x32xf32>
    %644 = vector.extract_strided_slice %618 {offsets = [0, 0], sizes = [2, 32], strides = [1, 1]} : vector<2x128xf32> to vector<2x32xf32>
    %645 = arith.negf %644 : vector<2x32xf32>
    %646 = math.exp %645 : vector<2x32xf32>
    %cst_114 = arith.constant 1.000000e+00 : f32
    %647 = vector.broadcast %cst_114 : f32 to vector<2x32xf32>
    %648 = arith.addf %647, %646 : vector<2x32xf32>
    %649 = arith.divf %647, %648 : vector<2x32xf32>
    %650 = vector.extract_strided_slice %618 {offsets = [0, 32], sizes = [2, 32], strides = [1, 1]} : vector<2x128xf32> to vector<2x32xf32>
    %651 = arith.negf %650 : vector<2x32xf32>
    %652 = math.exp %651 : vector<2x32xf32>
    %cst_115 = arith.constant 1.000000e+00 : f32
    %653 = vector.broadcast %cst_115 : f32 to vector<2x32xf32>
    %654 = arith.addf %653, %652 : vector<2x32xf32>
    %655 = arith.divf %653, %654 : vector<2x32xf32>
    %656 = vector.extract_strided_slice %618 {offsets = [0, 64], sizes = [2, 32], strides = [1, 1]} : vector<2x128xf32> to vector<2x32xf32>
    %657 = math.tanh %656 : vector<2x32xf32>
    %658 = vector.extract_strided_slice %618 {offsets = [0, 96], sizes = [2, 32], strides = [1, 1]} : vector<2x128xf32> to vector<2x32xf32>
    %659 = arith.negf %658 : vector<2x32xf32>
    %660 = math.exp %659 : vector<2x32xf32>
    %cst_116 = arith.constant 1.000000e+00 : f32
    %661 = vector.broadcast %cst_116 : f32 to vector<2x32xf32>
    %662 = arith.addf %661, %660 : vector<2x32xf32>
    %663 = arith.divf %661, %662 : vector<2x32xf32>
    %664 = arith.mulf %655, %608 : vector<2x32xf32>
    %665 = arith.mulf %649, %657 : vector<2x32xf32>
    %666 = arith.addf %664, %665 : vector<2x32xf32>
    %667 = math.tanh %666 : vector<2x32xf32>
    %668 = arith.mulf %663, %667 : vector<2x32xf32>
    %669 = vector.extract_strided_slice %488 {offsets = [6, 0], sizes = [2, 128], strides = [1, 1]} : vector<16x256xf32> to vector<2x128xf32>
    %670 = arith.truncf %643 : vector<2x32xf32> to vector<2x32xbf16>
    %cst_117 = arith.constant dense<0.000000e+00> : vector<2x128xf32>
    %671 = tpu.matmul %670, %489, %cst_117 {dimension_numbers = #tpu.dot_dimension_numbers<[1], [0], [0], [1], [0, 0, 1, 1], [], []>} : vector<2x32xbf16>, vector<32x128xbf16>, vector<2x128xf32> -> vector<2x128xf32>
    %672 = arith.addf %669, %671 : vector<2x128xf32>
    %673 = vector.extract_strided_slice %488 {offsets = [8, 128], sizes = [2, 128], strides = [1, 1]} : vector<16x256xf32> to vector<2x128xf32>
    %674 = arith.truncf %668 : vector<2x32xf32> to vector<2x32xbf16>
    %cst_118 = arith.constant dense<0.000000e+00> : vector<2x128xf32>
    %675 = tpu.matmul %674, %490, %cst_118 {dimension_numbers = #tpu.dot_dimension_numbers<[1], [0], [0], [1], [0, 0, 1, 1], [], []>} : vector<2x32xbf16>, vector<32x128xbf16>, vector<2x128xf32> -> vector<2x128xf32>
    %676 = arith.addf %673, %675 : vector<2x128xf32>
    %677 = vector.extract_strided_slice %672 {offsets = [0, 0], sizes = [2, 32], strides = [1, 1]} : vector<2x128xf32> to vector<2x32xf32>
    %678 = arith.negf %677 : vector<2x32xf32>
    %679 = math.exp %678 : vector<2x32xf32>
    %cst_119 = arith.constant 1.000000e+00 : f32
    %680 = vector.broadcast %cst_119 : f32 to vector<2x32xf32>
    %681 = arith.addf %680, %679 : vector<2x32xf32>
    %682 = arith.divf %680, %681 : vector<2x32xf32>
    %683 = vector.extract_strided_slice %672 {offsets = [0, 32], sizes = [2, 32], strides = [1, 1]} : vector<2x128xf32> to vector<2x32xf32>
    %684 = arith.negf %683 : vector<2x32xf32>
    %685 = math.exp %684 : vector<2x32xf32>
    %cst_120 = arith.constant 1.000000e+00 : f32
    %686 = vector.broadcast %cst_120 : f32 to vector<2x32xf32>
    %687 = arith.addf %686, %685 : vector<2x32xf32>
    %688 = arith.divf %686, %687 : vector<2x32xf32>
    %689 = vector.extract_strided_slice %672 {offsets = [0, 64], sizes = [2, 32], strides = [1, 1]} : vector<2x128xf32> to vector<2x32xf32>
    %690 = math.tanh %689 : vector<2x32xf32>
    %691 = vector.extract_strided_slice %672 {offsets = [0, 96], sizes = [2, 32], strides = [1, 1]} : vector<2x128xf32> to vector<2x32xf32>
    %692 = arith.negf %691 : vector<2x32xf32>
    %693 = math.exp %692 : vector<2x32xf32>
    %cst_121 = arith.constant 1.000000e+00 : f32
    %694 = vector.broadcast %cst_121 : f32 to vector<2x32xf32>
    %695 = arith.addf %694, %693 : vector<2x32xf32>
    %696 = arith.divf %694, %695 : vector<2x32xf32>
    %697 = arith.mulf %688, %641 : vector<2x32xf32>
    %698 = arith.mulf %682, %690 : vector<2x32xf32>
    %699 = arith.addf %697, %698 : vector<2x32xf32>
    %700 = math.tanh %699 : vector<2x32xf32>
    %701 = arith.mulf %696, %700 : vector<2x32xf32>
    %702 = vector.extract_strided_slice %676 {offsets = [0, 0], sizes = [2, 32], strides = [1, 1]} : vector<2x128xf32> to vector<2x32xf32>
    %703 = arith.negf %702 : vector<2x32xf32>
    %704 = math.exp %703 : vector<2x32xf32>
    %cst_122 = arith.constant 1.000000e+00 : f32
    %705 = vector.broadcast %cst_122 : f32 to vector<2x32xf32>
    %706 = arith.addf %705, %704 : vector<2x32xf32>
    %707 = arith.divf %705, %706 : vector<2x32xf32>
    %708 = vector.extract_strided_slice %676 {offsets = [0, 32], sizes = [2, 32], strides = [1, 1]} : vector<2x128xf32> to vector<2x32xf32>
    %709 = arith.negf %708 : vector<2x32xf32>
    %710 = math.exp %709 : vector<2x32xf32>
    %cst_123 = arith.constant 1.000000e+00 : f32
    %711 = vector.broadcast %cst_123 : f32 to vector<2x32xf32>
    %712 = arith.addf %711, %710 : vector<2x32xf32>
    %713 = arith.divf %711, %712 : vector<2x32xf32>
    %714 = vector.extract_strided_slice %676 {offsets = [0, 64], sizes = [2, 32], strides = [1, 1]} : vector<2x128xf32> to vector<2x32xf32>
    %715 = math.tanh %714 : vector<2x32xf32>
    %716 = vector.extract_strided_slice %676 {offsets = [0, 96], sizes = [2, 32], strides = [1, 1]} : vector<2x128xf32> to vector<2x32xf32>
    %717 = arith.negf %716 : vector<2x32xf32>
    %718 = math.exp %717 : vector<2x32xf32>
    %cst_124 = arith.constant 1.000000e+00 : f32
    %719 = vector.broadcast %cst_124 : f32 to vector<2x32xf32>
    %720 = arith.addf %719, %718 : vector<2x32xf32>
    %721 = arith.divf %719, %720 : vector<2x32xf32>
    %722 = arith.mulf %713, %666 : vector<2x32xf32>
    %723 = arith.mulf %707, %715 : vector<2x32xf32>
    %724 = arith.addf %722, %723 : vector<2x32xf32>
    %725 = math.tanh %724 : vector<2x32xf32>
    %726 = arith.mulf %721, %725 : vector<2x32xf32>
    %727 = vector.extract_strided_slice %488 {offsets = [8, 0], sizes = [2, 128], strides = [1, 1]} : vector<16x256xf32> to vector<2x128xf32>
    %728 = arith.truncf %701 : vector<2x32xf32> to vector<2x32xbf16>
    %cst_125 = arith.constant dense<0.000000e+00> : vector<2x128xf32>
    %729 = tpu.matmul %728, %489, %cst_125 {dimension_numbers = #tpu.dot_dimension_numbers<[1], [0], [0], [1], [0, 0, 1, 1], [], []>} : vector<2x32xbf16>, vector<32x128xbf16>, vector<2x128xf32> -> vector<2x128xf32>
    %730 = arith.addf %727, %729 : vector<2x128xf32>
    %731 = vector.extract_strided_slice %488 {offsets = [6, 128], sizes = [2, 128], strides = [1, 1]} : vector<16x256xf32> to vector<2x128xf32>
    %732 = arith.truncf %726 : vector<2x32xf32> to vector<2x32xbf16>
    %cst_126 = arith.constant dense<0.000000e+00> : vector<2x128xf32>
    %733 = tpu.matmul %732, %490, %cst_126 {dimension_numbers = #tpu.dot_dimension_numbers<[1], [0], [0], [1], [0, 0, 1, 1], [], []>} : vector<2x32xbf16>, vector<32x128xbf16>, vector<2x128xf32> -> vector<2x128xf32>
    %734 = arith.addf %731, %733 : vector<2x128xf32>
    %735 = vector.extract_strided_slice %730 {offsets = [0, 0], sizes = [2, 32], strides = [1, 1]} : vector<2x128xf32> to vector<2x32xf32>
    %736 = arith.negf %735 : vector<2x32xf32>
    %737 = math.exp %736 : vector<2x32xf32>
    %cst_127 = arith.constant 1.000000e+00 : f32
    %738 = vector.broadcast %cst_127 : f32 to vector<2x32xf32>
    %739 = arith.addf %738, %737 : vector<2x32xf32>
    %740 = arith.divf %738, %739 : vector<2x32xf32>
    %741 = vector.extract_strided_slice %730 {offsets = [0, 32], sizes = [2, 32], strides = [1, 1]} : vector<2x128xf32> to vector<2x32xf32>
    %742 = arith.negf %741 : vector<2x32xf32>
    %743 = math.exp %742 : vector<2x32xf32>
    %cst_128 = arith.constant 1.000000e+00 : f32
    %744 = vector.broadcast %cst_128 : f32 to vector<2x32xf32>
    %745 = arith.addf %744, %743 : vector<2x32xf32>
    %746 = arith.divf %744, %745 : vector<2x32xf32>
    %747 = vector.extract_strided_slice %730 {offsets = [0, 64], sizes = [2, 32], strides = [1, 1]} : vector<2x128xf32> to vector<2x32xf32>
    %748 = math.tanh %747 : vector<2x32xf32>
    %749 = vector.extract_strided_slice %730 {offsets = [0, 96], sizes = [2, 32], strides = [1, 1]} : vector<2x128xf32> to vector<2x32xf32>
    %750 = arith.negf %749 : vector<2x32xf32>
    %751 = math.exp %750 : vector<2x32xf32>
    %cst_129 = arith.constant 1.000000e+00 : f32
    %752 = vector.broadcast %cst_129 : f32 to vector<2x32xf32>
    %753 = arith.addf %752, %751 : vector<2x32xf32>
    %754 = arith.divf %752, %753 : vector<2x32xf32>
    %755 = arith.mulf %746, %699 : vector<2x32xf32>
    %756 = arith.mulf %740, %748 : vector<2x32xf32>
    %757 = arith.addf %755, %756 : vector<2x32xf32>
    %758 = math.tanh %757 : vector<2x32xf32>
    %759 = arith.mulf %754, %758 : vector<2x32xf32>
    %760 = vector.extract_strided_slice %734 {offsets = [0, 0], sizes = [2, 32], strides = [1, 1]} : vector<2x128xf32> to vector<2x32xf32>
    %761 = arith.negf %760 : vector<2x32xf32>
    %762 = math.exp %761 : vector<2x32xf32>
    %cst_130 = arith.constant 1.000000e+00 : f32
    %763 = vector.broadcast %cst_130 : f32 to vector<2x32xf32>
    %764 = arith.addf %763, %762 : vector<2x32xf32>
    %765 = arith.divf %763, %764 : vector<2x32xf32>
    %766 = vector.extract_strided_slice %734 {offsets = [0, 32], sizes = [2, 32], strides = [1, 1]} : vector<2x128xf32> to vector<2x32xf32>
    %767 = arith.negf %766 : vector<2x32xf32>
    %768 = math.exp %767 : vector<2x32xf32>
    %cst_131 = arith.constant 1.000000e+00 : f32
    %769 = vector.broadcast %cst_131 : f32 to vector<2x32xf32>
    %770 = arith.addf %769, %768 : vector<2x32xf32>
    %771 = arith.divf %769, %770 : vector<2x32xf32>
    %772 = vector.extract_strided_slice %734 {offsets = [0, 64], sizes = [2, 32], strides = [1, 1]} : vector<2x128xf32> to vector<2x32xf32>
    %773 = math.tanh %772 : vector<2x32xf32>
    %774 = vector.extract_strided_slice %734 {offsets = [0, 96], sizes = [2, 32], strides = [1, 1]} : vector<2x128xf32> to vector<2x32xf32>
    %775 = arith.negf %774 : vector<2x32xf32>
    %776 = math.exp %775 : vector<2x32xf32>
    %cst_132 = arith.constant 1.000000e+00 : f32
    %777 = vector.broadcast %cst_132 : f32 to vector<2x32xf32>
    %778 = arith.addf %777, %776 : vector<2x32xf32>
    %779 = arith.divf %777, %778 : vector<2x32xf32>
    %780 = arith.mulf %771, %724 : vector<2x32xf32>
    %781 = arith.mulf %765, %773 : vector<2x32xf32>
    %782 = arith.addf %780, %781 : vector<2x32xf32>
    %783 = math.tanh %782 : vector<2x32xf32>
    %784 = arith.mulf %779, %783 : vector<2x32xf32>
    %785 = vector.extract_strided_slice %488 {offsets = [10, 0], sizes = [2, 128], strides = [1, 1]} : vector<16x256xf32> to vector<2x128xf32>
    %786 = arith.truncf %759 : vector<2x32xf32> to vector<2x32xbf16>
    %cst_133 = arith.constant dense<0.000000e+00> : vector<2x128xf32>
    %787 = tpu.matmul %786, %489, %cst_133 {dimension_numbers = #tpu.dot_dimension_numbers<[1], [0], [0], [1], [0, 0, 1, 1], [], []>} : vector<2x32xbf16>, vector<32x128xbf16>, vector<2x128xf32> -> vector<2x128xf32>
    %788 = arith.addf %785, %787 : vector<2x128xf32>
    %789 = vector.extract_strided_slice %488 {offsets = [4, 128], sizes = [2, 128], strides = [1, 1]} : vector<16x256xf32> to vector<2x128xf32>
    %790 = arith.truncf %784 : vector<2x32xf32> to vector<2x32xbf16>
    %cst_134 = arith.constant dense<0.000000e+00> : vector<2x128xf32>
    %791 = tpu.matmul %790, %490, %cst_134 {dimension_numbers = #tpu.dot_dimension_numbers<[1], [0], [0], [1], [0, 0, 1, 1], [], []>} : vector<2x32xbf16>, vector<32x128xbf16>, vector<2x128xf32> -> vector<2x128xf32>
    %792 = arith.addf %789, %791 : vector<2x128xf32>
    %793 = vector.extract_strided_slice %788 {offsets = [0, 0], sizes = [2, 32], strides = [1, 1]} : vector<2x128xf32> to vector<2x32xf32>
    %794 = arith.negf %793 : vector<2x32xf32>
    %795 = math.exp %794 : vector<2x32xf32>
    %cst_135 = arith.constant 1.000000e+00 : f32
    %796 = vector.broadcast %cst_135 : f32 to vector<2x32xf32>
    %797 = arith.addf %796, %795 : vector<2x32xf32>
    %798 = arith.divf %796, %797 : vector<2x32xf32>
    %799 = vector.extract_strided_slice %788 {offsets = [0, 32], sizes = [2, 32], strides = [1, 1]} : vector<2x128xf32> to vector<2x32xf32>
    %800 = arith.negf %799 : vector<2x32xf32>
    %801 = math.exp %800 : vector<2x32xf32>
    %cst_136 = arith.constant 1.000000e+00 : f32
    %802 = vector.broadcast %cst_136 : f32 to vector<2x32xf32>
    %803 = arith.addf %802, %801 : vector<2x32xf32>
    %804 = arith.divf %802, %803 : vector<2x32xf32>
    %805 = vector.extract_strided_slice %788 {offsets = [0, 64], sizes = [2, 32], strides = [1, 1]} : vector<2x128xf32> to vector<2x32xf32>
    %806 = math.tanh %805 : vector<2x32xf32>
    %807 = vector.extract_strided_slice %788 {offsets = [0, 96], sizes = [2, 32], strides = [1, 1]} : vector<2x128xf32> to vector<2x32xf32>
    %808 = arith.negf %807 : vector<2x32xf32>
    %809 = math.exp %808 : vector<2x32xf32>
    %cst_137 = arith.constant 1.000000e+00 : f32
    %810 = vector.broadcast %cst_137 : f32 to vector<2x32xf32>
    %811 = arith.addf %810, %809 : vector<2x32xf32>
    %812 = arith.divf %810, %811 : vector<2x32xf32>
    %813 = arith.mulf %804, %757 : vector<2x32xf32>
    %814 = arith.mulf %798, %806 : vector<2x32xf32>
    %815 = arith.addf %813, %814 : vector<2x32xf32>
    %816 = math.tanh %815 : vector<2x32xf32>
    %817 = arith.mulf %812, %816 : vector<2x32xf32>
    %818 = vector.extract_strided_slice %792 {offsets = [0, 0], sizes = [2, 32], strides = [1, 1]} : vector<2x128xf32> to vector<2x32xf32>
    %819 = arith.negf %818 : vector<2x32xf32>
    %820 = math.exp %819 : vector<2x32xf32>
    %cst_138 = arith.constant 1.000000e+00 : f32
    %821 = vector.broadcast %cst_138 : f32 to vector<2x32xf32>
    %822 = arith.addf %821, %820 : vector<2x32xf32>
    %823 = arith.divf %821, %822 : vector<2x32xf32>
    %824 = vector.extract_strided_slice %792 {offsets = [0, 32], sizes = [2, 32], strides = [1, 1]} : vector<2x128xf32> to vector<2x32xf32>
    %825 = arith.negf %824 : vector<2x32xf32>
    %826 = math.exp %825 : vector<2x32xf32>
    %cst_139 = arith.constant 1.000000e+00 : f32
    %827 = vector.broadcast %cst_139 : f32 to vector<2x32xf32>
    %828 = arith.addf %827, %826 : vector<2x32xf32>
    %829 = arith.divf %827, %828 : vector<2x32xf32>
    %830 = vector.extract_strided_slice %792 {offsets = [0, 64], sizes = [2, 32], strides = [1, 1]} : vector<2x128xf32> to vector<2x32xf32>
    %831 = math.tanh %830 : vector<2x32xf32>
    %832 = vector.extract_strided_slice %792 {offsets = [0, 96], sizes = [2, 32], strides = [1, 1]} : vector<2x128xf32> to vector<2x32xf32>
    %833 = arith.negf %832 : vector<2x32xf32>
    %834 = math.exp %833 : vector<2x32xf32>
    %cst_140 = arith.constant 1.000000e+00 : f32
    %835 = vector.broadcast %cst_140 : f32 to vector<2x32xf32>
    %836 = arith.addf %835, %834 : vector<2x32xf32>
    %837 = arith.divf %835, %836 : vector<2x32xf32>
    %838 = arith.mulf %829, %782 : vector<2x32xf32>
    %839 = arith.mulf %823, %831 : vector<2x32xf32>
    %840 = arith.addf %838, %839 : vector<2x32xf32>
    %841 = math.tanh %840 : vector<2x32xf32>
    %842 = arith.mulf %837, %841 : vector<2x32xf32>
    %843 = vector.extract_strided_slice %488 {offsets = [12, 0], sizes = [2, 128], strides = [1, 1]} : vector<16x256xf32> to vector<2x128xf32>
    %844 = arith.truncf %817 : vector<2x32xf32> to vector<2x32xbf16>
    %cst_141 = arith.constant dense<0.000000e+00> : vector<2x128xf32>
    %845 = tpu.matmul %844, %489, %cst_141 {dimension_numbers = #tpu.dot_dimension_numbers<[1], [0], [0], [1], [0, 0, 1, 1], [], []>} : vector<2x32xbf16>, vector<32x128xbf16>, vector<2x128xf32> -> vector<2x128xf32>
    %846 = arith.addf %843, %845 : vector<2x128xf32>
    %847 = vector.extract_strided_slice %488 {offsets = [2, 128], sizes = [2, 128], strides = [1, 1]} : vector<16x256xf32> to vector<2x128xf32>
    %848 = arith.truncf %842 : vector<2x32xf32> to vector<2x32xbf16>
    %cst_142 = arith.constant dense<0.000000e+00> : vector<2x128xf32>
    %849 = tpu.matmul %848, %490, %cst_142 {dimension_numbers = #tpu.dot_dimension_numbers<[1], [0], [0], [1], [0, 0, 1, 1], [], []>} : vector<2x32xbf16>, vector<32x128xbf16>, vector<2x128xf32> -> vector<2x128xf32>
    %850 = arith.addf %847, %849 : vector<2x128xf32>
    %851 = vector.extract_strided_slice %846 {offsets = [0, 0], sizes = [2, 32], strides = [1, 1]} : vector<2x128xf32> to vector<2x32xf32>
    %852 = arith.negf %851 : vector<2x32xf32>
    %853 = math.exp %852 : vector<2x32xf32>
    %cst_143 = arith.constant 1.000000e+00 : f32
    %854 = vector.broadcast %cst_143 : f32 to vector<2x32xf32>
    %855 = arith.addf %854, %853 : vector<2x32xf32>
    %856 = arith.divf %854, %855 : vector<2x32xf32>
    %857 = vector.extract_strided_slice %846 {offsets = [0, 32], sizes = [2, 32], strides = [1, 1]} : vector<2x128xf32> to vector<2x32xf32>
    %858 = arith.negf %857 : vector<2x32xf32>
    %859 = math.exp %858 : vector<2x32xf32>
    %cst_144 = arith.constant 1.000000e+00 : f32
    %860 = vector.broadcast %cst_144 : f32 to vector<2x32xf32>
    %861 = arith.addf %860, %859 : vector<2x32xf32>
    %862 = arith.divf %860, %861 : vector<2x32xf32>
    %863 = vector.extract_strided_slice %846 {offsets = [0, 64], sizes = [2, 32], strides = [1, 1]} : vector<2x128xf32> to vector<2x32xf32>
    %864 = math.tanh %863 : vector<2x32xf32>
    %865 = vector.extract_strided_slice %846 {offsets = [0, 96], sizes = [2, 32], strides = [1, 1]} : vector<2x128xf32> to vector<2x32xf32>
    %866 = arith.negf %865 : vector<2x32xf32>
    %867 = math.exp %866 : vector<2x32xf32>
    %cst_145 = arith.constant 1.000000e+00 : f32
    %868 = vector.broadcast %cst_145 : f32 to vector<2x32xf32>
    %869 = arith.addf %868, %867 : vector<2x32xf32>
    %870 = arith.divf %868, %869 : vector<2x32xf32>
    %871 = arith.mulf %862, %815 : vector<2x32xf32>
    %872 = arith.mulf %856, %864 : vector<2x32xf32>
    %873 = arith.addf %871, %872 : vector<2x32xf32>
    %874 = math.tanh %873 : vector<2x32xf32>
    %875 = arith.mulf %870, %874 : vector<2x32xf32>
    %876 = vector.extract_strided_slice %850 {offsets = [0, 0], sizes = [2, 32], strides = [1, 1]} : vector<2x128xf32> to vector<2x32xf32>
    %877 = arith.negf %876 : vector<2x32xf32>
    %878 = math.exp %877 : vector<2x32xf32>
    %cst_146 = arith.constant 1.000000e+00 : f32
    %879 = vector.broadcast %cst_146 : f32 to vector<2x32xf32>
    %880 = arith.addf %879, %878 : vector<2x32xf32>
    %881 = arith.divf %879, %880 : vector<2x32xf32>
    %882 = vector.extract_strided_slice %850 {offsets = [0, 32], sizes = [2, 32], strides = [1, 1]} : vector<2x128xf32> to vector<2x32xf32>
    %883 = arith.negf %882 : vector<2x32xf32>
    %884 = math.exp %883 : vector<2x32xf32>
    %cst_147 = arith.constant 1.000000e+00 : f32
    %885 = vector.broadcast %cst_147 : f32 to vector<2x32xf32>
    %886 = arith.addf %885, %884 : vector<2x32xf32>
    %887 = arith.divf %885, %886 : vector<2x32xf32>
    %888 = vector.extract_strided_slice %850 {offsets = [0, 64], sizes = [2, 32], strides = [1, 1]} : vector<2x128xf32> to vector<2x32xf32>
    %889 = math.tanh %888 : vector<2x32xf32>
    %890 = vector.extract_strided_slice %850 {offsets = [0, 96], sizes = [2, 32], strides = [1, 1]} : vector<2x128xf32> to vector<2x32xf32>
    %891 = arith.negf %890 : vector<2x32xf32>
    %892 = math.exp %891 : vector<2x32xf32>
    %cst_148 = arith.constant 1.000000e+00 : f32
    %893 = vector.broadcast %cst_148 : f32 to vector<2x32xf32>
    %894 = arith.addf %893, %892 : vector<2x32xf32>
    %895 = arith.divf %893, %894 : vector<2x32xf32>
    %896 = arith.mulf %887, %840 : vector<2x32xf32>
    %897 = arith.mulf %881, %889 : vector<2x32xf32>
    %898 = arith.addf %896, %897 : vector<2x32xf32>
    %899 = math.tanh %898 : vector<2x32xf32>
    %900 = arith.mulf %895, %899 : vector<2x32xf32>
    %901 = vector.extract_strided_slice %488 {offsets = [14, 0], sizes = [2, 128], strides = [1, 1]} : vector<16x256xf32> to vector<2x128xf32>
    %902 = arith.truncf %875 : vector<2x32xf32> to vector<2x32xbf16>
    %cst_149 = arith.constant dense<0.000000e+00> : vector<2x128xf32>
    %903 = tpu.matmul %902, %489, %cst_149 {dimension_numbers = #tpu.dot_dimension_numbers<[1], [0], [0], [1], [0, 0, 1, 1], [], []>} : vector<2x32xbf16>, vector<32x128xbf16>, vector<2x128xf32> -> vector<2x128xf32>
    %904 = arith.addf %901, %903 : vector<2x128xf32>
    %905 = vector.extract_strided_slice %488 {offsets = [0, 128], sizes = [2, 128], strides = [1, 1]} : vector<16x256xf32> to vector<2x128xf32>
    %906 = arith.truncf %900 : vector<2x32xf32> to vector<2x32xbf16>
    %cst_150 = arith.constant dense<0.000000e+00> : vector<2x128xf32>
    %907 = tpu.matmul %906, %490, %cst_150 {dimension_numbers = #tpu.dot_dimension_numbers<[1], [0], [0], [1], [0, 0, 1, 1], [], []>} : vector<2x32xbf16>, vector<32x128xbf16>, vector<2x128xf32> -> vector<2x128xf32>
    %908 = arith.addf %905, %907 : vector<2x128xf32>
    %909 = vector.extract_strided_slice %904 {offsets = [0, 0], sizes = [2, 32], strides = [1, 1]} : vector<2x128xf32> to vector<2x32xf32>
    %910 = arith.negf %909 : vector<2x32xf32>
    %911 = math.exp %910 : vector<2x32xf32>
    %cst_151 = arith.constant 1.000000e+00 : f32
    %912 = vector.broadcast %cst_151 : f32 to vector<2x32xf32>
    %913 = arith.addf %912, %911 : vector<2x32xf32>
    %914 = arith.divf %912, %913 : vector<2x32xf32>
    %915 = vector.extract_strided_slice %904 {offsets = [0, 32], sizes = [2, 32], strides = [1, 1]} : vector<2x128xf32> to vector<2x32xf32>
    %916 = arith.negf %915 : vector<2x32xf32>
    %917 = math.exp %916 : vector<2x32xf32>
    %cst_152 = arith.constant 1.000000e+00 : f32
    %918 = vector.broadcast %cst_152 : f32 to vector<2x32xf32>
    %919 = arith.addf %918, %917 : vector<2x32xf32>
    %920 = arith.divf %918, %919 : vector<2x32xf32>
    %921 = vector.extract_strided_slice %904 {offsets = [0, 64], sizes = [2, 32], strides = [1, 1]} : vector<2x128xf32> to vector<2x32xf32>
    %922 = math.tanh %921 : vector<2x32xf32>
    %923 = vector.extract_strided_slice %904 {offsets = [0, 96], sizes = [2, 32], strides = [1, 1]} : vector<2x128xf32> to vector<2x32xf32>
    %924 = arith.negf %923 : vector<2x32xf32>
    %925 = math.exp %924 : vector<2x32xf32>
    %cst_153 = arith.constant 1.000000e+00 : f32
    %926 = vector.broadcast %cst_153 : f32 to vector<2x32xf32>
    %927 = arith.addf %926, %925 : vector<2x32xf32>
    %928 = arith.divf %926, %927 : vector<2x32xf32>
    %929 = arith.mulf %920, %873 : vector<2x32xf32>
    %930 = arith.mulf %914, %922 : vector<2x32xf32>
    %931 = arith.addf %929, %930 : vector<2x32xf32>
    %932 = math.tanh %931 : vector<2x32xf32>
    %933 = arith.mulf %928, %932 : vector<2x32xf32>
    %934 = vector.extract_strided_slice %908 {offsets = [0, 0], sizes = [2, 32], strides = [1, 1]} : vector<2x128xf32> to vector<2x32xf32>
    %935 = arith.negf %934 : vector<2x32xf32>
    %936 = math.exp %935 : vector<2x32xf32>
    %cst_154 = arith.constant 1.000000e+00 : f32
    %937 = vector.broadcast %cst_154 : f32 to vector<2x32xf32>
    %938 = arith.addf %937, %936 : vector<2x32xf32>
    %939 = arith.divf %937, %938 : vector<2x32xf32>
    %940 = vector.extract_strided_slice %908 {offsets = [0, 32], sizes = [2, 32], strides = [1, 1]} : vector<2x128xf32> to vector<2x32xf32>
    %941 = arith.negf %940 : vector<2x32xf32>
    %942 = math.exp %941 : vector<2x32xf32>
    %cst_155 = arith.constant 1.000000e+00 : f32
    %943 = vector.broadcast %cst_155 : f32 to vector<2x32xf32>
    %944 = arith.addf %943, %942 : vector<2x32xf32>
    %945 = arith.divf %943, %944 : vector<2x32xf32>
    %946 = vector.extract_strided_slice %908 {offsets = [0, 64], sizes = [2, 32], strides = [1, 1]} : vector<2x128xf32> to vector<2x32xf32>
    %947 = math.tanh %946 : vector<2x32xf32>
    %948 = vector.extract_strided_slice %908 {offsets = [0, 96], sizes = [2, 32], strides = [1, 1]} : vector<2x128xf32> to vector<2x32xf32>
    %949 = arith.negf %948 : vector<2x32xf32>
    %950 = math.exp %949 : vector<2x32xf32>
    %cst_156 = arith.constant 1.000000e+00 : f32
    %951 = vector.broadcast %cst_156 : f32 to vector<2x32xf32>
    %952 = arith.addf %951, %950 : vector<2x32xf32>
    %953 = arith.divf %951, %952 : vector<2x32xf32>
    %954 = arith.mulf %945, %898 : vector<2x32xf32>
    %955 = arith.mulf %939, %947 : vector<2x32xf32>
    %956 = arith.addf %954, %955 : vector<2x32xf32>
    %957 = math.tanh %956 : vector<2x32xf32>
    %958 = arith.mulf %953, %957 : vector<2x32xf32>
    %959 = tpu.concatenate %527, %585, %643, %701, %759, %817, %875, %933 in 0 : vector<2x32xf32>, vector<2x32xf32>, vector<2x32xf32>, vector<2x32xf32>, vector<2x32xf32>, vector<2x32xf32>, vector<2x32xf32>, vector<2x32xf32> -> vector<16x32xf32>
    %960 = tpu.concatenate %958, %900, %842, %784, %726, %668, %610, %552 in 0 : vector<2x32xf32>, vector<2x32xf32>, vector<2x32xf32>, vector<2x32xf32>, vector<2x32xf32>, vector<2x32xf32>, vector<2x32xf32>, vector<2x32xf32> -> vector<16x32xf32>
    %961 = arith.truncf %959 : vector<16x32xf32> to vector<16x32xbf16>
    %c0_157 = arith.constant 0 : index
    %c0_158 = arith.constant 0 : index
    %962 = vector.load %arg10[%c0_157, %c0_158] : memref<32x64xbf16, #tpu.memory_space<vmem>>, vector<32x64xbf16>
    %cst_159 = arith.constant dense<0.000000e+00> : vector<16x64xf32>
    %963 = tpu.matmul %961, %962, %cst_159 {dimension_numbers = #tpu.dot_dimension_numbers<[1], [0], [0], [1], [0, 0, 1, 1], [], []>} : vector<16x32xbf16>, vector<32x64xbf16>, vector<16x64xf32> -> vector<16x64xf32>
    %964 = arith.truncf %960 : vector<16x32xf32> to vector<16x32xbf16>
    %c0_160 = arith.constant 0 : index
    %c0_161 = arith.constant 0 : index
    %965 = vector.load %arg11[%c0_160, %c0_161] : memref<32x64xbf16, #tpu.memory_space<vmem>>, vector<32x64xbf16>
    %cst_162 = arith.constant dense<0.000000e+00> : vector<16x64xf32>
    %966 = tpu.matmul %964, %965, %cst_162 {dimension_numbers = #tpu.dot_dimension_numbers<[1], [0], [0], [1], [0, 0, 1, 1], [], []>} : vector<16x32xbf16>, vector<32x64xbf16>, vector<16x64xf32> -> vector<16x64xf32>
    %967 = arith.addf %963, %966 : vector<16x64xf32>
    %c0_163 = arith.constant 0 : index
    %c0_164 = arith.constant 0 : index
    %968 = vector.load %arg12[%c0_163, %c0_164] : memref<1x64xf32, #tpu.memory_space<vmem>>, vector<1x64xf32>
    %969 = vector.broadcast %968 : vector<1x64xf32> to vector<16x64xf32>
    %970 = arith.addf %967, %969 : vector<16x64xf32>
    %cst_165 = arith.constant 0.000000e+00 : f32
    %971 = vector.broadcast %cst_165 : f32 to vector<16x64xf32>
    %972 = arith.maximumf %970, %971 : vector<16x64xf32>
    %c0_166 = arith.constant 0 : index
    %c0_167 = arith.constant 0 : index
    %973 = vector.load %arg13[%c0_166, %c0_167] : memref<1x64xf32, #tpu.memory_space<vmem>>, vector<1x64xf32>
    %974 = vector.broadcast %973 : vector<1x64xf32> to vector<16x64xf32>
    %975 = arith.mulf %972, %974 : vector<16x64xf32>
    %cst_168 = arith.constant dense<0.000000e+00> : vector<16xf32>
    %976 = vector.multi_reduction <add>, %975, %cst_168 [1] : vector<16x64xf32> to vector<16xf32>
    %977 = vector.shape_cast %976 : vector<16xf32> to vector<16x1xf32>
    %c0_169 = arith.constant 0 : index
    %c0_170 = arith.constant 0 : index
    %978 = vector.load %arg14[%c0_169, %c0_170] : memref<1x1xf32, #tpu.memory_space<vmem>>, vector<1x1xf32>
    %979 = vector.broadcast %978 : vector<1x1xf32> to vector<16x1xf32>
    %980 = arith.addf %977, %979 : vector<16x1xf32>
    %cst_171 = arith.constant dense<0xFF800000> : vector<1xf32>
    %981 = vector.multi_reduction <maximumf>, %980, %cst_171 [0] : vector<16x1xf32> to vector<1xf32>
    %982 = vector.shape_cast %981 : vector<1xf32> to vector<1x1xf32>
    %983 = vector.broadcast %982 : vector<1x1xf32> to vector<16x1xf32>
    %984 = arith.subf %980, %983 : vector<16x1xf32>
    %985 = math.exp %984 : vector<16x1xf32>
    %c0_172 = arith.constant 0 : index
    %c0_173 = arith.constant 0 : index
    %986 = vector.load %arg18[%c0_172, %c0_173] : memref<16x2xf32, #tpu.memory_space<vmem>>, vector<16x2xf32>
    %987 = vector.broadcast %985 : vector<16x1xf32> to vector<16x2xf32>
    %988 = arith.mulf %987, %986 : vector<16x2xf32>
    %cst_174 = arith.constant dense<0.000000e+00> : vector<2xf32>
    %989 = vector.multi_reduction <add>, %988, %cst_174 [0] : vector<16x2xf32> to vector<2xf32>
    %990 = vector.shape_cast %989 : vector<2xf32> to vector<1x2xf32>
    %991 = vector.broadcast %990 : vector<1x2xf32> to vector<16x2xf32>
    %992 = arith.mulf %986, %991 : vector<16x2xf32>
    %cst_175 = arith.constant dense<0.000000e+00> : vector<16xf32>
    %993 = vector.multi_reduction <add>, %992, %cst_175 [1] : vector<16x2xf32> to vector<16xf32>
    %994 = vector.shape_cast %993 : vector<16xf32> to vector<16x1xf32>
    %995 = tpu.reciprocal %994 {approx = true} : vector<16x1xf32> -> vector<16x1xf32>
    %996 = arith.mulf %985, %995 : vector<16x1xf32>
    %c0_176 = arith.constant 0 : index
    %c0_177 = arith.constant 0 : index
    %997 = vector.load %arg19[%c0_176, %c0_177] : memref<2x16xbf16, #tpu.memory_space<vmem>>, vector<2x16xbf16>
    %998 = vector.broadcast %996 : vector<16x1xf32> to vector<16x32xf32>
    %999 = arith.mulf %959, %998 : vector<16x32xf32>
    %1000 = arith.truncf %999 : vector<16x32xf32> to vector<16x32xbf16>
    %cst_178 = arith.constant dense<0.000000e+00> : vector<2x32xf32>
    %1001 = tpu.matmul %997, %1000, %cst_178 {dimension_numbers = #tpu.dot_dimension_numbers<[1], [0], [0], [1], [0, 0, 1, 1], [], []>} : vector<2x16xbf16>, vector<16x32xbf16>, vector<2x32xf32> -> vector<2x32xf32>
    %1002 = vector.broadcast %996 : vector<16x1xf32> to vector<16x32xf32>
    %1003 = arith.mulf %960, %1002 : vector<16x32xf32>
    %1004 = arith.truncf %1003 : vector<16x32xf32> to vector<16x32xbf16>
    %cst_179 = arith.constant dense<0.000000e+00> : vector<2x32xf32>
    %1005 = tpu.matmul %997, %1004, %cst_179 {dimension_numbers = #tpu.dot_dimension_numbers<[1], [0], [0], [1], [0, 0, 1, 1], [], []>} : vector<2x16xbf16>, vector<16x32xbf16>, vector<2x32xf32> -> vector<2x32xf32>
    %1006 = arith.truncf %1001 : vector<2x32xf32> to vector<2x32xbf16>
    %c0_180 = arith.constant 0 : index
    %c0_181 = arith.constant 0 : index
    %1007 = vector.load %arg15[%c0_180, %c0_181] : memref<32x4xbf16, #tpu.memory_space<vmem>>, vector<32x4xbf16>
    %cst_182 = arith.constant dense<0.000000e+00> : vector<2x4xf32>
    %1008 = tpu.matmul %1006, %1007, %cst_182 {dimension_numbers = #tpu.dot_dimension_numbers<[1], [0], [0], [1], [0, 0, 1, 1], [], []>} : vector<2x32xbf16>, vector<32x4xbf16>, vector<2x4xf32> -> vector<2x4xf32>
    %1009 = arith.truncf %1005 : vector<2x32xf32> to vector<2x32xbf16>
    %c0_183 = arith.constant 0 : index
    %c0_184 = arith.constant 0 : index
    %1010 = vector.load %arg16[%c0_183, %c0_184] : memref<32x4xbf16, #tpu.memory_space<vmem>>, vector<32x4xbf16>
    %cst_185 = arith.constant dense<0.000000e+00> : vector<2x4xf32>
    %1011 = tpu.matmul %1009, %1010, %cst_185 {dimension_numbers = #tpu.dot_dimension_numbers<[1], [0], [0], [1], [0, 0, 1, 1], [], []>} : vector<2x32xbf16>, vector<32x4xbf16>, vector<2x4xf32> -> vector<2x4xf32>
    %1012 = arith.addf %1008, %1011 : vector<2x4xf32>
    %c0_186 = arith.constant 0 : index
    %c0_187 = arith.constant 0 : index
    %1013 = vector.load %arg17[%c0_186, %c0_187] : memref<1x4xf32, #tpu.memory_space<vmem>>, vector<1x4xf32>
    %1014 = vector.broadcast %1013 : vector<1x4xf32> to vector<2x4xf32>
    %1015 = arith.addf %1012, %1014 : vector<2x4xf32>
    %c0_188 = arith.constant 0 : index
    %c0_189 = arith.constant 0 : index
    %1016 = vector.load %arg20[%c0_188, %c0_189] : memref<2x4xf32, #tpu.memory_space<vmem>>, vector<2x4xf32>
    tpu.vector_store %arg20[%c0_188, %c0_189], %1015 {strides = array<i32>} : memref<2x4xf32, #tpu.memory_space<vmem>>, vector<2x4xf32>,
    return
  }
}

</mosaic_0001>

<llo_original>
// kernel: tpu_custom_call.1
$region0: #{tpu_custom_call.1}
  #allocation0 [shape = 'u32[]', space=smem, size = 0x4, offset = 0x4, fixed_abs, tag = 'smem constant byte address 0x4 - core index']
  #allocation1 [shape = 'u32[72,128]{1,0:T(1,128)}', space=vmem, size = 0x9000, scoped, tag = 'internal scratch']
  #allocation2 [shape = 'f32[1,1]{1,0:T(1,128)S(1)}', space=vmem, size = 0x200, scoped, tag = 'scoped memory for tpu_custom_call.1']
  %s0 = inlined_call_operand.vmem [shape: f32[16,32], index: 0, kind: input, shape index: {}]
  %s1 = inlined_call_operand.vmem [shape: bf16[32,256], index: 1, kind: input, shape index: {}]
  %s2 = inlined_call_operand.vmem [shape: f32[1,256], index: 2, kind: input, shape index: {}]
  %s3 = inlined_call_operand.hbm [shape: bf16[32,128], index: 3, kind: input, shape index: {}]
  %s4 = inlined_call_operand.hbm [shape: bf16[32,128], index: 4, kind: input, shape index: {}]
  %s5 = inlined_call_operand.hbm [shape: bf16[32,256], index: 5, kind: input, shape index: {}]
  %s6 = inlined_call_operand.hbm [shape: bf16[32,256], index: 6, kind: input, shape index: {}]
  %s7 = inlined_call_operand.vmem [shape: f32[1,256], index: 7, kind: input, shape index: {}]
  %s8 = inlined_call_operand.hbm [shape: bf16[32,128], index: 8, kind: input, shape index: {}]
  %s9 = inlined_call_operand.hbm [shape: bf16[32,128], index: 9, kind: input, shape index: {}]
  %s10 = inlined_call_operand.hbm [shape: bf16[32,64], index: 10, kind: input, shape index: {}]
  %s11 = inlined_call_operand.hbm [shape: bf16[32,64], index: 11, kind: input, shape index: {}]
  %s12 = inlined_call_operand.vmem [shape: f32[1,64], index: 12, kind: input, shape index: {}]
  %s13 = inlined_call_operand.vmem [shape: f32[1,64], index: 13, kind: input, shape index: {}]
  %s14 = inlined_call_operand.<no memory space> [shape: f32[1,1], index: 14, kind: input, shape index: {}]
  %s15 = inlined_call_operand.vmem [shape: bf16[32,4], index: 15, kind: input, shape index: {}]
  %s16 = inlined_call_operand.vmem [shape: bf16[32,4], index: 16, kind: input, shape index: {}]
  %s17 = inlined_call_operand.vmem [shape: f32[1,4], index: 17, kind: input, shape index: {}]
  %s18 = inlined_call_operand.vmem [shape: f32[16,2], index: 18, kind: input, shape index: {}]
  %s19 = inlined_call_operand.vmem [shape: bf16[2,16], index: 19, kind: input, shape index: {}]
  %s20 = inlined_call_operand.hbm [shape: f32[2,4], index: 20, kind: output, shape index: {}]
  %s21 = sld [smem:[#allocation0]]
  $region122: #{tpu_custom_call.1} parent=0
    _
  %s23 = ssub.s32 1, %s21
  %s24 = scalar_select 0, %s23, %s21
  %v25 = vstv %s14
  %26 = vst [vmem:[#allocation2] sm:$0x1] %v25
  $region1: #{tpu_custom_call.1} parent=0
    #allocation3 [shape = 'u8[8192]{0}', space=vmem, size = 0x2000, scoped, tag = 'input window, operand 3, single buffered']
    #allocation4 [shape = 's32[1]{0}', space=sflag, size = 0x4, scoped, tag = 'scoped memory for tpu_custom_call.1']
    #allocation5 [shape = 's32[1]{0}', space=sflag, size = 0x4, scoped, tag = 'scoped memory for tpu_custom_call.1']
    #allocation6 [shape = 'u8[8192]{0}', space=vmem, size = 0x2000, scoped, tag = 'input window, operand 4, single buffered']
    #allocation7 [shape = 's32[1]{0}', space=sflag, size = 0x4, scoped, tag = 'scoped memory for tpu_custom_call.1']
    #allocation8 [shape = 'u8[16384]{0}', space=vmem, size = 0x4000, scoped, tag = 'input window, operand 5, single buffered']
    #allocation9 [shape = 'u8[16384]{0}', space=vmem, size = 0x4000, scoped, tag = 'input window, operand 6, single buffered']
    #allocation10 [shape = 's32[1]{0}', space=sflag, size = 0x4, scoped, tag = 'scoped memory for tpu_custom_call.1']
    #allocation11 [shape = 'u8[8192]{0}', space=vmem, size = 0x2000, scoped, tag = 'input window, operand 8, single buffered']
    #allocation12 [shape = 'u8[8192]{0}', space=vmem, size = 0x2000, scoped, tag = 'input window, operand 9, single buffered']
    #allocation13 [shape = 's32[1]{0}', space=sflag, size = 0x4, scoped, tag = 'scoped memory for tpu_custom_call.1']
    #allocation14 [shape = 'u8[8192]{0}', space=vmem, size = 0x2000, scoped, tag = 'input window, operand 10, single buffered']
    #allocation15 [shape = 'u8[8192]{0}', space=vmem, size = 0x2000, scoped, tag = 'input window, operand 11, single buffered']
    #allocation16 [shape = 's32[1]{0}', space=sflag, size = 0x4, scoped, tag = 'scoped memory for tpu_custom_call.1']
    #allocation17 [shape = 'u8[1024]{0}', space=vmem, size = 0x400, scoped, tag = 'output window, operand 0, single buffered']
    %27 = vsyncpa [#allocation4], 0
    %28 = vsyncpa [#allocation7], 0
    %29 = vsyncpa [#allocation10], 0
    %30 = vsyncpa [#allocation13], 0
    %31 = vsyncpa [#allocation16], 0
    %32 = vsyncpa [#allocation5], 0
    // Predicated region
    $region2: #{tpu_custom_call.1} parent=1 // pred_check
      _
    $region3: #{tpu_custom_call.1} parent=1 // pred_check_branch
      %34 = sbr.rel (0) target = $region5
    $region4: #{tpu_custom_call.1} parent=1 // pred_region
      _
    $region5: #{tpu_custom_call.1} parent=1 // pred_fallthru
      _
    // Predicated region
    $region6: #{tpu_custom_call.1} parent=1 // pred_check
      _
    $region7: #{tpu_custom_call.1} parent=1 // pred_check_branch
      %36 = sbr.rel (0) target = $region9
    $region8: #{tpu_custom_call.1} parent=1 // pred_region
      _
    $region9: #{tpu_custom_call.1} parent=1 // pred_fallthru
      _
    // Predicated region
    $region10: #{tpu_custom_call.1} parent=1 // pred_check
      _
    $region11: #{tpu_custom_call.1} parent=1 // pred_check_branch
      %38 = sbr.rel (0) target = $region13
    $region12: #{tpu_custom_call.1} parent=1 // pred_region
      _
    $region13: #{tpu_custom_call.1} parent=1 // pred_fallthru
      _
    // Predicated region
    $region14: #{tpu_custom_call.1} parent=1 // pred_check
      _
    $region15: #{tpu_custom_call.1} parent=1 // pred_check_branch
      %40 = sbr.rel (0) target = $region17
    $region16: #{tpu_custom_call.1} parent=1 // pred_region
      %42 = vsyncadd [#allocation4], 0
      %s43 = sshll.u32 %s3, 4
      %s44 = int_to_ptr.hbm [resolvable:$true] %s43
      %s45 = sshll.u32 [#allocation3], 4
      %s46 = int_to_ptr.vmem [resolvable:$true] %s45
      %51 = dma.hbm_to_vmem [thread:$0]  %s44, 256, %s46, [#allocation4], 64, 64, 4
    $region17: #{tpu_custom_call.1} parent=1 // pred_fallthru
      _
    // Predicated region
    $region18: #{tpu_custom_call.1} parent=1 // pred_check
      _
    $region19: #{tpu_custom_call.1} parent=1 // pred_check_branch
      %53 = sbr.rel (0) target = $region21
    $region20: #{tpu_custom_call.1} parent=1 // pred_region
      %55 = vsyncadd [#allocation7], 0
      %s56 = sshll.u32 %s4, 4
      %s57 = int_to_ptr.hbm [resolvable:$true] %s56
      %s58 = sshll.u32 [#allocation6], 4
      %s59 = int_to_ptr.vmem [resolvable:$true] %s58
      %64 = dma.hbm_to_vmem [thread:$0]  %s57, 256, %s59, [#allocation7], 64, 64, 4
    $region21: #{tpu_custom_call.1} parent=1 // pred_fallthru
      _
    // Predicated region
    $region22: #{tpu_custom_call.1} parent=1 // pred_check
      _
    $region23: #{tpu_custom_call.1} parent=1 // pred_check_branch
      %66 = sbr.rel (0) target = $region25
    $region24: #{tpu_custom_call.1} parent=1 // pred_region
      %68 = vsyncadd [#allocation7], 0
      %s69 = sshll.u32 %s5, 4
      %s70 = int_to_ptr.hbm [resolvable:$true] %s69
      %s71 = sshll.u32 [#allocation8], 4
      %s72 = int_to_ptr.vmem [resolvable:$true] %s71
      %77 = dma.hbm_to_vmem [thread:$0]  %s70, 512, %s72, [#allocation7], 128, 128, 8
    $region25: #{tpu_custom_call.1} parent=1 // pred_fallthru
      _
    // Predicated region
    $region26: #{tpu_custom_call.1} parent=1 // pred_check
      _
    $region27: #{tpu_custom_call.1} parent=1 // pred_check_branch
      %79 = sbr.rel (0) target = $region29
    $region28: #{tpu_custom_call.1} parent=1 // pred_region
      %81 = vsyncadd [#allocation10], 0
      %s82 = sshll.u32 %s6, 4
      %s83 = int_to_ptr.hbm [resolvable:$true] %s82
      %s84 = sshll.u32 [#allocation9], 4
      %s85 = int_to_ptr.vmem [resolvable:$true] %s84
      %90 = dma.hbm_to_vmem [thread:$0]  %s83, 512, %s85, [#allocation10], 128, 128, 8
    $region29: #{tpu_custom_call.1} parent=1 // pred_fallthru
      _
    // Predicated region
    $region30: #{tpu_custom_call.1} parent=1 // pred_check
      _
    $region31: #{tpu_custom_call.1} parent=1 // pred_check_branch
      %92 = sbr.rel (0) target = $region33
    $region32: #{tpu_custom_call.1} parent=1 // pred_region
      _
    $region33: #{tpu_custom_call.1} parent=1 // pred_fallthru
      _
    // Predicated region
    $region34: #{tpu_custom_call.1} parent=1 // pred_check
      _
    $region35: #{tpu_custom_call.1} parent=1 // pred_check_branch
      %94 = sbr.rel (0) target = $region37
    $region36: #{tpu_custom_call.1} parent=1 // pred_region
      %96 = vsyncadd [#allocation10], 0
      %s97 = sshll.u32 %s8, 4
      %s98 = int_to_ptr.hbm [resolvable:$true] %s97
      %s99 = sshll.u32 [#allocation11], 4
      %s100 = int_to_ptr.vmem [resolvable:$true] %s99
      %105 = dma.hbm_to_vmem [thread:$0]  %s98, 256, %s100, [#allocation10], 64, 64, 4
    $region37: #{tpu_custom_call.1} parent=1 // pred_fallthru
      _
    // Predicated region
    $region38: #{tpu_custom_call.1} parent=1 // pred_check
      _
    $region39: #{tpu_custom_call.1} parent=1 // pred_check_branch
      %107 = sbr.rel (0) target = $region41
    $region40: #{tpu_custom_call.1} parent=1 // pred_region
      %109 = vsyncadd [#allocation13], 0
      %s110 = sshll.u32 %s9, 4
      %s111 = int_to_ptr.hbm [resolvable:$true] %s110
      %s112 = sshll.u32 [#allocation12], 4
      %s113 = int_to_ptr.vmem [resolvable:$true] %s112
      %118 = dma.hbm_to_vmem [thread:$0]  %s111, 256, %s113, [#allocation13], 64, 64, 4
    $region41: #{tpu_custom_call.1} parent=1 // pred_fallthru
      _
    // Predicated region
    $region42: #{tpu_custom_call.1} parent=1 // pred_check
      _
    $region43: #{tpu_custom_call.1} parent=1 // pred_check_branch
      %120 = sbr.rel (0) target = $region45
    $region44: #{tpu_custom_call.1} parent=1 // pred_region
      %122 = vsyncadd [#allocation13], 0
      %s123 = sshll.u32 %s10, 4
      %s124 = int_to_ptr.hbm [resolvable:$true] %s123
      %s125 = sshll.u32 [#allocation14], 4
      %s126 = int_to_ptr.vmem [resolvable:$true] %s125
      %131 = dma.hbm_to_vmem [thread:$0]  %s124, 256, %s126, [#allocation13], 64, 64, 4
    $region45: #{tpu_custom_call.1} parent=1 // pred_fallthru
      _
    // Predicated region
    $region46: #{tpu_custom_call.1} parent=1 // pred_check
      _
    $region47: #{tpu_custom_call.1} parent=1 // pred_check_branch
      %133 = sbr.rel (0) target = $region49
    $region48: #{tpu_custom_call.1} parent=1 // pred_region
      %135 = vsyncadd [#allocation16], 0
      %s136 = sshll.u32 %s11, 4
      %s137 = int_to_ptr.hbm [resolvable:$true] %s136
      %s138 = sshll.u32 [#allocation15], 4
      %s139 = int_to_ptr.vmem [resolvable:$true] %s138
      %144 = dma.hbm_to_vmem [thread:$0]  %s137, 256, %s139, [#allocation16], 64, 64, 4
    $region49: #{tpu_custom_call.1} parent=1 // pred_fallthru
      _
    // Predicated region
    $region50: #{tpu_custom_call.1} parent=1 // pred_check
      _
    $region51: #{tpu_custom_call.1} parent=1 // pred_check_branch
      %146 = sbr.rel (0) target = $region53
    $region52: #{tpu_custom_call.1} parent=1 // pred_region
      _
    $region53: #{tpu_custom_call.1} parent=1 // pred_fallthru
      _
    // Predicated region
    $region54: #{tpu_custom_call.1} parent=1 // pred_check
      _
    $region55: #{tpu_custom_call.1} parent=1 // pred_check_branch
      %148 = sbr.rel (0) target = $region57
    $region56: #{tpu_custom_call.1} parent=1 // pred_region
      _
    $region57: #{tpu_custom_call.1} parent=1 // pred_fallthru
      _
    // Predicated region
    $region58: #{tpu_custom_call.1} parent=1 // pred_check
      _
    $region59: #{tpu_custom_call.1} parent=1 // pred_check_branch
      %150 = sbr.rel (0) target = $region61
    $region60: #{tpu_custom_call.1} parent=1 // pred_region
      _
    $region61: #{tpu_custom_call.1} parent=1 // pred_fallthru
      _
    // Predicated region
    $region62: #{tpu_custom_call.1} parent=1 // pred_check
      _
    $region63: #{tpu_custom_call.1} parent=1 // pred_check_branch
      %152 = sbr.rel (0) target = $region65
    $region64: #{tpu_custom_call.1} parent=1 // pred_region
      _
    $region65: #{tpu_custom_call.1} parent=1 // pred_fallthru
      _
    // Predicated region
    $region66: #{tpu_custom_call.1} parent=1 // pred_check
      _
    $region67: #{tpu_custom_call.1} parent=1 // pred_check_branch
      %154 = sbr.rel (0) target = $region69
    $region68: #{tpu_custom_call.1} parent=1 // pred_region
      _
    $region69: #{tpu_custom_call.1} parent=1 // pred_fallthru
      _
    // Predicated region
    $region70: #{tpu_custom_call.1} parent=1 // pred_check
      _
    $region71: #{tpu_custom_call.1} parent=1 // pred_check_branch
      %156 = sbr.rel (0) target = $region73
    $region72: #{tpu_custom_call.1} parent=1 // pred_region
      _
    $region73: #{tpu_custom_call.1} parent=1 // pred_fallthru
      _
    // Predicated region
    $region74: #{tpu_custom_call.1} parent=1 // pred_check
      _
    $region75: #{tpu_custom_call.1} parent=1 // pred_check_branch
      %158 = sbr.rel (0) target = $region77
    $region76: #{tpu_custom_call.1} parent=1 // pred_region
      _
    $region77: #{tpu_custom_call.1} parent=1 // pred_fallthru
      _
    // Predicated region
    $region78: #{tpu_custom_call.1} parent=1 // pred_check
      _
    $region79: #{tpu_custom_call.1} parent=1 // pred_check_branch
      %160 = sbr.rel (0) target = $region81
    $region80: #{tpu_custom_call.1} parent=1 // pred_region
      _
    $region81: #{tpu_custom_call.1} parent=1 // pred_fallthru
      _
    // Predicated region
    $region82: #{tpu_custom_call.1} parent=1 // pred_check
      _
    $region83: #{tpu_custom_call.1} parent=1 // pred_check_branch
      %162 = sbr.rel (0) target = $region85
    $region84: #{tpu_custom_call.1} parent=1 // pred_region
      %164 = dma.done [#allocation4], 256
    $region85: #{tpu_custom_call.1} parent=1 // pred_fallthru
      _
    // Predicated region
    $region86: #{tpu_custom_call.1} parent=1 // pred_check
      _
    $region87: #{tpu_custom_call.1} parent=1 // pred_check_branch
      %166 = sbr.rel (0) target = $region89
    $region88: #{tpu_custom_call.1} parent=1 // pred_region
      %168 = dma.done [#allocation7], 256
    $region89: #{tpu_custom_call.1} parent=1 // pred_fallthru
      _
    // Predicated region
    $region90: #{tpu_custom_call.1} parent=1 // pred_check
      _
    $region91: #{tpu_custom_call.1} parent=1 // pred_check_branch
      %170 = sbr.rel (0) target = $region93
    $region92: #{tpu_custom_call.1} parent=1 // pred_region
      %172 = dma.done [#allocation7], 512
    $region93: #{tpu_custom_call.1} parent=1 // pred_fallthru
      _
    // Predicated region
    $region94: #{tpu_custom_call.1} parent=1 // pred_check
      _
    $region95: #{tpu_custom_call.1} parent=1 // pred_check_branch
      %174 = sbr.rel (0) target = $region97
    $region96: #{tpu_custom_call.1} parent=1 // pred_region
      %176 = dma.done [#allocation10], 512
    $region97: #{tpu_custom_call.1} parent=1 // pred_fallthru
      _
    // Predicated region
    $region98: #{tpu_custom_call.1} parent=1 // pred_check
      _
    $region99: #{tpu_custom_call.1} parent=1 // pred_check_branch
      %178 = sbr.rel (0) target = $region101
    $region100: #{tpu_custom_call.1} parent=1 // pred_region
      %180 = dma.done [#allocation10], 256
    $region101: #{tpu_custom_call.1} parent=1 // pred_fallthru
      _
    // Predicated region
    $region102: #{tpu_custom_call.1} parent=1 // pred_check
      _
    $region103: #{tpu_custom_call.1} parent=1 // pred_check_branch
      %182 = sbr.rel (0) target = $region105
    $region104: #{tpu_custom_call.1} parent=1 // pred_region
      %184 = dma.done [#allocation13], 256
    $region105: #{tpu_custom_call.1} parent=1 // pred_fallthru
      _
    // Predicated region
    $region106: #{tpu_custom_call.1} parent=1 // pred_check
      _
    $region107: #{tpu_custom_call.1} parent=1 // pred_check_branch
      %186 = sbr.rel (0) target = $region109
    $region108: #{tpu_custom_call.1} parent=1 // pred_region
      %188 = dma.done [#allocation13], 256
    $region109: #{tpu_custom_call.1} parent=1 // pred_fallthru
      _
    // Predicated region
    $region110: #{tpu_custom_call.1} parent=1 // pred_check
      _
    $region111: #{tpu_custom_call.1} parent=1 // pred_check_branch
      %190 = sbr.rel (0) target = $region113
    $region112: #{tpu_custom_call.1} parent=1 // pred_region
      %192 = dma.done [#allocation16], 256
    $region113: #{tpu_custom_call.1} parent=1 // pred_fallthru
      _
    %v194 = vld [vmem:[%s0] sm:$0xff]
    %v195 = vld [vmem:[%s0 + $0x8] sm:$0xff]
    %v196 = vpack.c.bf16 %v195, %v194
    %v197 = vld [vmem:[%s1] sm:$0xff]
    %v198 = vld [vmem:[%s1 + $0x8] sm:$0xff]
    %v199 = vld [vmem:[%s1 + $0x10] sm:$0xff]
    %v200 = vld [vmem:[%s1 + $0x18] sm:$0xff]
    %v201 = vld [vmem:[%s2] sm:$0x3]
    %v203 = vperm.slane %v201, 0
    %v204 = vperm.slane %v201, 1
    %v211 = vunpack.c.l.b16 %v197
    %v212 = vunpack.c.h.b16 %v197
    %v213 = vunpack.c.l.b16 %v198
    %v214 = vunpack.c.h.b16 %v198
    %v215 = vunpack.c.l.b16 %v199
    %v216 = vunpack.c.h.b16 %v199
    %v217 = vunpack.c.l.b16 %v200
    %v218 = vunpack.c.h.b16 %v200
    %v219 = vpack.c.b16 %v213, %v211
    %v220 = vpack.c.b16 %v214, %v212
    %v221 = vpack.c.b16 %v217, %v215
    %v222 = vpack.c.b16 %v218, %v216
    %vm227 = vcmask 261120
    %v229 = vsel %vm227, %v196, 0
    %231 = vmatpush.bf16.msra.mxu0 0
    %232 = vmatpush.bf16.msra.mxu0 0
    %233 = vmatpush.bf16.msra.mxu0 0
    %234 = vmatpush.bf16.msra.mxu0 0
    %235 = vmatpush.bf16.msra.mxu0 0
    %236 = vmatpush.bf16.msra.mxu0 0
    %237 = vmatpush.bf16.msra.mxu0 %v221
    %238 = vmatpush.bf16.msra.mxu0 %v219
    %239 = vmatmul.bf16.gmra.mxu0 %v229
    %v240 = vpop.f32.mrf.mxu0
    %v241 = vadd.f32 %v203, %v240
    %v242 = vpop.f32.mrf.mxu0
    %v243 = vadd.f32 %v203, %v242
    %244 = vdwg.mxu0
    %245 = vmatpush.bf16.msra.mxu0 0
    %246 = vmatpush.bf16.msra.mxu0 0
    %247 = vmatpush.bf16.msra.mxu0 0
    %248 = vmatpush.bf16.msra.mxu0 0
    %249 = vmatpush.bf16.msra.mxu0 0
    %250 = vmatpush.bf16.msra.mxu0 0
    %251 = vmatpush.bf16.msra.mxu0 %v222
    %252 = vmatpush.bf16.msra.mxu0 %v220
    %253 = vmatmul.bf16.gmra.mxu0 %v229
    %v254 = vpop.f32.mrf.mxu0
    %v255 = vadd.f32 %v204, %v254
    %v256 = vpop.f32.mrf.mxu0
    %v257 = vadd.f32 %v204, %v256
    %258 = vdwg.mxu0
    %v259 = vld [vmem:[#allocation3] sm:$0xf]
    %v260 = vld [vmem:[#allocation3 + $0x4] sm:$0xf]
    %v261 = vld [vmem:[#allocation3 + $0x8] sm:$0xf]
    %v262 = vld [vmem:[#allocation3 + $0xc] sm:$0xf]
    %v263 = vld [vmem:[#allocation6] sm:$0xf]
    %v264 = vld [vmem:[#allocation6 + $0x4] sm:$0xf]
    %v265 = vld [vmem:[#allocation6 + $0x8] sm:$0xf]
    %v266 = vld [vmem:[#allocation6 + $0xc] sm:$0xf]
    %v271 = vunpack.c.l.b16 %v259
    %v272 = vunpack.c.l.b16 %v260
    %v273 = vunpack.c.l.b16 %v261
    %v274 = vunpack.c.l.b16 %v262
    %v275 = vpack.c.b16 %v272, %v271
    %v276 = vpack.c.b16 %v274, %v273
    %v280 = vsel %vm227, 0, 0
    %282 = vmatpush.bf16.msra.mxu0 0
    %283 = vmatpush.bf16.msra.mxu0 0
    %284 = vmatpush.bf16.msra.mxu0 0
    %285 = vmatpush.bf16.msra.mxu0 0
    %286 = vmatpush.bf16.msra.mxu0 0
    %287 = vmatpush.bf16.msra.mxu0 0
    %288 = vmatpush.bf16.msra.mxu0 %v276
    %289 = vmatpush.bf16.msra.mxu0 %v275
    %290 = vmatmul.bf16.gmra.mxu0 %v280
    %v291 = vpop.f32.mrf.mxu0
    %v292 = vadd.f32 0.0, %v291
    %v293 = vpop.f32.mrf.mxu0
    %294 = vdwg.mxu0
    %v295 = vadd.f32 %v241, %v292
    %v300 = vunpack.c.l.b16 %v263
    %v301 = vunpack.c.l.b16 %v264
    %v302 = vunpack.c.l.b16 %v265
    %v303 = vunpack.c.l.b16 %v266
    %v304 = vpack.c.b16 %v301, %v300
    %v305 = vpack.c.b16 %v303, %v302
    %308 = vmatpush.bf16.msra.mxu0 0
    %309 = vmatpush.bf16.msra.mxu0 0
    %310 = vmatpush.bf16.msra.mxu0 0
    %311 = vmatpush.bf16.msra.mxu0 0
    %312 = vmatpush.bf16.msra.mxu0 0
    %313 = vmatpush.bf16.msra.mxu0 0
    %314 = vmatpush.bf16.msra.mxu0 %v305
    %315 = vmatpush.bf16.msra.mxu0 %v304
    %316 = vmatmul.bf16.gmra.mxu0 %v280
    %v317 = vpop.f32.mrf.mxu0
    %v318 = vadd.f32 0.0, %v317
    %v319 = vpop.f32.mrf.mxu0
    %320 = vdwg.mxu0
    %v322 = vrot.slane %v318, 2
    %v324 = vadd.f32 %v257, %v322
    %v325 = vxor.u32 %v295, 2147483648
    %v326 = vmul.f32 %v325, 1.442695
    %v327 = vpow.pop %v326
    %v328 = vadd.f32 %v327, 1.0
    %v329 = vrcp.pop %v328
    %v330 = vmul.f32 %v328, %v329
    %v331 = vsub.f32 1.0, %v330
    %v332 = vmul.f32 %v329, %v331
    %v333 = vadd.f32 %v329, %v332
    %vm334 = vweird.f32 %v328
    %vm335 = vweird.f32 %v329
    %vm336 = vmor %vm334, %vm335
    %v337 = vsel %vm336, %v329, %v333
    %v338 = vand.u32 2147483647, %v328
    %vm339 = vcmp.eq.f32.partialorder %v338, 8.507059e+37
    %v340 = vand.u32 %v328, 2147483648
    %v341 = vor.u32 1.1754944e-38, %v340
    %v342 = vsel %vm339, %v341, %v337
    %v343 = vmul.f32 1.0, %v342
    %v344 = vtanh.pop %v295
    %v345 = vmul.f32 %v343, 0.0
    %347 = vrot.lane.b32.xlu0 %v344, 64
    %v348 = vpop.permute.xlu0 %347
    %v350 = vmul.f32 %v343, %v348
    %352 = vrot.lane.b32.xlu0 %v350, 32
    %v353 = vpop.permute.xlu0 %352
    %v355 = vadd.f32 %v345, %v353
    %v356 = vtanh.pop %v355
    %358 = vrot.lane.b32.xlu0 %v356, 64
    %v359 = vpop.permute.xlu0 %358
    %v361 = vmul.f32 %v343, %v359
    %v362 = vxor.u32 %v324, 2147483648
    %v363 = vmul.f32 %v362, 1.442695
    %v364 = vpow.pop %v363
    %v365 = vadd.f32 %v364, 1.0
    %v366 = vrcp.pop %v365
    %v367 = vmul.f32 %v365, %v366
    %v368 = vsub.f32 1.0, %v367
    %v369 = vmul.f32 %v366, %v368
    %v370 = vadd.f32 %v366, %v369
    %vm371 = vweird.f32 %v365
    %vm372 = vweird.f32 %v366
    %vm373 = vmor %vm371, %vm372
    %v374 = vsel %vm373, %v366, %v370
    %v375 = vand.u32 2147483647, %v365
    %vm376 = vcmp.eq.f32.partialorder %v375, 8.507059e+37
    %v377 = vand.u32 %v365, 2147483648
    %v378 = vor.u32 1.1754944e-38, %v377
    %v379 = vsel %vm376, %v378, %v374
    %v380 = vmul.f32 1.0, %v379
    %v381 = vtanh.pop %v324
    %v382 = vmul.f32 %v380, 0.0
    %384 = vrot.lane.b32.xlu0 %v381, 64
    %v385 = vpop.permute.xlu0 %384
    %v387 = vmul.f32 %v380, %v385
    %389 = vrot.lane.b32.xlu0 %v387, 32
    %v390 = vpop.permute.xlu0 %389
    %v392 = vadd.f32 %v382, %v390
    %v393 = vtanh.pop %v392
    %395 = vrot.lane.b32.xlu0 %v393, 64
    %v396 = vpop.permute.xlu0 %395
    %v398 = vmul.f32 %v380, %v396
    %v399 = vpack.c.bf16 %v361, %v361
    %401 = vrot.lane.b32.xlu0 %v399, 32
    %v402 = vpop.permute.xlu0 %401
    %v404 = vsel %vm227, %v402, 0
    %406 = vmatpush.bf16.msra.mxu0 0
    %407 = vmatpush.bf16.msra.mxu0 0
    %408 = vmatpush.bf16.msra.mxu0 0
    %409 = vmatpush.bf16.msra.mxu0 0
    %410 = vmatpush.bf16.msra.mxu0 0
    %411 = vmatpush.bf16.msra.mxu0 0
    %412 = vmatpush.bf16.msra.mxu0 %v276
    %413 = vmatpush.bf16.msra.mxu0 %v275
    %414 = vmatmul.bf16.gmra.mxu0 %v404
    %v415 = vpop.f32.mrf.mxu0
    %v416 = vadd.f32 0.0, %v415
    %v417 = vpop.f32.mrf.mxu0
    %418 = vdwg.mxu0
    %v420 = vrot.slane %v416, 6
    %v422 = vadd.f32 %v241, %v420
    %v423 = vpack.c.bf16 %v398, %v398
    %v425 = vrot.slane %v423, 3
    %426 = vrot.lane.b32.xlu0 %v425, 32
    %v427 = vpop.permute.xlu0 %426
    %v429 = vsel %vm227, %v427, 0
    %431 = vmatpush.bf16.msra.mxu0 0
    %432 = vmatpush.bf16.msra.mxu0 0
    %433 = vmatpush.bf16.msra.mxu0 0
    %434 = vmatpush.bf16.msra.mxu0 0
    %435 = vmatpush.bf16.msra.mxu0 0
    %436 = vmatpush.bf16.msra.mxu0 0
    %437 = vmatpush.bf16.msra.mxu0 %v305
    %438 = vmatpush.bf16.msra.mxu0 %v304
    %439 = vmatmul.bf16.gmra.mxu0 %v429
    %v440 = vpop.f32.mrf.mxu0
    %v441 = vadd.f32 0.0, %v440
    %v442 = vpop.f32.mrf.mxu0
    %443 = vdwg.mxu0
    %v445 = vrot.slane %v441, 4
    %v447 = vadd.f32 %v257, %v445
    %v448 = vxor.u32 %v422, 2147483648
    %v449 = vmul.f32 %v448, 1.442695
    %v450 = vpow.pop %v449
    %v451 = vadd.f32 %v450, 1.0
    %v452 = vrcp.pop %v451
    %v453 = vmul.f32 %v451, %v452
    %v454 = vsub.f32 1.0, %v453
    %v455 = vmul.f32 %v452, %v454
    %v456 = vadd.f32 %v452, %v455
    %vm457 = vweird.f32 %v451
    %vm458 = vweird.f32 %v452
    %vm459 = vmor %vm457, %vm458
    %v460 = vsel %vm459, %v452, %v456
    %v461 = vand.u32 2147483647, %v451
    %vm462 = vcmp.eq.f32.partialorder %v461, 8.507059e+37
    %v463 = vand.u32 %v451, 2147483648
    %v464 = vor.u32 1.1754944e-38, %v463
    %v465 = vsel %vm462, %v464, %v460
    %v466 = vmul.f32 1.0, %v465
    %v467 = vtanh.pop %v422
    %v469 = vrot.slane %v355, 6
    %v471 = vmul.f32 %v466, %v469
    %473 = vrot.lane.b32.xlu0 %v467, 64
    %v474 = vpop.permute.xlu0 %473
    %v476 = vmul.f32 %v466, %v474
    %478 = vrot.lane.b32.xlu0 %v476, 32
    %v479 = vpop.permute.xlu0 %478
    %v481 = vadd.f32 %v471, %v479
    %v482 = vtanh.pop %v481
    %484 = vrot.lane.b32.xlu0 %v482, 64
    %v485 = vpop.permute.xlu0 %484
    %v487 = vmul.f32 %v466, %v485
    %v488 = vxor.u32 %v447, 2147483648
    %v489 = vmul.f32 %v488, 1.442695
    %v490 = vpow.pop %v489
    %v491 = vadd.f32 %v490, 1.0
    %v492 = vrcp.pop %v491
    %v493 = vmul.f32 %v491, %v492
    %v494 = vsub.f32 1.0, %v493
    %v495 = vmul.f32 %v492, %v494
    %v496 = vadd.f32 %v492, %v495
    %vm497 = vweird.f32 %v491
    %vm498 = vweird.f32 %v492
    %vm499 = vmor %vm497, %vm498
    %v500 = vsel %vm499, %v492, %v496
    %v501 = vand.u32 2147483647, %v491
    %vm502 = vcmp.eq.f32.partialorder %v501, 8.507059e+37
    %v503 = vand.u32 %v491, 2147483648
    %v504 = vor.u32 1.1754944e-38, %v503
    %v505 = vsel %vm502, %v504, %v500
    %v506 = vmul.f32 1.0, %v505
    %v507 = vtanh.pop %v447
    %v509 = vrot.slane %v392, 2
    %v511 = vmul.f32 %v506, %v509
    %513 = vrot.lane.b32.xlu0 %v507, 64
    %v514 = vpop.permute.xlu0 %513
    %v516 = vmul.f32 %v506, %v514
    %518 = vrot.lane.b32.xlu0 %v516, 32
    %v519 = vpop.permute.xlu0 %518
    %v521 = vadd.f32 %v511, %v519
    %v522 = vtanh.pop %v521
    %524 = vrot.lane.b32.xlu0 %v522, 64
    %v525 = vpop.permute.xlu0 %524
    %v527 = vmul.f32 %v506, %v525
    %v528 = vpack.c.bf16 %v487, %v487
    %v530 = vrot.slane %v528, 1
    %531 = vrot.lane.b32.xlu0 %v530, 32
    %v532 = vpop.permute.xlu0 %531
    %v534 = vsel %vm227, %v532, 0
    %536 = vmatpush.bf16.msra.mxu0 0
    %537 = vmatpush.bf16.msra.mxu0 0
    %538 = vmatpush.bf16.msra.mxu0 0
    %539 = vmatpush.bf16.msra.mxu0 0
    %540 = vmatpush.bf16.msra.mxu0 0
    %541 = vmatpush.bf16.msra.mxu0 0
    %542 = vmatpush.bf16.msra.mxu0 %v276
    %543 = vmatpush.bf16.msra.mxu0 %v275
    %544 = vmatmul.bf16.gmra.mxu0 %v534
    %v545 = vpop.f32.mrf.mxu0
    %v546 = vadd.f32 0.0, %v545
    %v547 = vpop.f32.mrf.mxu0
    %548 = vdwg.mxu0
    %v550 = vrot.slane %v546, 4
    %v552 = vadd.f32 %v241, %v550
    %v553 = vpack.c.bf16 %v527, %v527
    %v555 = vrot.slane %v553, 2
    %556 = vrot.lane.b32.xlu0 %v555, 32
    %v557 = vpop.permute.xlu0 %556
    %v559 = vsel %vm227, %v557, 0
    %561 = vmatpush.bf16.msra.mxu0 0
    %562 = vmatpush.bf16.msra.mxu0 0
    %563 = vmatpush.bf16.msra.mxu0 0
    %564 = vmatpush.bf16.msra.mxu0 0
    %565 = vmatpush.bf16.msra.mxu0 0
    %566 = vmatpush.bf16.msra.mxu0 0
    %567 = vmatpush.bf16.msra.mxu0 %v305
    %568 = vmatpush.bf16.msra.mxu0 %v304
    %569 = vmatmul.bf16.gmra.mxu0 %v559
    %v570 = vpop.f32.mrf.mxu0
    %v571 = vadd.f32 0.0, %v570
    %v572 = vpop.f32.mrf.mxu0
    %573 = vdwg.mxu0
    %v575 = vrot.slane %v571, 6
    %v577 = vadd.f32 %v257, %v575
    %v578 = vxor.u32 %v552, 2147483648
    %v579 = vmul.f32 %v578, 1.442695
    %v580 = vpow.pop %v579
    %v581 = vadd.f32 %v580, 1.0
    %v582 = vrcp.pop %v581
    %v583 = vmul.f32 %v581, %v582
    %v584 = vsub.f32 1.0, %v583
    %v585 = vmul.f32 %v582, %v584
    %v586 = vadd.f32 %v582, %v585
    %vm587 = vweird.f32 %v581
    %vm588 = vweird.f32 %v582
    %vm589 = vmor %vm587, %vm588
    %v590 = vsel %vm589, %v582, %v586
    %v591 = vand.u32 2147483647, %v581
    %vm592 = vcmp.eq.f32.partialorder %v591, 8.507059e+37
    %v593 = vand.u32 %v581, 2147483648
    %v594 = vor.u32 1.1754944e-38, %v593
    %v595 = vsel %vm592, %v594, %v590
    %v596 = vmul.f32 1.0, %v595
    %v597 = vtanh.pop %v552
    %v599 = vrot.slane %v481, 6
    %v601 = vmul.f32 %v596, %v599
    %603 = vrot.lane.b32.xlu0 %v597, 64
    %v604 = vpop.permute.xlu0 %603
    %v606 = vmul.f32 %v596, %v604
    %608 = vrot.lane.b32.xlu0 %v606, 32
    %v609 = vpop.permute.xlu0 %608
    %v611 = vadd.f32 %v601, %v609
    %v612 = vtanh.pop %v611
    %614 = vrot.lane.b32.xlu0 %v612, 64
    %v615 = vpop.permute.xlu0 %614
    %v617 = vmul.f32 %v596, %v615
    %v618 = vxor.u32 %v577, 2147483648
    %v619 = vmul.f32 %v618, 1.442695
    %v620 = vpow.pop %v619
    %v621 = vadd.f32 %v620, 1.0
    %v622 = vrcp.pop %v621
    %v623 = vmul.f32 %v621, %v622
    %v624 = vsub.f32 1.0, %v623
    %v625 = vmul.f32 %v622, %v624
    %v626 = vadd.f32 %v622, %v625
    %vm627 = vweird.f32 %v621
    %vm628 = vweird.f32 %v622
    %vm629 = vmor %vm627, %vm628
    %v630 = vsel %vm629, %v622, %v626
    %v631 = vand.u32 2147483647, %v621
    %vm632 = vcmp.eq.f32.partialorder %v631, 8.507059e+37
    %v633 = vand.u32 %v621, 2147483648
    %v634 = vor.u32 1.1754944e-38, %v633
    %v635 = vsel %vm632, %v634, %v630
    %v636 = vmul.f32 1.0, %v635
    %v637 = vtanh.pop %v577
    %v639 = vrot.slane %v521, 2
    %v641 = vmul.f32 %v636, %v639
    %643 = vrot.lane.b32.xlu0 %v637, 64
    %v644 = vpop.permute.xlu0 %643
    %v646 = vmul.f32 %v636, %v644
    %648 = vrot.lane.b32.xlu0 %v646, 32
    %v649 = vpop.permute.xlu0 %648
    %v651 = vadd.f32 %v641, %v649
    %v652 = vtanh.pop %v651
    %654 = vrot.lane.b32.xlu0 %v652, 64
    %v655 = vpop.permute.xlu0 %654
    %v657 = vmul.f32 %v636, %v655
    %v658 = vpack.c.bf16 %v617, %v617
    %v660 = vrot.slane %v658, 2
    %661 = vrot.lane.b32.xlu0 %v660, 32
    %v662 = vpop.permute.xlu0 %661
    %v664 = vsel %vm227, %v662, 0
    %666 = vmatpush.bf16.msra.mxu0 0
    %667 = vmatpush.bf16.msra.mxu0 0
    %668 = vmatpush.bf16.msra.mxu0 0
    %669 = vmatpush.bf16.msra.mxu0 0
    %670 = vmatpush.bf16.msra.mxu0 0
    %671 = vmatpush.bf16.msra.mxu0 0
    %672 = vmatpush.bf16.msra.mxu0 %v276
    %673 = vmatpush.bf16.msra.mxu0 %v275
    %674 = vmatmul.bf16.gmra.mxu0 %v664
    %v675 = vpop.f32.mrf.mxu0
    %v676 = vadd.f32 0.0, %v675
    %v677 = vpop.f32.mrf.mxu0
    %678 = vdwg.mxu0
    %v680 = vrot.slane %v676, 2
    %v682 = vadd.f32 %v241, %v680
    %v683 = vpack.c.bf16 %v657, %v657
    %v685 = vrot.slane %v683, 1
    %686 = vrot.lane.b32.xlu0 %v685, 32
    %v687 = vpop.permute.xlu0 %686
    %v689 = vsel %vm227, %v687, 0
    %691 = vmatpush.bf16.msra.mxu0 0
    %692 = vmatpush.bf16.msra.mxu0 0
    %693 = vmatpush.bf16.msra.mxu0 0
    %694 = vmatpush.bf16.msra.mxu0 0
    %695 = vmatpush.bf16.msra.mxu0 0
    %696 = vmatpush.bf16.msra.mxu0 0
    %697 = vmatpush.bf16.msra.mxu0 %v305
    %698 = vmatpush.bf16.msra.mxu0 %v304
    %699 = vmatmul.bf16.gmra.mxu0 %v689
    %v700 = vpop.f32.mrf.mxu0
    %v701 = vadd.f32 0.0, %v700
    %v702 = vpop.f32.mrf.mxu0
    %703 = vdwg.mxu0
    %v704 = vadd.f32 %v257, %v701
    %v705 = vxor.u32 %v682, 2147483648
    %v706 = vmul.f32 %v705, 1.442695
    %v707 = vpow.pop %v706
    %v708 = vadd.f32 %v707, 1.0
    %v709 = vrcp.pop %v708
    %v710 = vmul.f32 %v708, %v709
    %v711 = vsub.f32 1.0, %v710
    %v712 = vmul.f32 %v709, %v711
    %v713 = vadd.f32 %v709, %v712
    %vm714 = vweird.f32 %v708
    %vm715 = vweird.f32 %v709
    %vm716 = vmor %vm714, %vm715
    %v717 = vsel %vm716, %v709, %v713
    %v718 = vand.u32 2147483647, %v708
    %vm719 = vcmp.eq.f32.partialorder %v718, 8.507059e+37
    %v720 = vand.u32 %v708, 2147483648
    %v721 = vor.u32 1.1754944e-38, %v720
    %v722 = vsel %vm719, %v721, %v717
    %v723 = vmul.f32 1.0, %v722
    %v724 = vtanh.pop %v682
    %v726 = vrot.slane %v611, 6
    %v728 = vmul.f32 %v723, %v726
    %730 = vrot.lane.b32.xlu0 %v724, 64
    %v731 = vpop.permute.xlu0 %730
    %v733 = vmul.f32 %v723, %v731
    %735 = vrot.lane.b32.xlu0 %v733, 32
    %v736 = vpop.permute.xlu0 %735
    %v738 = vadd.f32 %v728, %v736
    %v739 = vtanh.pop %v738
    %741 = vrot.lane.b32.xlu0 %v739, 64
    %v742 = vpop.permute.xlu0 %741
    %v744 = vmul.f32 %v723, %v742
    %v745 = vxor.u32 %v704, 2147483648
    %v746 = vmul.f32 %v745, 1.442695
    %v747 = vpow.pop %v746
    %v748 = vadd.f32 %v747, 1.0
    %v749 = vrcp.pop %v748
    %v750 = vmul.f32 %v748, %v749
    %v751 = vsub.f32 1.0, %v750
    %v752 = vmul.f32 %v749, %v751
    %v753 = vadd.f32 %v749, %v752
    %vm754 = vweird.f32 %v748
    %vm755 = vweird.f32 %v749
    %vm756 = vmor %vm754, %vm755
    %v757 = vsel %vm756, %v749, %v753
    %v758 = vand.u32 2147483647, %v748
    %vm759 = vcmp.eq.f32.partialorder %v758, 8.507059e+37
    %v760 = vand.u32 %v748, 2147483648
    %v761 = vor.u32 1.1754944e-38, %v760
    %v762 = vsel %vm759, %v761, %v757
    %v763 = vmul.f32 1.0, %v762
    %v764 = vtanh.pop %v704
    %v766 = vrot.slane %v651, 2
    %v768 = vmul.f32 %v763, %v766
    %770 = vrot.lane.b32.xlu0 %v764, 64
    %v771 = vpop.permute.xlu0 %770
    %v773 = vmul.f32 %v763, %v771
    %775 = vrot.lane.b32.xlu0 %v773, 32
    %v776 = vpop.permute.xlu0 %775
    %v778 = vadd.f32 %v768, %v776
    %v779 = vtanh.pop %v778
    %781 = vrot.lane.b32.xlu0 %v779, 64
    %v782 = vpop.permute.xlu0 %781
    %v784 = vmul.f32 %v763, %v782
    %v785 = vpack.c.bf16 %v744, %v744
    %v787 = vrot.slane %v785, 3
    %788 = vrot.lane.b32.xlu0 %v787, 32
    %v789 = vpop.permute.xlu0 %788
    %v791 = vsel %vm227, %v789, 0
    %793 = vmatpush.bf16.msra.mxu0 0
    %794 = vmatpush.bf16.msra.mxu0 0
    %795 = vmatpush.bf16.msra.mxu0 0
    %796 = vmatpush.bf16.msra.mxu0 0
    %797 = vmatpush.bf16.msra.mxu0 0
    %798 = vmatpush.bf16.msra.mxu0 0
    %799 = vmatpush.bf16.msra.mxu0 %v276
    %800 = vmatpush.bf16.msra.mxu0 %v275
    %801 = vmatmul.bf16.gmra.mxu0 %v791
    %v802 = vpop.f32.mrf.mxu0
    %v803 = vadd.f32 0.0, %v802
    %v804 = vpop.f32.mrf.mxu0
    %805 = vdwg.mxu0
    %v806 = vadd.f32 %v243, %v803
    %v807 = vpack.c.bf16 %v784, %v784
    %809 = vrot.lane.b32.xlu0 %v807, 32
    %v810 = vpop.permute.xlu0 %809
    %v812 = vsel %vm227, %v810, 0
    %814 = vmatpush.bf16.msra.mxu0 0
    %815 = vmatpush.bf16.msra.mxu0 0
    %816 = vmatpush.bf16.msra.mxu0 0
    %817 = vmatpush.bf16.msra.mxu0 0
    %818 = vmatpush.bf16.msra.mxu0 0
    %819 = vmatpush.bf16.msra.mxu0 0
    %820 = vmatpush.bf16.msra.mxu0 %v305
    %821 = vmatpush.bf16.msra.mxu0 %v304
    %822 = vmatmul.bf16.gmra.mxu0 %v812
    %v823 = vpop.f32.mrf.mxu0
    %v824 = vadd.f32 0.0, %v823
    %v825 = vpop.f32.mrf.mxu0
    %826 = vdwg.mxu0
    %v828 = vrot.slane %v824, 2
    %v830 = vadd.f32 %v255, %v828
    %v831 = vxor.u32 %v806, 2147483648
    %v832 = vmul.f32 %v831, 1.442695
    %v833 = vpow.pop %v832
    %v834 = vadd.f32 %v833, 1.0
    %v835 = vrcp.pop %v834
    %v836 = vmul.f32 %v834, %v835
    %v837 = vsub.f32 1.0, %v836
    %v838 = vmul.f32 %v835, %v837
    %v839 = vadd.f32 %v835, %v838
    %vm840 = vweird.f32 %v834
    %vm841 = vweird.f32 %v835
    %vm842 = vmor %vm840, %vm841
    %v843 = vsel %vm842, %v835, %v839
    %v844 = vand.u32 2147483647, %v834
    %vm845 = vcmp.eq.f32.partialorder %v844, 8.507059e+37
    %v846 = vand.u32 %v834, 2147483648
    %v847 = vor.u32 1.1754944e-38, %v846
    %v848 = vsel %vm845, %v847, %v843
    %v849 = vmul.f32 1.0, %v848
    %v850 = vtanh.pop %v806
    %v852 = vrot.slane %v738, 6
    %v854 = vmul.f32 %v849, %v852
    %856 = vrot.lane.b32.xlu0 %v850, 64
    %v857 = vpop.permute.xlu0 %856
    %v859 = vmul.f32 %v849, %v857
    %861 = vrot.lane.b32.xlu0 %v859, 32
    %v862 = vpop.permute.xlu0 %861
    %v864 = vadd.f32 %v854, %v862
    %v865 = vtanh.pop %v864
    %867 = vrot.lane.b32.xlu0 %v865, 64
    %v868 = vpop.permute.xlu0 %867
    %v870 = vmul.f32 %v849, %v868
    %v871 = vxor.u32 %v830, 2147483648
    %v872 = vmul.f32 %v871, 1.442695
    %v873 = vpow.pop %v872
    %v874 = vadd.f32 %v873, 1.0
    %v875 = vrcp.pop %v874
    %v876 = vmul.f32 %v874, %v875
    %v877 = vsub.f32 1.0, %v876
    %v878 = vmul.f32 %v875, %v877
    %v879 = vadd.f32 %v875, %v878
    %vm880 = vweird.f32 %v874
    %vm881 = vweird.f32 %v875
    %vm882 = vmor %vm880, %vm881
    %v883 = vsel %vm882, %v875, %v879
    %v884 = vand.u32 2147483647, %v874
    %vm885 = vcmp.eq.f32.partialorder %v884, 8.507059e+37
    %v886 = vand.u32 %v874, 2147483648
    %v887 = vor.u32 1.1754944e-38, %v886
    %v888 = vsel %vm885, %v887, %v883
    %v889 = vmul.f32 1.0, %v888
    %v890 = vtanh.pop %v830
    %v892 = vrot.slane %v778, 2
    %v894 = vmul.f32 %v889, %v892
    %896 = vrot.lane.b32.xlu0 %v890, 64
    %v897 = vpop.permute.xlu0 %896
    %v899 = vmul.f32 %v889, %v897
    %901 = vrot.lane.b32.xlu0 %v899, 32
    %v902 = vpop.permute.xlu0 %901
    %v904 = vadd.f32 %v894, %v902
    %v905 = vtanh.pop %v904
    %907 = vrot.lane.b32.xlu0 %v905, 64
    %v908 = vpop.permute.xlu0 %907
    %v910 = vmul.f32 %v889, %v908
    %v911 = vpack.c.bf16 %v870, %v870
    %913 = vrot.lane.b32.xlu0 %v911, 32
    %v914 = vpop.permute.xlu0 %913
    %v916 = vsel %vm227, %v914, 0
    %918 = vmatpush.bf16.msra.mxu0 0
    %919 = vmatpush.bf16.msra.mxu0 0
    %920 = vmatpush.bf16.msra.mxu0 0
    %921 = vmatpush.bf16.msra.mxu0 0
    %922 = vmatpush.bf16.msra.mxu0 0
    %923 = vmatpush.bf16.msra.mxu0 0
    %924 = vmatpush.bf16.msra.mxu0 %v276
    %925 = vmatpush.bf16.msra.mxu0 %v275
    %926 = vmatmul.bf16.gmra.mxu0 %v916
    %v927 = vpop.f32.mrf.mxu0
    %v928 = vadd.f32 0.0, %v927
    %v929 = vpop.f32.mrf.mxu0
    %930 = vdwg.mxu0
    %v932 = vrot.slane %v928, 6
    %v934 = vadd.f32 %v243, %v932
    %v935 = vpack.c.bf16 %v910, %v910
    %v937 = vrot.slane %v935, 3
    %938 = vrot.lane.b32.xlu0 %v937, 32
    %v939 = vpop.permute.xlu0 %938
    %v941 = vsel %vm227, %v939, 0
    %943 = vmatpush.bf16.msra.mxu0 0
    %944 = vmatpush.bf16.msra.mxu0 0
    %945 = vmatpush.bf16.msra.mxu0 0
    %946 = vmatpush.bf16.msra.mxu0 0
    %947 = vmatpush.bf16.msra.mxu0 0
    %948 = vmatpush.bf16.msra.mxu0 0
    %949 = vmatpush.bf16.msra.mxu0 %v305
    %950 = vmatpush.bf16.msra.mxu0 %v304
    %951 = vmatmul.bf16.gmra.mxu0 %v941
    %v952 = vpop.f32.mrf.mxu0
    %v953 = vadd.f32 0.0, %v952
    %v954 = vpop.f32.mrf.mxu0
    %955 = vdwg.mxu0
    %v957 = vrot.slane %v953, 4
    %v959 = vadd.f32 %v255, %v957
    %v960 = vxor.u32 %v934, 2147483648
    %v961 = vmul.f32 %v960, 1.442695
    %v962 = vpow.pop %v961
    %v963 = vadd.f32 %v962, 1.0
    %v964 = vrcp.pop %v963
    %v965 = vmul.f32 %v963, %v964
    %v966 = vsub.f32 1.0, %v965
    %v967 = vmul.f32 %v964, %v966
    %v968 = vadd.f32 %v964, %v967
    %vm969 = vweird.f32 %v963
    %vm970 = vweird.f32 %v964
    %vm971 = vmor %vm969, %vm970
    %v972 = vsel %vm971, %v964, %v968
    %v973 = vand.u32 2147483647, %v963
    %vm974 = vcmp.eq.f32.partialorder %v973, 8.507059e+37
    %v975 = vand.u32 %v963, 2147483648
    %v976 = vor.u32 1.1754944e-38, %v975
    %v977 = vsel %vm974, %v976, %v972
    %v978 = vmul.f32 1.0, %v977
    %v979 = vtanh.pop %v934
    %v981 = vrot.slane %v864, 6
    %v983 = vmul.f32 %v978, %v981
    %985 = vrot.lane.b32.xlu0 %v979, 64
    %v986 = vpop.permute.xlu0 %985
    %v988 = vmul.f32 %v978, %v986
    %990 = vrot.lane.b32.xlu0 %v988, 32
    %v991 = vpop.permute.xlu0 %990
    %v993 = vadd.f32 %v983, %v991
    %v994 = vtanh.pop %v993
    %996 = vrot.lane.b32.xlu0 %v994, 64
    %v997 = vpop.permute.xlu0 %996
    %v999 = vmul.f32 %v978, %v997
    %v1000 = vxor.u32 %v959, 2147483648
    %v1001 = vmul.f32 %v1000, 1.442695
    %v1002 = vpow.pop %v1001
    %v1003 = vadd.f32 %v1002, 1.0
    %v1004 = vrcp.pop %v1003
    %v1005 = vmul.f32 %v1003, %v1004
    %v1006 = vsub.f32 1.0, %v1005
    %v1007 = vmul.f32 %v1004, %v1006
    %v1008 = vadd.f32 %v1004, %v1007
    %vm1009 = vweird.f32 %v1003
    %vm1010 = vweird.f32 %v1004
    %vm1011 = vmor %vm1009, %vm1010
    %v1012 = vsel %vm1011, %v1004, %v1008
    %v1013 = vand.u32 2147483647, %v1003
    %vm1014 = vcmp.eq.f32.partialorder %v1013, 8.507059e+37
    %v1015 = vand.u32 %v1003, 2147483648
    %v1016 = vor.u32 1.1754944e-38, %v1015
    %v1017 = vsel %vm1014, %v1016, %v1012
    %v1018 = vmul.f32 1.0, %v1017
    %v1019 = vtanh.pop %v959
    %v1021 = vrot.slane %v904, 2
    %v1023 = vmul.f32 %v1018, %v1021
    %1025 = vrot.lane.b32.xlu0 %v1019, 64
    %v1026 = vpop.permute.xlu0 %1025
    %v1028 = vmul.f32 %v1018, %v1026
    %1030 = vrot.lane.b32.xlu0 %v1028, 32
    %v1031 = vpop.permute.xlu0 %1030
    %v1033 = vadd.f32 %v1023, %v1031
    %v1034 = vtanh.pop %v1033
    %1036 = vrot.lane.b32.xlu0 %v1034, 64
    %v1037 = vpop.permute.xlu0 %1036
    %v1039 = vmul.f32 %v1018, %v1037
    %v1040 = vpack.c.bf16 %v999, %v999
    %v1042 = vrot.slane %v1040, 1
    %1043 = vrot.lane.b32.xlu0 %v1042, 32
    %v1044 = vpop.permute.xlu0 %1043
    %v1046 = vsel %vm227, %v1044, 0
    %1048 = vmatpush.bf16.msra.mxu0 0
    %1049 = vmatpush.bf16.msra.mxu0 0
    %1050 = vmatpush.bf16.msra.mxu0 0
    %1051 = vmatpush.bf16.msra.mxu0 0
    %1052 = vmatpush.bf16.msra.mxu0 0
    %1053 = vmatpush.bf16.msra.mxu0 0
    %1054 = vmatpush.bf16.msra.mxu0 %v276
    %1055 = vmatpush.bf16.msra.mxu0 %v275
    %1056 = vmatmul.bf16.gmra.mxu0 %v1046
    %v1057 = vpop.f32.mrf.mxu0
    %v1058 = vadd.f32 0.0, %v1057
    %v1059 = vpop.f32.mrf.mxu0
    %1060 = vdwg.mxu0
    %v1062 = vrot.slane %v1058, 4
    %v1064 = vadd.f32 %v243, %v1062
    %v1065 = vpack.c.bf16 %v1039, %v1039
    %v1067 = vrot.slane %v1065, 2
    %1068 = vrot.lane.b32.xlu0 %v1067, 32
    %v1069 = vpop.permute.xlu0 %1068
    %v1071 = vsel %vm227, %v1069, 0
    %1073 = vmatpush.bf16.msra.mxu0 0
    %1074 = vmatpush.bf16.msra.mxu0 0
    %1075 = vmatpush.bf16.msra.mxu0 0
    %1076 = vmatpush.bf16.msra.mxu0 0
    %1077 = vmatpush.bf16.msra.mxu0 0
    %1078 = vmatpush.bf16.msra.mxu0 0
    %1079 = vmatpush.bf16.msra.mxu0 %v305
    %1080 = vmatpush.bf16.msra.mxu0 %v304
    %1081 = vmatmul.bf16.gmra.mxu0 %v1071
    %v1082 = vpop.f32.mrf.mxu0
    %v1083 = vadd.f32 0.0, %v1082
    %v1084 = vpop.f32.mrf.mxu0
    %1085 = vdwg.mxu0
    %v1087 = vrot.slane %v1083, 6
    %v1089 = vadd.f32 %v255, %v1087
    %v1090 = vxor.u32 %v1064, 2147483648
    %v1091 = vmul.f32 %v1090, 1.442695
    %v1092 = vpow.pop %v1091
    %v1093 = vadd.f32 %v1092, 1.0
    %v1094 = vrcp.pop %v1093
    %v1095 = vmul.f32 %v1093, %v1094
    %v1096 = vsub.f32 1.0, %v1095
    %v1097 = vmul.f32 %v1094, %v1096
    %v1098 = vadd.f32 %v1094, %v1097
    %vm1099 = vweird.f32 %v1093
    %vm1100 = vweird.f32 %v1094
    %vm1101 = vmor %vm1099, %vm1100
    %v1102 = vsel %vm1101, %v1094, %v1098
    %v1103 = vand.u32 2147483647, %v1093
    %vm1104 = vcmp.eq.f32.partialorder %v1103, 8.507059e+37
    %v1105 = vand.u32 %v1093, 2147483648
    %v1106 = vor.u32 1.1754944e-38, %v1105
    %v1107 = vsel %vm1104, %v1106, %v1102
    %v1108 = vmul.f32 1.0, %v1107
    %v1109 = vtanh.pop %v1064
    %v1111 = vrot.slane %v993, 6
    %v1113 = vmul.f32 %v1108, %v1111
    %1115 = vrot.lane.b32.xlu0 %v1109, 64
    %v1116 = vpop.permute.xlu0 %1115
    %v1118 = vmul.f32 %v1108, %v1116
    %1120 = vrot.lane.b32.xlu0 %v1118, 32
    %v1121 = vpop.permute.xlu0 %1120
    %v1123 = vadd.f32 %v1113, %v1121
    %v1124 = vtanh.pop %v1123
    %1126 = vrot.lane.b32.xlu0 %v1124, 64
    %v1127 = vpop.permute.xlu0 %1126
    %v1129 = vmul.f32 %v1108, %v1127
    %v1130 = vxor.u32 %v1089, 2147483648
    %v1131 = vmul.f32 %v1130, 1.442695
    %v1132 = vpow.pop %v1131
    %v1133 = vadd.f32 %v1132, 1.0
    %v1134 = vrcp.pop %v1133
    %v1135 = vmul.f32 %v1133, %v1134
    %v1136 = vsub.f32 1.0, %v1135
    %v1137 = vmul.f32 %v1134, %v1136
    %v1138 = vadd.f32 %v1134, %v1137
    %vm1139 = vweird.f32 %v1133
    %vm1140 = vweird.f32 %v1134
    %vm1141 = vmor %vm1139, %vm1140
    %v1142 = vsel %vm1141, %v1134, %v1138
    %v1143 = vand.u32 2147483647, %v1133
    %vm1144 = vcmp.eq.f32.partialorder %v1143, 8.507059e+37
    %v1145 = vand.u32 %v1133, 2147483648
    %v1146 = vor.u32 1.1754944e-38, %v1145
    %v1147 = vsel %vm1144, %v1146, %v1142
    %v1148 = vmul.f32 1.0, %v1147
    %v1149 = vtanh.pop %v1089
    %v1151 = vrot.slane %v1033, 2
    %v1153 = vmul.f32 %v1148, %v1151
    %1155 = vrot.lane.b32.xlu0 %v1149, 64
    %v1156 = vpop.permute.xlu0 %1155
    %v1158 = vmul.f32 %v1148, %v1156
    %1160 = vrot.lane.b32.xlu0 %v1158, 32
    %v1161 = vpop.permute.xlu0 %1160
    %v1163 = vadd.f32 %v1153, %v1161
    %v1164 = vtanh.pop %v1163
    %1166 = vrot.lane.b32.xlu0 %v1164, 64
    %v1167 = vpop.permute.xlu0 %1166
    %v1169 = vmul.f32 %v1148, %v1167
    %v1170 = vpack.c.bf16 %v1129, %v1129
    %v1172 = vrot.slane %v1170, 2
    %1173 = vrot.lane.b32.xlu0 %v1172, 32
    %v1174 = vpop.permute.xlu0 %1173
    %v1176 = vsel %vm227, %v1174, 0
    %1178 = vmatpush.bf16.msra.mxu0 0
    %1179 = vmatpush.bf16.msra.mxu0 0
    %1180 = vmatpush.bf16.msra.mxu0 0
    %1181 = vmatpush.bf16.msra.mxu0 0
    %1182 = vmatpush.bf16.msra.mxu0 0
    %1183 = vmatpush.bf16.msra.mxu0 0
    %1184 = vmatpush.bf16.msra.mxu0 %v276
    %1185 = vmatpush.bf16.msra.mxu0 %v275
    %1186 = vmatmul.bf16.gmra.mxu0 %v1176
    %v1187 = vpop.f32.mrf.mxu0
    %v1188 = vadd.f32 0.0, %v1187
    %v1189 = vpop.f32.mrf.mxu0
    %1190 = vdwg.mxu0
    %v1192 = vrot.slane %v1188, 2
    %v1194 = vadd.f32 %v243, %v1192
    %v1195 = vpack.c.bf16 %v1169, %v1169
    %v1197 = vrot.slane %v1195, 1
    %1198 = vrot.lane.b32.xlu0 %v1197, 32
    %v1199 = vpop.permute.xlu0 %1198
    %v1201 = vsel %vm227, %v1199, 0
    %1203 = vmatpush.bf16.msra.mxu0 0
    %1204 = vmatpush.bf16.msra.mxu0 0
    %1205 = vmatpush.bf16.msra.mxu0 0
    %1206 = vmatpush.bf16.msra.mxu0 0
    %1207 = vmatpush.bf16.msra.mxu0 0
    %1208 = vmatpush.bf16.msra.mxu0 0
    %1209 = vmatpush.bf16.msra.mxu0 %v305
    %1210 = vmatpush.bf16.msra.mxu0 %v304
    %1211 = vmatmul.bf16.gmra.mxu0 %v1201
    %v1212 = vpop.f32.mrf.mxu0
    %v1213 = vadd.f32 0.0, %v1212
    %v1214 = vpop.f32.mrf.mxu0
    %1215 = vdwg.mxu0
    %v1216 = vadd.f32 %v255, %v1213
    %v1217 = vxor.u32 %v1194, 2147483648
    %v1218 = vmul.f32 %v1217, 1.442695
    %v1219 = vpow.pop %v1218
    %v1220 = vadd.f32 %v1219, 1.0
    %v1221 = vrcp.pop %v1220
    %v1222 = vmul.f32 %v1220, %v1221
    %v1223 = vsub.f32 1.0, %v1222
    %v1224 = vmul.f32 %v1221, %v1223
    %v1225 = vadd.f32 %v1221, %v1224
    %vm1226 = vweird.f32 %v1220
    %vm1227 = vweird.f32 %v1221
    %vm1228 = vmor %vm1226, %vm1227
    %v1229 = vsel %vm1228, %v1221, %v1225
    %v1230 = vand.u32 2147483647, %v1220
    %vm1231 = vcmp.eq.f32.partialorder %v1230, 8.507059e+37
    %v1232 = vand.u32 %v1220, 2147483648
    %v1233 = vor.u32 1.1754944e-38, %v1232
    %v1234 = vsel %vm1231, %v1233, %v1229
    %v1235 = vmul.f32 1.0, %v1234
    %v1236 = vtanh.pop %v1194
    %v1238 = vrot.slane %v1123, 6
    %v1240 = vmul.f32 %v1235, %v1238
    %1242 = vrot.lane.b32.xlu0 %v1236, 64
    %v1243 = vpop.permute.xlu0 %1242
    %v1245 = vmul.f32 %v1235, %v1243
    %1247 = vrot.lane.b32.xlu0 %v1245, 32
    %v1248 = vpop.permute.xlu0 %1247
    %v1250 = vadd.f32 %v1240, %v1248
    %v1251 = vtanh.pop %v1250
    %1253 = vrot.lane.b32.xlu0 %v1251, 64
    %v1254 = vpop.permute.xlu0 %1253
    %v1256 = vmul.f32 %v1235, %v1254
    %v1257 = vxor.u32 %v1216, 2147483648
    %v1258 = vmul.f32 %v1257, 1.442695
    %v1259 = vpow.pop %v1258
    %v1260 = vadd.f32 %v1259, 1.0
    %v1261 = vrcp.pop %v1260
    %v1262 = vmul.f32 %v1260, %v1261
    %v1263 = vsub.f32 1.0, %v1262
    %v1264 = vmul.f32 %v1261, %v1263
    %v1265 = vadd.f32 %v1261, %v1264
    %vm1266 = vweird.f32 %v1260
    %vm1267 = vweird.f32 %v1261
    %vm1268 = vmor %vm1266, %vm1267
    %v1269 = vsel %vm1268, %v1261, %v1265
    %v1270 = vand.u32 2147483647, %v1260
    %vm1271 = vcmp.eq.f32.partialorder %v1270, 8.507059e+37
    %v1272 = vand.u32 %v1260, 2147483648
    %v1273 = vor.u32 1.1754944e-38, %v1272
    %v1274 = vsel %vm1271, %v1273, %v1269
    %v1275 = vmul.f32 1.0, %v1274
    %v1276 = vtanh.pop %v1216
    %v1278 = vrot.slane %v1163, 2
    %v1280 = vmul.f32 %v1275, %v1278
    %1282 = vrot.lane.b32.xlu0 %v1276, 64
    %v1283 = vpop.permute.xlu0 %1282
    %v1285 = vmul.f32 %v1275, %v1283
    %1287 = vrot.lane.b32.xlu0 %v1285, 32
    %v1288 = vpop.permute.xlu0 %1287
    %v1290 = vadd.f32 %v1280, %v1288
    %v1291 = vtanh.pop %v1290
    %1293 = vrot.lane.b32.xlu0 %v1291, 64
    %v1294 = vpop.permute.xlu0 %1293
    %v1296 = vmul.f32 %v1275, %v1294
    %vm1297 = vcmask 1041408
    %v1298 = vsel %vm1297, %v361, %v487
    %vm1299 = vcmask 1043456
    %v1300 = vsel %vm1299, %v1298, %v617
    %vm1301 = vcmask 1045504
    %v1302 = vsel %vm1301, %v1300, %v744
    %v1303 = vsel %vm1297, %v870, %v999
    %v1304 = vsel %vm1299, %v1303, %v1129
    %v1305 = vsel %vm1301, %v1304, %v1256
    %v1306 = vsel %vm1297, %v1296, %v1169
    %v1307 = vsel %vm1299, %v1306, %v1039
    %v1308 = vsel %vm1301, %v1307, %v910
    %v1309 = vsel %vm1297, %v784, %v657
    %v1310 = vsel %vm1299, %v1309, %v527
    %v1311 = vsel %vm1301, %v1310, %v398
    %v1312 = vpack.c.bf16 %v1305, %v1302
    %v1313 = vld [vmem:[#allocation8] sm:$0xff]
    %v1314 = vld [vmem:[#allocation8 + $0x8] sm:$0xff]
    %v1315 = vld [vmem:[#allocation8 + $0x10] sm:$0xff]
    %v1316 = vld [vmem:[#allocation8 + $0x18] sm:$0xff]
    %v1317 = vpack.c.bf16 %v1311, %v1308
    %v1318 = vld [vmem:[#allocation9] sm:$0xff]
    %v1319 = vld [vmem:[#allocation9 + $0x8] sm:$0xff]
    %v1320 = vld [vmem:[#allocation9 + $0x10] sm:$0xff]
    %v1321 = vld [vmem:[#allocation9 + $0x18] sm:$0xff]
    %1323 = vrot.lane.b32.xlu0 %v1317, 32
    %v1324 = vpop.permute.xlu0 %1323
    %v1329 = vunpack.c.l.b16 %v1318
    %v1330 = vunpack.c.h.b16 %v1318
    %v1331 = vunpack.c.l.b16 %v1319
    %v1332 = vunpack.c.h.b16 %v1319
    %v1333 = vunpack.c.l.b16 %v1320
    %v1334 = vunpack.c.h.b16 %v1320
    %v1335 = vunpack.c.l.b16 %v1321
    %v1336 = vunpack.c.h.b16 %v1321
    %v1337 = vpack.c.b16 %v1331, %v1329
    %v1338 = vpack.c.b16 %v1332, %v1330
    %v1339 = vpack.c.b16 %v1335, %v1333
    %v1340 = vpack.c.b16 %v1336, %v1334
    %v1346 = vsel %vm227, %v1324, 0
    %1348 = vmatpush.bf16.msra.mxu0 0
    %1349 = vmatpush.bf16.msra.mxu0 0
    %1350 = vmatpush.bf16.msra.mxu0 0
    %1351 = vmatpush.bf16.msra.mxu0 0
    %1352 = vmatpush.bf16.msra.mxu0 0
    %1353 = vmatpush.bf16.msra.mxu0 0
    %1354 = vmatpush.bf16.msra.mxu0 %v1339
    %1355 = vmatpush.bf16.msra.mxu0 %v1337
    %1356 = vmatmul.bf16.gmra.mxu0 %v1346
    %v1357 = vpop.f32.mrf.mxu0
    %v1358 = vadd.f32 0.0, %v1357
    %v1359 = vpop.f32.mrf.mxu0
    %v1360 = vadd.f32 0.0, %v1359
    %1361 = vdwg.mxu0
    %1362 = vmatpush.bf16.msra.mxu0 0
    %1363 = vmatpush.bf16.msra.mxu0 0
    %1364 = vmatpush.bf16.msra.mxu0 0
    %1365 = vmatpush.bf16.msra.mxu0 0
    %1366 = vmatpush.bf16.msra.mxu0 0
    %1367 = vmatpush.bf16.msra.mxu0 0
    %1368 = vmatpush.bf16.msra.mxu0 %v1340
    %1369 = vmatpush.bf16.msra.mxu0 %v1338
    %1370 = vmatmul.bf16.gmra.mxu0 %v1346
    %v1371 = vpop.f32.mrf.mxu0
    %v1372 = vadd.f32 0.0, %v1371
    %v1373 = vpop.f32.mrf.mxu0
    %v1374 = vadd.f32 0.0, %v1373
    %1375 = vdwg.mxu0
    %1377 = vrot.lane.b32.xlu0 %v1312, 32
    %v1378 = vpop.permute.xlu0 %1377
    %v1383 = vunpack.c.l.b16 %v1313
    %v1384 = vunpack.c.h.b16 %v1313
    %v1385 = vunpack.c.l.b16 %v1314
    %v1386 = vunpack.c.h.b16 %v1314
    %v1387 = vunpack.c.l.b16 %v1315
    %v1388 = vunpack.c.h.b16 %v1315
    %v1389 = vunpack.c.l.b16 %v1316
    %v1390 = vunpack.c.h.b16 %v1316
    %v1391 = vpack.c.b16 %v1385, %v1383
    %v1392 = vpack.c.b16 %v1386, %v1384
    %v1393 = vpack.c.b16 %v1389, %v1387
    %v1394 = vpack.c.b16 %v1390, %v1388
    %v1400 = vsel %vm227, %v1378, 0
    %1402 = vmatpush.bf16.msra.mxu0 0
    %1403 = vmatpush.bf16.msra.mxu0 0
    %1404 = vmatpush.bf16.msra.mxu0 0
    %1405 = vmatpush.bf16.msra.mxu0 0
    %1406 = vmatpush.bf16.msra.mxu0 0
    %1407 = vmatpush.bf16.msra.mxu0 0
    %1408 = vmatpush.bf16.msra.mxu0 %v1393
    %1409 = vmatpush.bf16.msra.mxu0 %v1391
    %1410 = vmatmul.bf16.gmra.mxu0 %v1400
    %v1411 = vpop.f32.mrf.mxu0
    %v1412 = vadd.f32 %v1358, %v1411
    %v1413 = vpop.f32.mrf.mxu0
    %v1414 = vadd.f32 %v1360, %v1413
    %1415 = vdwg.mxu0
    %1416 = vmatpush.bf16.msra.mxu0 0
    %1417 = vmatpush.bf16.msra.mxu0 0
    %1418 = vmatpush.bf16.msra.mxu0 0
    %1419 = vmatpush.bf16.msra.mxu0 0
    %1420 = vmatpush.bf16.msra.mxu0 0
    %1421 = vmatpush.bf16.msra.mxu0 0
    %1422 = vmatpush.bf16.msra.mxu0 %v1394
    %1423 = vmatpush.bf16.msra.mxu0 %v1392
    %1424 = vmatmul.bf16.gmra.mxu0 %v1400
    %v1425 = vpop.f32.mrf.mxu0
    %v1426 = vadd.f32 %v1372, %v1425
    %v1427 = vpop.f32.mrf.mxu0
    %v1428 = vadd.f32 %v1374, %v1427
    %1429 = vdwg.mxu0
    %v1430 = vld [vmem:[%s7] sm:$0x3]
    %v1432 = vperm.slane %v1430, 0
    %v1433 = vperm.slane %v1430, 1
    %v1436 = vadd.f32 %v1412, %v1432
    %v1437 = vadd.f32 %v1426, %v1433
    %v1438 = vadd.f32 %v1414, %v1432
    %v1439 = vadd.f32 %v1428, %v1433
    %v1440 = vld [vmem:[#allocation11] sm:$0xf]
    %v1441 = vld [vmem:[#allocation11 + $0x4] sm:$0xf]
    %v1442 = vld [vmem:[#allocation11 + $0x8] sm:$0xf]
    %v1443 = vld [vmem:[#allocation11 + $0xc] sm:$0xf]
    %v1444 = vld [vmem:[#allocation12] sm:$0xf]
    %v1445 = vld [vmem:[#allocation12 + $0x4] sm:$0xf]
    %v1446 = vld [vmem:[#allocation12 + $0x8] sm:$0xf]
    %v1447 = vld [vmem:[#allocation12 + $0xc] sm:$0xf]
    %v1452 = vunpack.c.l.b16 %v1440
    %v1453 = vunpack.c.l.b16 %v1441
    %v1454 = vunpack.c.l.b16 %v1442
    %v1455 = vunpack.c.l.b16 %v1443
    %v1456 = vpack.c.b16 %v1453, %v1452
    %v1457 = vpack.c.b16 %v1455, %v1454
    %1460 = vmatpush.bf16.msra.mxu0 0
    %1461 = vmatpush.bf16.msra.mxu0 0
    %1462 = vmatpush.bf16.msra.mxu0 0
    %1463 = vmatpush.bf16.msra.mxu0 0
    %1464 = vmatpush.bf16.msra.mxu0 0
    %1465 = vmatpush.bf16.msra.mxu0 0
    %1466 = vmatpush.bf16.msra.mxu0 %v1457
    %1467 = vmatpush.bf16.msra.mxu0 %v1456
    %1468 = vmatmul.bf16.gmra.mxu0 %v280
    %v1469 = vpop.f32.mrf.mxu0
    %v1470 = vadd.f32 0.0, %v1469
    %v1471 = vpop.f32.mrf.mxu0
    %1472 = vdwg.mxu0
    %v1473 = vadd.f32 %v1436, %v1470
    %v1478 = vunpack.c.l.b16 %v1444
    %v1479 = vunpack.c.l.b16 %v1445
    %v1480 = vunpack.c.l.b16 %v1446
    %v1481 = vunpack.c.l.b16 %v1447
    %v1482 = vpack.c.b16 %v1479, %v1478
    %v1483 = vpack.c.b16 %v1481, %v1480
    %1486 = vmatpush.bf16.msra.mxu0 0
    %1487 = vmatpush.bf16.msra.mxu0 0
    %1488 = vmatpush.bf16.msra.mxu0 0
    %1489 = vmatpush.bf16.msra.mxu0 0
    %1490 = vmatpush.bf16.msra.mxu0 0
    %1491 = vmatpush.bf16.msra.mxu0 0
    %1492 = vmatpush.bf16.msra.mxu0 %v1483
    %1493 = vmatpush.bf16.msra.mxu0 %v1482
    %1494 = vmatmul.bf16.gmra.mxu0 %v280
    %v1495 = vpop.f32.mrf.mxu0
    %v1496 = vadd.f32 0.0, %v1495
    %v1497 = vpop.f32.mrf.mxu0
    %1498 = vdwg.mxu0
    %v1500 = vrot.slane %v1496, 2
    %v1502 = vadd.f32 %v1439, %v1500
    %v1503 = vxor.u32 %v1473, 2147483648
    %v1504 = vmul.f32 %v1503, 1.442695
    %v1505 = vpow.pop %v1504
    %v1506 = vadd.f32 %v1505, 1.0
    %v1507 = vrcp.pop %v1506
    %v1508 = vmul.f32 %v1506, %v1507
    %v1509 = vsub.f32 1.0, %v1508
    %v1510 = vmul.f32 %v1507, %v1509
    %v1511 = vadd.f32 %v1507, %v1510
    %vm1512 = vweird.f32 %v1506
    %vm1513 = vweird.f32 %v1507
    %vm1514 = vmor %vm1512, %vm1513
    %v1515 = vsel %vm1514, %v1507, %v1511
    %v1516 = vand.u32 2147483647, %v1506
    %vm1517 = vcmp.eq.f32.partialorder %v1516, 8.507059e+37
    %v1518 = vand.u32 %v1506, 2147483648
    %v1519 = vor.u32 1.1754944e-38, %v1518
    %v1520 = vsel %vm1517, %v1519, %v1515
    %v1521 = vmul.f32 1.0, %v1520
    %v1522 = vtanh.pop %v1473
    %v1523 = vmul.f32 %v1521, 0.0
    %1525 = vrot.lane.b32.xlu0 %v1522, 64
    %v1526 = vpop.permute.xlu0 %1525
    %v1528 = vmul.f32 %v1521, %v1526
    %1530 = vrot.lane.b32.xlu0 %v1528, 32
    %v1531 = vpop.permute.xlu0 %1530
    %v1533 = vadd.f32 %v1523, %v1531
    %v1534 = vtanh.pop %v1533
    %1536 = vrot.lane.b32.xlu0 %v1534, 64
    %v1537 = vpop.permute.xlu0 %1536
    %v1539 = vmul.f32 %v1521, %v1537
    %v1540 = vxor.u32 %v1502, 2147483648
    %v1541 = vmul.f32 %v1540, 1.442695
    %v1542 = vpow.pop %v1541
    %v1543 = vadd.f32 %v1542, 1.0
    %v1544 = vrcp.pop %v1543
    %v1545 = vmul.f32 %v1543, %v1544
    %v1546 = vsub.f32 1.0, %v1545
    %v1547 = vmul.f32 %v1544, %v1546
    %v1548 = vadd.f32 %v1544, %v1547
    %vm1549 = vweird.f32 %v1543
    %vm1550 = vweird.f32 %v1544
    %vm1551 = vmor %vm1549, %vm1550
    %v1552 = vsel %vm1551, %v1544, %v1548
    %v1553 = vand.u32 2147483647, %v1543
    %vm1554 = vcmp.eq.f32.partialorder %v1553, 8.507059e+37
    %v1555 = vand.u32 %v1543, 2147483648
    %v1556 = vor.u32 1.1754944e-38, %v1555
    %v1557 = vsel %vm1554, %v1556, %v1552
    %v1558 = vmul.f32 1.0, %v1557
    %v1559 = vtanh.pop %v1502
    %v1560 = vmul.f32 %v1558, 0.0
    %1562 = vrot.lane.b32.xlu0 %v1559, 64
    %v1563 = vpop.permute.xlu0 %1562
    %v1565 = vmul.f32 %v1558, %v1563
    %1567 = vrot.lane.b32.xlu0 %v1565, 32
    %v1568 = vpop.permute.xlu0 %1567
    %v1570 = vadd.f32 %v1560, %v1568
    %v1571 = vtanh.pop %v1570
    %1573 = vrot.lane.b32.xlu0 %v1571, 64
    %v1574 = vpop.permute.xlu0 %1573
    %v1576 = vmul.f32 %v1558, %v1574
    %v1577 = vpack.c.bf16 %v1539, %v1539
    %1579 = vrot.lane.b32.xlu0 %v1577, 32
    %v1580 = vpop.permute.xlu0 %1579
    %v1582 = vsel %vm227, %v1580, 0
    %1584 = vmatpush.bf16.msra.mxu0 0
    %1585 = vmatpush.bf16.msra.mxu0 0
    %1586 = vmatpush.bf16.msra.mxu0 0
    %1587 = vmatpush.bf16.msra.mxu0 0
    %1588 = vmatpush.bf16.msra.mxu0 0
    %1589 = vmatpush.bf16.msra.mxu0 0
    %1590 = vmatpush.bf16.msra.mxu0 %v1457
    %1591 = vmatpush.bf16.msra.mxu0 %v1456
    %1592 = vmatmul.bf16.gmra.mxu0 %v1582
    %v1593 = vpop.f32.mrf.mxu0
    %v1594 = vadd.f32 0.0, %v1593
    %v1595 = vpop.f32.mrf.mxu0
    %1596 = vdwg.mxu0
    %v1598 = vrot.slane %v1594, 6
    %v1600 = vadd.f32 %v1436, %v1598
    %v1601 = vpack.c.bf16 %v1576, %v1576
    %v1603 = vrot.slane %v1601, 3
    %1604 = vrot.lane.b32.xlu0 %v1603, 32
    %v1605 = vpop.permute.xlu0 %1604
    %v1607 = vsel %vm227, %v1605, 0
    %1609 = vmatpush.bf16.msra.mxu0 0
    %1610 = vmatpush.bf16.msra.mxu0 0
    %1611 = vmatpush.bf16.msra.mxu0 0
    %1612 = vmatpush.bf16.msra.mxu0 0
    %1613 = vmatpush.bf16.msra.mxu0 0
    %1614 = vmatpush.bf16.msra.mxu0 0
    %1615 = vmatpush.bf16.msra.mxu0 %v1483
    %1616 = vmatpush.bf16.msra.mxu0 %v1482
    %1617 = vmatmul.bf16.gmra.mxu0 %v1607
    %v1618 = vpop.f32.mrf.mxu0
    %v1619 = vadd.f32 0.0, %v1618
    %v1620 = vpop.f32.mrf.mxu0
    %1621 = vdwg.mxu0
    %v1623 = vrot.slane %v1619, 4
    %v1625 = vadd.f32 %v1439, %v1623
    %v1626 = vxor.u32 %v1600, 2147483648
    %v1627 = vmul.f32 %v1626, 1.442695
    %v1628 = vpow.pop %v1627
    %v1629 = vadd.f32 %v1628, 1.0
    %v1630 = vrcp.pop %v1629
    %v1631 = vmul.f32 %v1629, %v1630
    %v1632 = vsub.f32 1.0, %v1631
    %v1633 = vmul.f32 %v1630, %v1632
    %v1634 = vadd.f32 %v1630, %v1633
    %vm1635 = vweird.f32 %v1629
    %vm1636 = vweird.f32 %v1630
    %vm1637 = vmor %vm1635, %vm1636
    %v1638 = vsel %vm1637, %v1630, %v1634
    %v1639 = vand.u32 2147483647, %v1629
    %vm1640 = vcmp.eq.f32.partialorder %v1639, 8.507059e+37
    %v1641 = vand.u32 %v1629, 2147483648
    %v1642 = vor.u32 1.1754944e-38, %v1641
    %v1643 = vsel %vm1640, %v1642, %v1638
    %v1644 = vmul.f32 1.0, %v1643
    %v1645 = vtanh.pop %v1600
    %v1647 = vrot.slane %v1533, 6
    %v1649 = vmul.f32 %v1644, %v1647
    %1651 = vrot.lane.b32.xlu0 %v1645, 64
    %v1652 = vpop.permute.xlu0 %1651
    %v1654 = vmul.f32 %v1644, %v1652
    %1656 = vrot.lane.b32.xlu0 %v1654, 32
    %v1657 = vpop.permute.xlu0 %1656
    %v1659 = vadd.f32 %v1649, %v1657
    %v1660 = vtanh.pop %v1659
    %1662 = vrot.lane.b32.xlu0 %v1660, 64
    %v1663 = vpop.permute.xlu0 %1662
    %v1665 = vmul.f32 %v1644, %v1663
    %v1666 = vxor.u32 %v1625, 2147483648
    %v1667 = vmul.f32 %v1666, 1.442695
    %v1668 = vpow.pop %v1667
    %v1669 = vadd.f32 %v1668, 1.0
    %v1670 = vrcp.pop %v1669
    %v1671 = vmul.f32 %v1669, %v1670
    %v1672 = vsub.f32 1.0, %v1671
    %v1673 = vmul.f32 %v1670, %v1672
    %v1674 = vadd.f32 %v1670, %v1673
    %vm1675 = vweird.f32 %v1669
    %vm1676 = vweird.f32 %v1670
    %vm1677 = vmor %vm1675, %vm1676
    %v1678 = vsel %vm1677, %v1670, %v1674
    %v1679 = vand.u32 2147483647, %v1669
    %vm1680 = vcmp.eq.f32.partialorder %v1679, 8.507059e+37
    %v1681 = vand.u32 %v1669, 2147483648
    %v1682 = vor.u32 1.1754944e-38, %v1681
    %v1683 = vsel %vm1680, %v1682, %v1678
    %v1684 = vmul.f32 1.0, %v1683
    %v1685 = vtanh.pop %v1625
    %v1687 = vrot.slane %v1570, 2
    %v1689 = vmul.f32 %v1684, %v1687
    %1691 = vrot.lane.b32.xlu0 %v1685, 64
    %v1692 = vpop.permute.xlu0 %1691
    %v1694 = vmul.f32 %v1684, %v1692
    %1696 = vrot.lane.b32.xlu0 %v1694, 32
    %v1697 = vpop.permute.xlu0 %1696
    %v1699 = vadd.f32 %v1689, %v1697
    %v1700 = vtanh.pop %v1699
    %1702 = vrot.lane.b32.xlu0 %v1700, 64
    %v1703 = vpop.permute.xlu0 %1702
    %v1705 = vmul.f32 %v1684, %v1703
    %v1706 = vpack.c.bf16 %v1665, %v1665
    %v1708 = vrot.slane %v1706, 1
    %1709 = vrot.lane.b32.xlu0 %v1708, 32
    %v1710 = vpop.permute.xlu0 %1709
    %v1712 = vsel %vm227, %v1710, 0
    %1714 = vmatpush.bf16.msra.mxu0 0
    %1715 = vmatpush.bf16.msra.mxu0 0
    %1716 = vmatpush.bf16.msra.mxu0 0
    %1717 = vmatpush.bf16.msra.mxu0 0
    %1718 = vmatpush.bf16.msra.mxu0 0
    %1719 = vmatpush.bf16.msra.mxu0 0
    %1720 = vmatpush.bf16.msra.mxu0 %v1457
    %1721 = vmatpush.bf16.msra.mxu0 %v1456
    %1722 = vmatmul.bf16.gmra.mxu0 %v1712
    %v1723 = vpop.f32.mrf.mxu0
    %v1724 = vadd.f32 0.0, %v1723
    %v1725 = vpop.f32.mrf.mxu0
    %1726 = vdwg.mxu0
    %v1728 = vrot.slane %v1724, 4
    %v1730 = vadd.f32 %v1436, %v1728
    %v1731 = vpack.c.bf16 %v1705, %v1705
    %v1733 = vrot.slane %v1731, 2
    %1734 = vrot.lane.b32.xlu0 %v1733, 32
    %v1735 = vpop.permute.xlu0 %1734
    %v1737 = vsel %vm227, %v1735, 0
    %1739 = vmatpush.bf16.msra.mxu0 0
    %1740 = vmatpush.bf16.msra.mxu0 0
    %1741 = vmatpush.bf16.msra.mxu0 0
    %1742 = vmatpush.bf16.msra.mxu0 0
    %1743 = vmatpush.bf16.msra.mxu0 0
    %1744 = vmatpush.bf16.msra.mxu0 0
    %1745 = vmatpush.bf16.msra.mxu0 %v1483
    %1746 = vmatpush.bf16.msra.mxu0 %v1482
    %1747 = vmatmul.bf16.gmra.mxu0 %v1737
    %v1748 = vpop.f32.mrf.mxu0
    %v1749 = vadd.f32 0.0, %v1748
    %v1750 = vpop.f32.mrf.mxu0
    %1751 = vdwg.mxu0
    %v1753 = vrot.slane %v1749, 6
    %v1755 = vadd.f32 %v1439, %v1753
    %v1756 = vxor.u32 %v1730, 2147483648
    %v1757 = vmul.f32 %v1756, 1.442695
    %v1758 = vpow.pop %v1757
    %v1759 = vadd.f32 %v1758, 1.0
    %v1760 = vrcp.pop %v1759
    %v1761 = vmul.f32 %v1759, %v1760
    %v1762 = vsub.f32 1.0, %v1761
    %v1763 = vmul.f32 %v1760, %v1762
    %v1764 = vadd.f32 %v1760, %v1763
    %vm1765 = vweird.f32 %v1759
    %vm1766 = vweird.f32 %v1760
    %vm1767 = vmor %vm1765, %vm1766
    %v1768 = vsel %vm1767, %v1760, %v1764
    %v1769 = vand.u32 2147483647, %v1759
    %vm1770 = vcmp.eq.f32.partialorder %v1769, 8.507059e+37
    %v1771 = vand.u32 %v1759, 2147483648
    %v1772 = vor.u32 1.1754944e-38, %v1771
    %v1773 = vsel %vm1770, %v1772, %v1768
    %v1774 = vmul.f32 1.0, %v1773
    %v1775 = vtanh.pop %v1730
    %v1777 = vrot.slane %v1659, 6
    %v1779 = vmul.f32 %v1774, %v1777
    %1781 = vrot.lane.b32.xlu0 %v1775, 64
    %v1782 = vpop.permute.xlu0 %1781
    %v1784 = vmul.f32 %v1774, %v1782
    %1786 = vrot.lane.b32.xlu0 %v1784, 32
    %v1787 = vpop.permute.xlu0 %1786
    %v1789 = vadd.f32 %v1779, %v1787
    %v1790 = vtanh.pop %v1789
    %1792 = vrot.lane.b32.xlu0 %v1790, 64
    %v1793 = vpop.permute.xlu0 %1792
    %v1795 = vmul.f32 %v1774, %v1793
    %v1796 = vxor.u32 %v1755, 2147483648
    %v1797 = vmul.f32 %v1796, 1.442695
    %v1798 = vpow.pop %v1797
    %v1799 = vadd.f32 %v1798, 1.0
    %v1800 = vrcp.pop %v1799
    %v1801 = vmul.f32 %v1799, %v1800
    %v1802 = vsub.f32 1.0, %v1801
    %v1803 = vmul.f32 %v1800, %v1802
    %v1804 = vadd.f32 %v1800, %v1803
    %vm1805 = vweird.f32 %v1799
    %vm1806 = vweird.f32 %v1800
    %vm1807 = vmor %vm1805, %vm1806
    %v1808 = vsel %vm1807, %v1800, %v1804
    %v1809 = vand.u32 2147483647, %v1799
    %vm1810 = vcmp.eq.f32.partialorder %v1809, 8.507059e+37
    %v1811 = vand.u32 %v1799, 2147483648
    %v1812 = vor.u32 1.1754944e-38, %v1811
    %v1813 = vsel %vm1810, %v1812, %v1808
    %v1814 = vmul.f32 1.0, %v1813
    %v1815 = vtanh.pop %v1755
    %v1817 = vrot.slane %v1699, 2
    %v1819 = vmul.f32 %v1814, %v1817
    %1821 = vrot.lane.b32.xlu0 %v1815, 64
    %v1822 = vpop.permute.xlu0 %1821
    %v1824 = vmul.f32 %v1814, %v1822
    %1826 = vrot.lane.b32.xlu0 %v1824, 32
    %v1827 = vpop.permute.xlu0 %1826
    %v1829 = vadd.f32 %v1819, %v1827
    %v1830 = vtanh.pop %v1829
    %1832 = vrot.lane.b32.xlu0 %v1830, 64
    %v1833 = vpop.permute.xlu0 %1832
    %v1835 = vmul.f32 %v1814, %v1833
    %v1836 = vpack.c.bf16 %v1795, %v1795
    %v1838 = vrot.slane %v1836, 2
    %1839 = vrot.lane.b32.xlu0 %v1838, 32
    %v1840 = vpop.permute.xlu0 %1839
    %v1842 = vsel %vm227, %v1840, 0
    %1844 = vmatpush.bf16.msra.mxu0 0
    %1845 = vmatpush.bf16.msra.mxu0 0
    %1846 = vmatpush.bf16.msra.mxu0 0
    %1847 = vmatpush.bf16.msra.mxu0 0
    %1848 = vmatpush.bf16.msra.mxu0 0
    %1849 = vmatpush.bf16.msra.mxu0 0
    %1850 = vmatpush.bf16.msra.mxu0 %v1457
    %1851 = vmatpush.bf16.msra.mxu0 %v1456
    %1852 = vmatmul.bf16.gmra.mxu0 %v1842
    %v1853 = vpop.f32.mrf.mxu0
    %v1854 = vadd.f32 0.0, %v1853
    %v1855 = vpop.f32.mrf.mxu0
    %1856 = vdwg.mxu0
    %v1858 = vrot.slane %v1854, 2
    %v1860 = vadd.f32 %v1436, %v1858
    %v1861 = vpack.c.bf16 %v1835, %v1835
    %v1863 = vrot.slane %v1861, 1
    %1864 = vrot.lane.b32.xlu0 %v1863, 32
    %v1865 = vpop.permute.xlu0 %1864
    %v1867 = vsel %vm227, %v1865, 0
    %1869 = vmatpush.bf16.msra.mxu0 0
    %1870 = vmatpush.bf16.msra.mxu0 0
    %1871 = vmatpush.bf16.msra.mxu0 0
    %1872 = vmatpush.bf16.msra.mxu0 0
    %1873 = vmatpush.bf16.msra.mxu0 0
    %1874 = vmatpush.bf16.msra.mxu0 0
    %1875 = vmatpush.bf16.msra.mxu0 %v1483
    %1876 = vmatpush.bf16.msra.mxu0 %v1482
    %1877 = vmatmul.bf16.gmra.mxu0 %v1867
    %v1878 = vpop.f32.mrf.mxu0
    %v1879 = vadd.f32 0.0, %v1878
    %v1880 = vpop.f32.mrf.mxu0
    %1881 = vdwg.mxu0
    %v1882 = vadd.f32 %v1439, %v1879
    %v1883 = vxor.u32 %v1860, 2147483648
    %v1884 = vmul.f32 %v1883, 1.442695
    %v1885 = vpow.pop %v1884
    %v1886 = vadd.f32 %v1885, 1.0
    %v1887 = vrcp.pop %v1886
    %v1888 = vmul.f32 %v1886, %v1887
    %v1889 = vsub.f32 1.0, %v1888
    %v1890 = vmul.f32 %v1887, %v1889
    %v1891 = vadd.f32 %v1887, %v1890
    %vm1892 = vweird.f32 %v1886
    %vm1893 = vweird.f32 %v1887
    %vm1894 = vmor %vm1892, %vm1893
    %v1895 = vsel %vm1894, %v1887, %v1891
    %v1896 = vand.u32 2147483647, %v1886
    %vm1897 = vcmp.eq.f32.partialorder %v1896, 8.507059e+37
    %v1898 = vand.u32 %v1886, 2147483648
    %v1899 = vor.u32 1.1754944e-38, %v1898
    %v1900 = vsel %vm1897, %v1899, %v1895
    %v1901 = vmul.f32 1.0, %v1900
    %v1902 = vtanh.pop %v1860
    %v1904 = vrot.slane %v1789, 6
    %v1906 = vmul.f32 %v1901, %v1904
    %1908 = vrot.lane.b32.xlu0 %v1902, 64
    %v1909 = vpop.permute.xlu0 %1908
    %v1911 = vmul.f32 %v1901, %v1909
    %1913 = vrot.lane.b32.xlu0 %v1911, 32
    %v1914 = vpop.permute.xlu0 %1913
    %v1916 = vadd.f32 %v1906, %v1914
    %v1917 = vtanh.pop %v1916
    %1919 = vrot.lane.b32.xlu0 %v1917, 64
    %v1920 = vpop.permute.xlu0 %1919
    %v1922 = vmul.f32 %v1901, %v1920
    %v1923 = vxor.u32 %v1882, 2147483648
    %v1924 = vmul.f32 %v1923, 1.442695
    %v1925 = vpow.pop %v1924
    %v1926 = vadd.f32 %v1925, 1.0
    %v1927 = vrcp.pop %v1926
    %v1928 = vmul.f32 %v1926, %v1927
    %v1929 = vsub.f32 1.0, %v1928
    %v1930 = vmul.f32 %v1927, %v1929
    %v1931 = vadd.f32 %v1927, %v1930
    %vm1932 = vweird.f32 %v1926
    %vm1933 = vweird.f32 %v1927
    %vm1934 = vmor %vm1932, %vm1933
    %v1935 = vsel %vm1934, %v1927, %v1931
    %v1936 = vand.u32 2147483647, %v1926
    %vm1937 = vcmp.eq.f32.partialorder %v1936, 8.507059e+37
    %v1938 = vand.u32 %v1926, 2147483648
    %v1939 = vor.u32 1.1754944e-38, %v1938
    %v1940 = vsel %vm1937, %v1939, %v1935
    %v1941 = vmul.f32 1.0, %v1940
    %v1942 = vtanh.pop %v1882
    %v1944 = vrot.slane %v1829, 2
    %v1946 = vmul.f32 %v1941, %v1944
    %1948 = vrot.lane.b32.xlu0 %v1942, 64
    %v1949 = vpop.permute.xlu0 %1948
    %v1951 = vmul.f32 %v1941, %v1949
    %1953 = vrot.lane.b32.xlu0 %v1951, 32
    %v1954 = vpop.permute.xlu0 %1953
    %v1956 = vadd.f32 %v1946, %v1954
    %v1957 = vtanh.pop %v1956
    %1959 = vrot.lane.b32.xlu0 %v1957, 64
    %v1960 = vpop.permute.xlu0 %1959
    %v1962 = vmul.f32 %v1941, %v1960
    %v1963 = vpack.c.bf16 %v1922, %v1922
    %v1965 = vrot.slane %v1963, 3
    %1966 = vrot.lane.b32.xlu0 %v1965, 32
    %v1967 = vpop.permute.xlu0 %1966
    %v1969 = vsel %vm227, %v1967, 0
    %1971 = vmatpush.bf16.msra.mxu0 0
    %1972 = vmatpush.bf16.msra.mxu0 0
    %1973 = vmatpush.bf16.msra.mxu0 0
    %1974 = vmatpush.bf16.msra.mxu0 0
    %1975 = vmatpush.bf16.msra.mxu0 0
    %1976 = vmatpush.bf16.msra.mxu0 0
    %1977 = vmatpush.bf16.msra.mxu0 %v1457
    %1978 = vmatpush.bf16.msra.mxu0 %v1456
    %1979 = vmatmul.bf16.gmra.mxu0 %v1969
    %v1980 = vpop.f32.mrf.mxu0
    %v1981 = vadd.f32 0.0, %v1980
    %v1982 = vpop.f32.mrf.mxu0
    %1983 = vdwg.mxu0
    %v1984 = vadd.f32 %v1438, %v1981
    %v1985 = vpack.c.bf16 %v1962, %v1962
    %1987 = vrot.lane.b32.xlu0 %v1985, 32
    %v1988 = vpop.permute.xlu0 %1987
    %v1990 = vsel %vm227, %v1988, 0
    %1992 = vmatpush.bf16.msra.mxu0 0
    %1993 = vmatpush.bf16.msra.mxu0 0
    %1994 = vmatpush.bf16.msra.mxu0 0
    %1995 = vmatpush.bf16.msra.mxu0 0
    %1996 = vmatpush.bf16.msra.mxu0 0
    %1997 = vmatpush.bf16.msra.mxu0 0
    %1998 = vmatpush.bf16.msra.mxu0 %v1483
    %1999 = vmatpush.bf16.msra.mxu0 %v1482
    %2000 = vmatmul.bf16.gmra.mxu0 %v1990
    %v2001 = vpop.f32.mrf.mxu0
    %v2002 = vadd.f32 0.0, %v2001
    %v2003 = vpop.f32.mrf.mxu0
    %2004 = vdwg.mxu0
    %v2006 = vrot.slane %v2002, 2
    %v2008 = vadd.f32 %v1437, %v2006
    %v2009 = vxor.u32 %v1984, 2147483648
    %v2010 = vmul.f32 %v2009, 1.442695
    %v2011 = vpow.pop %v2010
    %v2012 = vadd.f32 %v2011, 1.0
    %v2013 = vrcp.pop %v2012
    %v2014 = vmul.f32 %v2012, %v2013
    %v2015 = vsub.f32 1.0, %v2014
    %v2016 = vmul.f32 %v2013, %v2015
    %v2017 = vadd.f32 %v2013, %v2016
    %vm2018 = vweird.f32 %v2012
    %vm2019 = vweird.f32 %v2013
    %vm2020 = vmor %vm2018, %vm2019
    %v2021 = vsel %vm2020, %v2013, %v2017
    %v2022 = vand.u32 2147483647, %v2012
    %vm2023 = vcmp.eq.f32.partialorder %v2022, 8.507059e+37
    %v2024 = vand.u32 %v2012, 2147483648
    %v2025 = vor.u32 1.1754944e-38, %v2024
    %v2026 = vsel %vm2023, %v2025, %v2021
    %v2027 = vmul.f32 1.0, %v2026
    %v2028 = vtanh.pop %v1984
    %v2030 = vrot.slane %v1916, 6
    %v2032 = vmul.f32 %v2027, %v2030
    %2034 = vrot.lane.b32.xlu0 %v2028, 64
    %v2035 = vpop.permute.xlu0 %2034
    %v2037 = vmul.f32 %v2027, %v2035
    %2039 = vrot.lane.b32.xlu0 %v2037, 32
    %v2040 = vpop.permute.xlu0 %2039
    %v2042 = vadd.f32 %v2032, %v2040
    %v2043 = vtanh.pop %v2042
    %2045 = vrot.lane.b32.xlu0 %v2043, 64
    %v2046 = vpop.permute.xlu0 %2045
    %v2048 = vmul.f32 %v2027, %v2046
    %v2049 = vxor.u32 %v2008, 2147483648
    %v2050 = vmul.f32 %v2049, 1.442695
    %v2051 = vpow.pop %v2050
    %v2052 = vadd.f32 %v2051, 1.0
    %v2053 = vrcp.pop %v2052
    %v2054 = vmul.f32 %v2052, %v2053
    %v2055 = vsub.f32 1.0, %v2054
    %v2056 = vmul.f32 %v2053, %v2055
    %v2057 = vadd.f32 %v2053, %v2056
    %vm2058 = vweird.f32 %v2052
    %vm2059 = vweird.f32 %v2053
    %vm2060 = vmor %vm2058, %vm2059
    %v2061 = vsel %vm2060, %v2053, %v2057
    %v2062 = vand.u32 2147483647, %v2052
    %vm2063 = vcmp.eq.f32.partialorder %v2062, 8.507059e+37
    %v2064 = vand.u32 %v2052, 2147483648
    %v2065 = vor.u32 1.1754944e-38, %v2064
    %v2066 = vsel %vm2063, %v2065, %v2061
    %v2067 = vmul.f32 1.0, %v2066
    %v2068 = vtanh.pop %v2008
    %v2070 = vrot.slane %v1956, 2
    %v2072 = vmul.f32 %v2067, %v2070
    %2074 = vrot.lane.b32.xlu0 %v2068, 64
    %v2075 = vpop.permute.xlu0 %2074
    %v2077 = vmul.f32 %v2067, %v2075
    %2079 = vrot.lane.b32.xlu0 %v2077, 32
    %v2080 = vpop.permute.xlu0 %2079
    %v2082 = vadd.f32 %v2072, %v2080
    %v2083 = vtanh.pop %v2082
    %2085 = vrot.lane.b32.xlu0 %v2083, 64
    %v2086 = vpop.permute.xlu0 %2085
    %v2088 = vmul.f32 %v2067, %v2086
    %v2089 = vpack.c.bf16 %v2048, %v2048
    %2091 = vrot.lane.b32.xlu0 %v2089, 32
    %v2092 = vpop.permute.xlu0 %2091
    %v2094 = vsel %vm227, %v2092, 0
    %2096 = vmatpush.bf16.msra.mxu0 0
    %2097 = vmatpush.bf16.msra.mxu0 0
    %2098 = vmatpush.bf16.msra.mxu0 0
    %2099 = vmatpush.bf16.msra.mxu0 0
    %2100 = vmatpush.bf16.msra.mxu0 0
    %2101 = vmatpush.bf16.msra.mxu0 0
    %2102 = vmatpush.bf16.msra.mxu0 %v1457
    %2103 = vmatpush.bf16.msra.mxu0 %v1456
    %2104 = vmatmul.bf16.gmra.mxu0 %v2094
    %v2105 = vpop.f32.mrf.mxu0
    %v2106 = vadd.f32 0.0, %v2105
    %v2107 = vpop.f32.mrf.mxu0
    %2108 = vdwg.mxu0
    %v2110 = vrot.slane %v2106, 6
    %v2112 = vadd.f32 %v1438, %v2110
    %v2113 = vpack.c.bf16 %v2088, %v2088
    %v2115 = vrot.slane %v2113, 3
    %2116 = vrot.lane.b32.xlu0 %v2115, 32
    %v2117 = vpop.permute.xlu0 %2116
    %v2119 = vsel %vm227, %v2117, 0
    %2121 = vmatpush.bf16.msra.mxu0 0
    %2122 = vmatpush.bf16.msra.mxu0 0
    %2123 = vmatpush.bf16.msra.mxu0 0
    %2124 = vmatpush.bf16.msra.mxu0 0
    %2125 = vmatpush.bf16.msra.mxu0 0
    %2126 = vmatpush.bf16.msra.mxu0 0
    %2127 = vmatpush.bf16.msra.mxu0 %v1483
    %2128 = vmatpush.bf16.msra.mxu0 %v1482
    %2129 = vmatmul.bf16.gmra.mxu0 %v2119
    %v2130 = vpop.f32.mrf.mxu0
    %v2131 = vadd.f32 0.0, %v2130
    %v2132 = vpop.f32.mrf.mxu0
    %2133 = vdwg.mxu0
    %v2135 = vrot.slane %v2131, 4
    %v2137 = vadd.f32 %v1437, %v2135
    %v2138 = vxor.u32 %v2112, 2147483648
    %v2139 = vmul.f32 %v2138, 1.442695
    %v2140 = vpow.pop %v2139
    %v2141 = vadd.f32 %v2140, 1.0
    %v2142 = vrcp.pop %v2141
    %v2143 = vmul.f32 %v2141, %v2142
    %v2144 = vsub.f32 1.0, %v2143
    %v2145 = vmul.f32 %v2142, %v2144
    %v2146 = vadd.f32 %v2142, %v2145
    %vm2147 = vweird.f32 %v2141
    %vm2148 = vweird.f32 %v2142
    %vm2149 = vmor %vm2147, %vm2148
    %v2150 = vsel %vm2149, %v2142, %v2146
    %v2151 = vand.u32 2147483647, %v2141
    %vm2152 = vcmp.eq.f32.partialorder %v2151, 8.507059e+37
    %v2153 = vand.u32 %v2141, 2147483648
    %v2154 = vor.u32 1.1754944e-38, %v2153
    %v2155 = vsel %vm2152, %v2154, %v2150
    %v2156 = vmul.f32 1.0, %v2155
    %v2157 = vtanh.pop %v2112
    %v2159 = vrot.slane %v2042, 6
    %v2161 = vmul.f32 %v2156, %v2159
    %2163 = vrot.lane.b32.xlu0 %v2157, 64
    %v2164 = vpop.permute.xlu0 %2163
    %v2166 = vmul.f32 %v2156, %v2164
    %2168 = vrot.lane.b32.xlu0 %v2166, 32
    %v2169 = vpop.permute.xlu0 %2168
    %v2171 = vadd.f32 %v2161, %v2169
    %v2172 = vtanh.pop %v2171
    %2174 = vrot.lane.b32.xlu0 %v2172, 64
    %v2175 = vpop.permute.xlu0 %2174
    %v2177 = vmul.f32 %v2156, %v2175
    %v2178 = vxor.u32 %v2137, 2147483648
    %v2179 = vmul.f32 %v2178, 1.442695
    %v2180 = vpow.pop %v2179
    %v2181 = vadd.f32 %v2180, 1.0
    %v2182 = vrcp.pop %v2181
    %v2183 = vmul.f32 %v2181, %v2182
    %v2184 = vsub.f32 1.0, %v2183
    %v2185 = vmul.f32 %v2182, %v2184
    %v2186 = vadd.f32 %v2182, %v2185
    %vm2187 = vweird.f32 %v2181
    %vm2188 = vweird.f32 %v2182
    %vm2189 = vmor %vm2187, %vm2188
    %v2190 = vsel %vm2189, %v2182, %v2186
    %v2191 = vand.u32 2147483647, %v2181
    %vm2192 = vcmp.eq.f32.partialorder %v2191, 8.507059e+37
    %v2193 = vand.u32 %v2181, 2147483648
    %v2194 = vor.u32 1.1754944e-38, %v2193
    %v2195 = vsel %vm2192, %v2194, %v2190
    %v2196 = vmul.f32 1.0, %v2195
    %v2197 = vtanh.pop %v2137
    %v2199 = vrot.slane %v2082, 2
    %v2201 = vmul.f32 %v2196, %v2199
    %2203 = vrot.lane.b32.xlu0 %v2197, 64
    %v2204 = vpop.permute.xlu0 %2203
    %v2206 = vmul.f32 %v2196, %v2204
    %2208 = vrot.lane.b32.xlu0 %v2206, 32
    %v2209 = vpop.permute.xlu0 %2208
    %v2211 = vadd.f32 %v2201, %v2209
    %v2212 = vtanh.pop %v2211
    %2214 = vrot.lane.b32.xlu0 %v2212, 64
    %v2215 = vpop.permute.xlu0 %2214
    %v2217 = vmul.f32 %v2196, %v2215
    %v2218 = vpack.c.bf16 %v2177, %v2177
    %v2220 = vrot.slane %v2218, 1
    %2221 = vrot.lane.b32.xlu0 %v2220, 32
    %v2222 = vpop.permute.xlu0 %2221
    %v2224 = vsel %vm227, %v2222, 0
    %2226 = vmatpush.bf16.msra.mxu0 0
    %2227 = vmatpush.bf16.msra.mxu0 0
    %2228 = vmatpush.bf16.msra.mxu0 0
    %2229 = vmatpush.bf16.msra.mxu0 0
    %2230 = vmatpush.bf16.msra.mxu0 0
    %2231 = vmatpush.bf16.msra.mxu0 0
    %2232 = vmatpush.bf16.msra.mxu0 %v1457
    %2233 = vmatpush.bf16.msra.mxu0 %v1456
    %2234 = vmatmul.bf16.gmra.mxu0 %v2224
    %v2235 = vpop.f32.mrf.mxu0
    %v2236 = vadd.f32 0.0, %v2235
    %v2237 = vpop.f32.mrf.mxu0
    %2238 = vdwg.mxu0
    %v2240 = vrot.slane %v2236, 4
    %v2242 = vadd.f32 %v1438, %v2240
    %v2243 = vpack.c.bf16 %v2217, %v2217
    %v2245 = vrot.slane %v2243, 2
    %2246 = vrot.lane.b32.xlu0 %v2245, 32
    %v2247 = vpop.permute.xlu0 %2246
    %v2249 = vsel %vm227, %v2247, 0
    %2251 = vmatpush.bf16.msra.mxu0 0
    %2252 = vmatpush.bf16.msra.mxu0 0
    %2253 = vmatpush.bf16.msra.mxu0 0
    %2254 = vmatpush.bf16.msra.mxu0 0
    %2255 = vmatpush.bf16.msra.mxu0 0
    %2256 = vmatpush.bf16.msra.mxu0 0
    %2257 = vmatpush.bf16.msra.mxu0 %v1483
    %2258 = vmatpush.bf16.msra.mxu0 %v1482
    %2259 = vmatmul.bf16.gmra.mxu0 %v2249
    %v2260 = vpop.f32.mrf.mxu0
    %v2261 = vadd.f32 0.0, %v2260
    %v2262 = vpop.f32.mrf.mxu0
    %2263 = vdwg.mxu0
    %v2265 = vrot.slane %v2261, 6
    %v2267 = vadd.f32 %v1437, %v2265
    %v2268 = vxor.u32 %v2242, 2147483648
    %v2269 = vmul.f32 %v2268, 1.442695
    %v2270 = vpow.pop %v2269
    %v2271 = vadd.f32 %v2270, 1.0
    %v2272 = vrcp.pop %v2271
    %v2273 = vmul.f32 %v2271, %v2272
    %v2274 = vsub.f32 1.0, %v2273
    %v2275 = vmul.f32 %v2272, %v2274
    %v2276 = vadd.f32 %v2272, %v2275
    %vm2277 = vweird.f32 %v2271
    %vm2278 = vweird.f32 %v2272
    %vm2279 = vmor %vm2277, %vm2278
    %v2280 = vsel %vm2279, %v2272, %v2276
    %v2281 = vand.u32 2147483647, %v2271
    %vm2282 = vcmp.eq.f32.partialorder %v2281, 8.507059e+37
    %v2283 = vand.u32 %v2271, 2147483648
    %v2284 = vor.u32 1.1754944e-38, %v2283
    %v2285 = vsel %vm2282, %v2284, %v2280
    %v2286 = vmul.f32 1.0, %v2285
    %v2287 = vtanh.pop %v2242
    %v2289 = vrot.slane %v2171, 6
    %v2291 = vmul.f32 %v2286, %v2289
    %2293 = vrot.lane.b32.xlu0 %v2287, 64
    %v2294 = vpop.permute.xlu0 %2293
    %v2296 = vmul.f32 %v2286, %v2294
    %2298 = vrot.lane.b32.xlu0 %v2296, 32
    %v2299 = vpop.permute.xlu0 %2298
    %v2301 = vadd.f32 %v2291, %v2299
    %v2302 = vtanh.pop %v2301
    %2304 = vrot.lane.b32.xlu0 %v2302, 64
    %v2305 = vpop.permute.xlu0 %2304
    %v2307 = vmul.f32 %v2286, %v2305
    %v2308 = vxor.u32 %v2267, 2147483648
    %v2309 = vmul.f32 %v2308, 1.442695
    %v2310 = vpow.pop %v2309
    %v2311 = vadd.f32 %v2310, 1.0
    %v2312 = vrcp.pop %v2311
    %v2313 = vmul.f32 %v2311, %v2312
    %v2314 = vsub.f32 1.0, %v2313
    %v2315 = vmul.f32 %v2312, %v2314
    %v2316 = vadd.f32 %v2312, %v2315
    %vm2317 = vweird.f32 %v2311
    %vm2318 = vweird.f32 %v2312
    %vm2319 = vmor %vm2317, %vm2318
    %v2320 = vsel %vm2319, %v2312, %v2316
    %v2321 = vand.u32 2147483647, %v2311
    %vm2322 = vcmp.eq.f32.partialorder %v2321, 8.507059e+37
    %v2323 = vand.u32 %v2311, 2147483648
    %v2324 = vor.u32 1.1754944e-38, %v2323
    %v2325 = vsel %vm2322, %v2324, %v2320
    %v2326 = vmul.f32 1.0, %v2325
    %v2327 = vtanh.pop %v2267
    %v2329 = vrot.slane %v2211, 2
    %v2331 = vmul.f32 %v2326, %v2329
    %2333 = vrot.lane.b32.xlu0 %v2327, 64
    %v2334 = vpop.permute.xlu0 %2333
    %v2336 = vmul.f32 %v2326, %v2334
    %2338 = vrot.lane.b32.xlu0 %v2336, 32
    %v2339 = vpop.permute.xlu0 %2338
    %v2341 = vadd.f32 %v2331, %v2339
    %v2342 = vtanh.pop %v2341
    %2344 = vrot.lane.b32.xlu0 %v2342, 64
    %v2345 = vpop.permute.xlu0 %2344
    %v2347 = vmul.f32 %v2326, %v2345
    %v2348 = vpack.c.bf16 %v2307, %v2307
    %v2350 = vrot.slane %v2348, 2
    %2351 = vrot.lane.b32.xlu0 %v2350, 32
    %v2352 = vpop.permute.xlu0 %2351
    %v2354 = vsel %vm227, %v2352, 0
    %2356 = vmatpush.bf16.msra.mxu0 0
    %2357 = vmatpush.bf16.msra.mxu0 0
    %2358 = vmatpush.bf16.msra.mxu0 0
    %2359 = vmatpush.bf16.msra.mxu0 0
    %2360 = vmatpush.bf16.msra.mxu0 0
    %2361 = vmatpush.bf16.msra.mxu0 0
    %2362 = vmatpush.bf16.msra.mxu0 %v1457
    %2363 = vmatpush.bf16.msra.mxu0 %v1456
    %2364 = vmatmul.bf16.gmra.mxu0 %v2354
    %v2365 = vpop.f32.mrf.mxu0
    %v2366 = vadd.f32 0.0, %v2365
    %v2367 = vpop.f32.mrf.mxu0
    %2368 = vdwg.mxu0
    %v2370 = vrot.slane %v2366, 2
    %v2372 = vadd.f32 %v1438, %v2370
    %v2373 = vpack.c.bf16 %v2347, %v2347
    %v2375 = vrot.slane %v2373, 1
    %2376 = vrot.lane.b32.xlu0 %v2375, 32
    %v2377 = vpop.permute.xlu0 %2376
    %v2379 = vsel %vm227, %v2377, 0
    %2381 = vmatpush.bf16.msra.mxu0 0
    %2382 = vmatpush.bf16.msra.mxu0 0
    %2383 = vmatpush.bf16.msra.mxu0 0
    %2384 = vmatpush.bf16.msra.mxu0 0
    %2385 = vmatpush.bf16.msra.mxu0 0
    %2386 = vmatpush.bf16.msra.mxu0 0
    %2387 = vmatpush.bf16.msra.mxu0 %v1483
    %2388 = vmatpush.bf16.msra.mxu0 %v1482
    %2389 = vmatmul.bf16.gmra.mxu0 %v2379
    %v2390 = vpop.f32.mrf.mxu0
    %v2391 = vadd.f32 0.0, %v2390
    %v2392 = vpop.f32.mrf.mxu0
    %2393 = vdwg.mxu0
    %v2394 = vadd.f32 %v1437, %v2391
    %v2395 = vxor.u32 %v2372, 2147483648
    %v2396 = vmul.f32 %v2395, 1.442695
    %v2397 = vpow.pop %v2396
    %v2398 = vadd.f32 %v2397, 1.0
    %v2399 = vrcp.pop %v2398
    %v2400 = vmul.f32 %v2398, %v2399
    %v2401 = vsub.f32 1.0, %v2400
    %v2402 = vmul.f32 %v2399, %v2401
    %v2403 = vadd.f32 %v2399, %v2402
    %vm2404 = vweird.f32 %v2398
    %vm2405 = vweird.f32 %v2399
    %vm2406 = vmor %vm2404, %vm2405
    %v2407 = vsel %vm2406, %v2399, %v2403
    %v2408 = vand.u32 2147483647, %v2398
    %vm2409 = vcmp.eq.f32.partialorder %v2408, 8.507059e+37
    %v2410 = vand.u32 %v2398, 2147483648
    %v2411 = vor.u32 1.1754944e-38, %v2410
    %v2412 = vsel %vm2409, %v2411, %v2407
    %v2413 = vmul.f32 1.0, %v2412
    %v2414 = vtanh.pop %v2372
    %v2416 = vrot.slane %v2301, 6
    %v2418 = vmul.f32 %v2413, %v2416
    %2420 = vrot.lane.b32.xlu0 %v2414, 64
    %v2421 = vpop.permute.xlu0 %2420
    %v2423 = vmul.f32 %v2413, %v2421
    %2425 = vrot.lane.b32.xlu0 %v2423, 32
    %v2426 = vpop.permute.xlu0 %2425
    %v2428 = vadd.f32 %v2418, %v2426
    %v2429 = vtanh.pop %v2428
    %2431 = vrot.lane.b32.xlu0 %v2429, 64
    %v2432 = vpop.permute.xlu0 %2431
    %v2434 = vmul.f32 %v2413, %v2432
    %v2435 = vxor.u32 %v2394, 2147483648
    %v2436 = vmul.f32 %v2435, 1.442695
    %v2437 = vpow.pop %v2436
    %v2438 = vadd.f32 %v2437, 1.0
    %v2439 = vrcp.pop %v2438
    %v2440 = vmul.f32 %v2438, %v2439
    %v2441 = vsub.f32 1.0, %v2440
    %v2442 = vmul.f32 %v2439, %v2441
    %v2443 = vadd.f32 %v2439, %v2442
    %vm2444 = vweird.f32 %v2438
    %vm2445 = vweird.f32 %v2439
    %vm2446 = vmor %vm2444, %vm2445
    %v2447 = vsel %vm2446, %v2439, %v2443
    %v2448 = vand.u32 2147483647, %v2438
    %vm2449 = vcmp.eq.f32.partialorder %v2448, 8.507059e+37
    %v2450 = vand.u32 %v2438, 2147483648
    %v2451 = vor.u32 1.1754944e-38, %v2450
    %v2452 = vsel %vm2449, %v2451, %v2447
    %v2453 = vmul.f32 1.0, %v2452
    %v2454 = vtanh.pop %v2394
    %v2456 = vrot.slane %v2341, 2
    %v2458 = vmul.f32 %v2453, %v2456
    %2460 = vrot.lane.b32.xlu0 %v2454, 64
    %v2461 = vpop.permute.xlu0 %2460
    %v2463 = vmul.f32 %v2453, %v2461
    %2465 = vrot.lane.b32.xlu0 %v2463, 32
    %v2466 = vpop.permute.xlu0 %2465
    %v2468 = vadd.f32 %v2458, %v2466
    %v2469 = vtanh.pop %v2468
    %2471 = vrot.lane.b32.xlu0 %v2469, 64
    %v2472 = vpop.permute.xlu0 %2471
    %v2474 = vmul.f32 %v2453, %v2472
    %v2475 = vsel %vm1297, %v1539, %v1665
    %v2476 = vsel %vm1299, %v2475, %v1795
    %v2477 = vsel %vm1301, %v2476, %v1922
    %v2478 = vsel %vm1297, %v2048, %v2177
    %v2479 = vsel %vm1299, %v2478, %v2307
    %v2480 = vsel %vm1301, %v2479, %v2434
    %v2481 = vsel %vm1297, %v2474, %v2347
    %v2482 = vsel %vm1299, %v2481, %v2217
    %v2483 = vsel %vm1301, %v2482, %v2088
    %v2484 = vsel %vm1297, %v1962, %v1835
    %v2485 = vsel %vm1299, %v2484, %v1705
    %v2486 = vsel %vm1301, %v2485, %v1576
    %v2487 = vpack.c.bf16 %v2480, %v2477
    %v2488 = vld [vmem:[#allocation14] sm:$0xf]
    %v2489 = vld [vmem:[#allocation14 + $0x4] sm:$0xf]
    %v2490 = vld [vmem:[#allocation14 + $0x8] sm:$0xf]
    %v2491 = vld [vmem:[#allocation14 + $0xc] sm:$0xf]
    %v2492 = vpack.c.bf16 %v2486, %v2483
    %v2493 = vld [vmem:[#allocation15] sm:$0xf]
    %v2494 = vld [vmem:[#allocation15 + $0x4] sm:$0xf]
    %v2495 = vld [vmem:[#allocation15 + $0x8] sm:$0xf]
    %v2496 = vld [vmem:[#allocation15 + $0xc] sm:$0xf]
    %2498 = vrot.lane.b32.xlu0 %v2492, 32
    %v2499 = vpop.permute.xlu0 %2498
    %v2504 = vunpack.c.l.b16 %v2493
    %v2505 = vunpack.c.l.b16 %v2494
    %v2506 = vunpack.c.l.b16 %v2495
    %v2507 = vunpack.c.l.b16 %v2496
    %v2508 = vpack.c.b16 %v2505, %v2504
    %v2509 = vpack.c.b16 %v2507, %v2506
    %v2513 = vsel %vm227, %v2499, 0
    %2515 = vmatpush.bf16.msra.mxu0 0
    %2516 = vmatpush.bf16.msra.mxu0 0
    %2517 = vmatpush.bf16.msra.mxu0 0
    %2518 = vmatpush.bf16.msra.mxu0 0
    %2519 = vmatpush.bf16.msra.mxu0 0
    %2520 = vmatpush.bf16.msra.mxu0 0
    %2521 = vmatpush.bf16.msra.mxu0 %v2509
    %2522 = vmatpush.bf16.msra.mxu0 %v2508
    %2523 = vmatmul.bf16.gmra.mxu0 %v2513
    %v2524 = vpop.f32.mrf.mxu0
    %v2525 = vadd.f32 0.0, %v2524
    %v2526 = vpop.f32.mrf.mxu0
    %v2527 = vadd.f32 0.0, %v2526
    %2528 = vdwg.mxu0
    %2530 = vrot.lane.b32.xlu0 %v2487, 32
    %v2531 = vpop.permute.xlu0 %2530
    %v2536 = vunpack.c.l.b16 %v2488
    %v2537 = vunpack.c.l.b16 %v2489
    %v2538 = vunpack.c.l.b16 %v2490
    %v2539 = vunpack.c.l.b16 %v2491
    %v2540 = vpack.c.b16 %v2537, %v2536
    %v2541 = vpack.c.b16 %v2539, %v2538
    %v2545 = vsel %vm227, %v2531, 0
    %2547 = vmatpush.bf16.msra.mxu0 0
    %2548 = vmatpush.bf16.msra.mxu0 0
    %2549 = vmatpush.bf16.msra.mxu0 0
    %2550 = vmatpush.bf16.msra.mxu0 0
    %2551 = vmatpush.bf16.msra.mxu0 0
    %2552 = vmatpush.bf16.msra.mxu0 0
    %2553 = vmatpush.bf16.msra.mxu0 %v2541
    %2554 = vmatpush.bf16.msra.mxu0 %v2540
    %2555 = vmatmul.bf16.gmra.mxu0 %v2545
    %v2556 = vpop.f32.mrf.mxu0
    %v2557 = vadd.f32 %v2525, %v2556
    %v2558 = vpop.f32.mrf.mxu0
    %v2559 = vadd.f32 %v2527, %v2558
    %2560 = vdwg.mxu0
    %v2561 = vld [vmem:[%s12] sm:$0x1]
    %v2563 = vperm.slane %v2561, 0
    %v2565 = vadd.f32 %v2557, %v2563
    %v2566 = vadd.f32 %v2559, %v2563
    %v2567 = vmax.f32 %v2565, 0.0
    %v2568 = vmax.f32 %v2566, 0.0
    %v2569 = vld [vmem:[%s13] sm:$0x1]
    %v2571 = vperm.slane %v2569, 0
    %v2573 = vmul.f32 %v2567, %v2571
    %v2574 = vmul.f32 %v2568, %v2571
    %vm2575 = vcmask 523264
    %v2576 = vsel %vm2575, %v2573, 0.0
    %2577 = vadd.xlane.f32.xlu0 %v2576
    %v2578 = vpop.xlane.xlu0 %2577
    %v2579 = vsel %vm2575, %v2574, 0.0
    %2580 = vadd.xlane.f32.xlu0 %v2579
    %v2581 = vpop.xlane.xlu0 %2580
    %v2582 = vld [vmem:[#allocation2] sm:$0x1]
    %v2584 = vperm.slane %v2582, 0
    %v2586 = vadd.f32 %v2578, %v2584
    %v2587 = vadd.f32 %v2581, %v2584
    %vm2588 = vcmask 7168
    %v2589 = vsel %vm2588, %v2586, -inf
    %v2590 = vsel %vm2588, %v2587, -inf
    %v2591 = vmax.f32 %v2589, %v2590
    %v2592 = vrot.slane %v2591, 4
    %v2593 = vmax.f32 %v2591, %v2592
    %v2594 = vrot.slane %v2593, 2
    %v2595 = vmax.f32 %v2593, %v2594
    %v2596 = vrot.slane %v2595, 1
    %v2597 = vmax.f32 %v2595, %v2596
    %v2598 = vsub.f32 %v2586, %v2597
    %v2599 = vsub.f32 %v2587, %v2597
    %v2600 = vmul.f32 %v2598, 1.442695
    %v2601 = vpow.pop %v2600
    %v2602 = vmul.f32 %v2599, 1.442695
    %v2603 = vpow.pop %v2602
    %v2604 = vld [vmem:[%s18] sm:$0xff]
    %v2605 = vld [vmem:[%s18 + $0x8] sm:$0xff]
    %2607 = vset.pattern.permute.xlu0 0
    %2608 = vperm.xlu0 %2607, %v2601
    %v2609 = vpop.permute.xlu0 %2608
    %2612 = vset.pattern.permute.xlu0 0
    %2613 = vperm.xlu0 %2612, %v2603
    %v2614 = vpop.permute.xlu0 %2613
    %v2616 = vmul.f32 %v2609, %v2604
    %v2617 = vmul.f32 %v2614, %v2605
    %vm2618 = vcmask 15360
    %v2619 = vsel %vm2618, %v2616, 0.0
    %v2620 = vsel %vm2618, %v2617, 0.0
    %v2621 = vadd.f32 %v2619, %v2620
    %v2622 = vrot.slane %v2621, 4
    %v2623 = vadd.f32 %v2621, %v2622
    %v2624 = vrot.slane %v2623, 2
    %v2625 = vadd.f32 %v2623, %v2624
    %v2626 = vrot.slane %v2625, 1
    %v2627 = vadd.f32 %v2625, %v2626
    %v2628 = vmul.f32 %v2604, %v2627
    %v2629 = vmul.f32 %v2605, %v2627
    %v2630 = vsel %vm2618, %v2628, 0.0
    %2631 = vadd.xlane.f32.xlu0 %v2630
    %v2632 = vpop.xlane.xlu0 %2631
    %v2633 = vsel %vm2618, %v2629, 0.0
    %2634 = vadd.xlane.f32.xlu0 %v2633
    %v2635 = vpop.xlane.xlu0 %2634
    %v2636 = vrcp.pop %v2632
    %v2637 = vrcp.pop %v2635
    %v2638 = vmul.f32 %v2601, %v2636
    %v2639 = vmul.f32 %v2603, %v2637
    %v2640 = vld [vmem:[%s19] sm:$0x1]
    %2642 = vset.pattern.permute.xlu0 0
    %2643 = vperm.xlu0 %2642, %v2638
    %v2644 = vpop.permute.xlu0 %2643
    %2647 = vset.pattern.permute.xlu0 0
    %2648 = vperm.xlu0 %2647, %v2639
    %v2649 = vpop.permute.xlu0 %2648
    %v2651 = vmul.f32 %v2477, %v2644
    %v2652 = vmul.f32 %v2480, %v2649
    %v2653 = vpack.c.bf16 %v2652, %v2651
    %2655 = vrot.lane.b32.xlu0 %v2653, 32
    %v2656 = vpop.permute.xlu0 %2655
    %vm2658 = vcmask 130048
    %v2660 = vsel %vm2658, %v2640, 0
    %2662 = vmatpush.bf16.msra.mxu0 0
    %2663 = vmatpush.bf16.msra.mxu0 0
    %2664 = vmatpush.bf16.msra.mxu0 0
    %2665 = vmatpush.bf16.msra.mxu0 0
    %2666 = vmatpush.bf16.msra.mxu0 0
    %2667 = vmatpush.bf16.msra.mxu0 0
    %2668 = vmatpush.bf16.msra.mxu0 0
    %2669 = vmatpush.bf16.msra.mxu0 %v2656
    %2670 = vmatmul.bf16.gmra.mxu0 %v2660
    %v2671 = vpop.f32.mrf.mxu0
    %v2672 = vadd.f32 0.0, %v2671
    %v2673 = vpop.f32.mrf.mxu0
    %2674 = vdwg.mxu0
    %v2675 = vmul.f32 %v2483, %v2644
    %v2676 = vmul.f32 %v2486, %v2649
    %v2677 = vpack.c.bf16 %v2676, %v2675
    %2679 = vrot.lane.b32.xlu0 %v2677, 32
    %v2680 = vpop.permute.xlu0 %2679
    %2682 = vmatpush.bf16.msra.mxu0 0
    %2683 = vmatpush.bf16.msra.mxu0 0
    %2684 = vmatpush.bf16.msra.mxu0 0
    %2685 = vmatpush.bf16.msra.mxu0 0
    %2686 = vmatpush.bf16.msra.mxu0 0
    %2687 = vmatpush.bf16.msra.mxu0 0
    %2688 = vmatpush.bf16.msra.mxu0 0
    %2689 = vmatpush.bf16.msra.mxu0 %v2680
    %2690 = vmatmul.bf16.gmra.mxu0 %v2660
    %v2691 = vpop.f32.mrf.mxu0
    %v2692 = vadd.f32 0.0, %v2691
    %v2693 = vpop.f32.mrf.mxu0
    %2694 = vdwg.mxu0
    %v2695 = vpack.c.bf16 %v2672, %v2672
    %v2696 = vld [vmem:[%s15] sm:$0xf]
    %v2697 = vld [vmem:[%s15 + $0x4] sm:$0xf]
    %v2698 = vld [vmem:[%s15 + $0x8] sm:$0xf]
    %v2699 = vld [vmem:[%s15 + $0xc] sm:$0xf]
    %v2700 = vpack.c.bf16 %v2692, %v2692
    %v2701 = vld [vmem:[%s16] sm:$0xf]
    %v2702 = vld [vmem:[%s16 + $0x4] sm:$0xf]
    %v2703 = vld [vmem:[%s16 + $0x8] sm:$0xf]
    %v2704 = vld [vmem:[%s16 + $0xc] sm:$0xf]
    %v2709 = vunpack.c.l.b16 %v2701
    %v2710 = vunpack.c.l.b16 %v2702
    %v2711 = vunpack.c.l.b16 %v2703
    %v2712 = vunpack.c.l.b16 %v2704
    %v2713 = vpack.c.b16 %v2710, %v2709
    %v2714 = vpack.c.b16 %v2712, %v2711
    %v2718 = vsel %vm227, %v2700, 0
    %2720 = vmatpush.bf16.msra.mxu0 0
    %2721 = vmatpush.bf16.msra.mxu0 0
    %2722 = vmatpush.bf16.msra.mxu0 0
    %2723 = vmatpush.bf16.msra.mxu0 0
    %2724 = vmatpush.bf16.msra.mxu0 0
    %2725 = vmatpush.bf16.msra.mxu0 0
    %2726 = vmatpush.bf16.msra.mxu0 %v2714
    %2727 = vmatpush.bf16.msra.mxu0 %v2713
    %2728 = vmatmul.bf16.gmra.mxu0 %v2718
    %v2729 = vpop.f32.mrf.mxu0
    %v2730 = vadd.f32 0.0, %v2729
    %v2731 = vpop.f32.mrf.mxu0
    %2732 = vdwg.mxu0
    %v2737 = vunpack.c.l.b16 %v2696
    %v2738 = vunpack.c.l.b16 %v2697
    %v2739 = vunpack.c.l.b16 %v2698
    %v2740 = vunpack.c.l.b16 %v2699
    %v2741 = vpack.c.b16 %v2738, %v2737
    %v2742 = vpack.c.b16 %v2740, %v2739
    %v2746 = vsel %vm227, %v2695, 0
    %2748 = vmatpush.bf16.msra.mxu0 0
    %2749 = vmatpush.bf16.msra.mxu0 0
    %2750 = vmatpush.bf16.msra.mxu0 0
    %2751 = vmatpush.bf16.msra.mxu0 0
    %2752 = vmatpush.bf16.msra.mxu0 0
    %2753 = vmatpush.bf16.msra.mxu0 0
    %2754 = vmatpush.bf16.msra.mxu0 %v2742
    %2755 = vmatpush.bf16.msra.mxu0 %v2741
    %2756 = vmatmul.bf16.gmra.mxu0 %v2746
    %v2757 = vpop.f32.mrf.mxu0
    %v2758 = vadd.f32 %v2730, %v2757
    %v2759 = vpop.f32.mrf.mxu0
    %2760 = vdwg.mxu0
    %v2761 = vld [vmem:[%s17] sm:$0x1]
    %v2763 = vperm.slane %v2761, 0
    %v2765 = vadd.f32 %v2758, %v2763
    %vm2766 = vcmask 25600
    %2767 = vst.msk [vmem:[#allocation17] sm:$0x3] %vm2766, %v2765
    // Predicated region
    $region114: #{tpu_custom_call.1} parent=1 // pred_check
      _
    $region115: #{tpu_custom_call.1} parent=1 // pred_check_branch
      %2769 = sbr.rel (0) target = $region117
    $region116: #{tpu_custom_call.1} parent=1 // pred_region
      %2771 = vsyncadd [#allocation5], 0
      %s2773 = sshll.u32 [#allocation17], 4
      %s2774 = int_to_ptr.vmem [resolvable:$true] %s2773
      %s2775 = sshll.u32 %s20, 4
      %s2776 = int_to_ptr.hbm [resolvable:$true] %s2775
      %2778 = dma.vmem_to_hbm [thread:$0]  %s2774, 32, %s2776, [#allocation5]
    $region117: #{tpu_custom_call.1} parent=1 // pred_fallthru
      _
    // Predicated region
    $region118: #{tpu_custom_call.1} parent=1 // pred_check
      _
    $region119: #{tpu_custom_call.1} parent=1 // pred_check_branch
      %2780 = sbr.rel (0) target = $region121
    $region120: #{tpu_custom_call.1} parent=1 // pred_region
      %2782 = dma.done [#allocation5], 32
    $region121: #{tpu_custom_call.1} parent=1 // pred_fallthru
      _
    %2783 = vsyncpa [#allocation4], 1
    %2784 = vsyncpa [#allocation7], 1
    %2785 = vsyncpa [#allocation10], 1
    %2786 = vsyncpa [#allocation13], 1
    %2787 = vsyncpa [#allocation16], 1
    %2788 = vsyncpa [#allocation5], 1

</llo_original>
